<compile_context>
chip_gen: v6e
topology: v6e:2x2x1
jax: 0.10.0
libtpu: 0.0.40
codegen_flags: <defaults>
</compile_context>

<pallas_src>
import functools

import jax
import jax.numpy as jnp
from jax.experimental import pallas as pl
from jax.experimental.pallas import tpu as pltpu


# ----------------------------------------------------------------------------
# Kernel: one grid step computes TH output rows of one batch element.
# ----------------------------------------------------------------------------
def _conv_bn_silu_kernel(x_ref, w_ref, b_ref, o_ref, acc_ref, *,
                         k, stride, TH, Wo, Cin, Cout_p, fuse_taps):
    """
    x_ref  : (1, Hp, Wp, Cin)    bf16  whole padded image of batch b (resident)
    w_ref  : (k*k*Cin, Cout_p)   bf16  if fuse_taps else (k*k, Cin, Cout_p)
    b_ref  : (1, Cout_p)         f32   folded BatchNorm bias
    o_ref  : (1, TH, Wo, Cout_p) bf16
    acc_ref: (TH*Wo, Cout_p)     f32   VMEM accumulator scratch
    """
    hb = pl.program_id(1)
    h0 = pl.multiple_of(hb * TH * stride, TH * stride)    # top padded row of block

    # k*k shifted views of the TH-row halo, each flattened to (TH*Wo, Cin).
    segs = []
    for ky in range(k):                                    # static, unrolled
        if stride == 1:
            rows = x_ref[0, pl.ds(h0 + ky, TH), :, :]      # (TH, Wp, Cin)
        else:
            rows = x_ref[0, pl.ds(h0 + ky, TH, stride=stride), :, :]
        for kx in range(k):                                # static, unrolled
            if stride == 1:
                seg = rows[:, kx:kx + Wo, :]               # (TH, Wo, Cin)
            else:
                # TODO(synk): a strided ref read on the W axis would keep this
                # in the vector-load slot instead of slicing the loaded value.
                seg = jax.lax.slice(rows, (0, kx, 0),
                                    (TH, kx + (Wo - 1) * stride + 1, Cin),
                                    (1, stride, 1))
            segs.append(seg.reshape(TH * Wo, Cin))

    if fuse_taps:
        # Cin lane-aligned: fuse all taps along the contraction axis so one
        # MXU matmul sees K = k*k*Cin (keeps the 256-deep v6e/v7x array fed).
        patch = jnp.concatenate(segs, axis=-1)             # (TH*Wo, k*k*Cin)
        acc_ref[...] = jnp.dot(patch, w_ref[...],
                               preferred_element_type=jnp.float32)
    else:
        # Small Cin: per-tap matmuls, f32 accumulation held in VMEM scratch
        # (avoids a large live vreg footprint across the unrolled taps).
        acc_ref[...] = jnp.dot(segs[0], w_ref[0],
                               preferred_element_type=jnp.float32)
        for t in range(1, k * k):
            acc_ref[...] += jnp.dot(segs[t], w_ref[t],
                                    preferred_element_type=jnp.float32)

    y = acc_ref[...] + b_ref[...]                          # folded BatchNorm bias
    y = y * (0.5 * (jnp.tanh(0.5 * y) + 1.0))              # SiLU, one EUP op/elem
    o_ref[...] = y.reshape(1, TH, Wo, Cout_p).astype(o_ref.dtype)


# ----------------------------------------------------------------------------
# Tiling / spec helpers.
# ----------------------------------------------------------------------------
def _pick_row_block(Ho, Wo, k, Cin, Cout_p):
    """Largest divisor TH of Ho such that the per-step working set (bf16
    patch + f32 accumulator + double-buffered output tile) stays a few MiB
    and M = TH*Wo stays MXU-sized (targets M >= 256 on v6e/v7x)."""
    best = 1
    for th in range(1, Ho + 1):
        if Ho % th:
            continue
        m = th * Wo
        step_bytes = m * (k * k * Cin * 2 + Cout_p * 4) + 2 * m * Cout_p * 2
        if m <= 2048 and step_bytes <= (8 << 20):
            best = th
    return best


def _resident_spec(shape, index_map):
    """BlockSpec for a grid-invariant operand (fetched once); single-buffered
    to avoid reserving a useless second pipeline copy in VMEM."""
    try:
        return pl.BlockSpec(shape, index_map, pipeline_mode=pl.Buffered(1))
    except TypeError:   # older BlockSpec signature without pipeline_mode
        return pl.BlockSpec(shape, index_map)


# ----------------------------------------------------------------------------
# BaseConv forward: conv + folded BN (inference) + SiLU, hot path in Pallas.
# ----------------------------------------------------------------------------
def base_conv_forward(x, weight, bn_gamma, bn_beta, bn_mean, bn_var,
                      *, stride=1, eps=1e-5):
    """x: (N, Cin, H, W); weight: (Cout, Cin, k, k). Returns (N, Cout, Ho, Wo)."""
    N, Cin, H, W = x.shape
    Cout, Cin_w, k, k2 = weight.shape
    assert Cin == Cin_w and k == k2
    pad = (k - 1) // 2                      # BaseConv autopad (odd kernel sizes)

    Ho = (H + 2 * pad - k) // stride + 1
    Wo = (W + 2 * pad - k) // stride + 1
    Hp, Wp = H + 2 * pad, W + 2 * pad
    Cout_p = pl.cdiv(Cout, 128) * 128       # lane-dense output channels
    fuse_taps = (Cin % 128 == 0)            # lane-aligned tap concat possible?

    # --- layout glue: NHWC + spatial zero pad, bf16 activations -------------
    # TODO(synk): in a multi-layer NHWC/bf16 pipeline these transposes/pads
    # (and the final NCHW transpose) would be elided between layers.
    x_nhwc = jnp.transpose(x, (0, 2, 3, 1)).astype(jnp.bfloat16)
    x_pad = jnp.pad(x_nhwc, ((0, 0), (pad, pad), (pad, pad), (0, 0)))

    # Fold inference BatchNorm: scale into the weight, bias kept separate.
    inv_std = jax.lax.rsqrt(bn_var.astype(jnp.float32) + eps)
    scale = bn_gamma.astype(jnp.float32) * inv_std                 # (Cout,)
    bias = bn_beta.astype(jnp.float32) - bn_mean.astype(jnp.float32) * scale

    # (Cout, Cin, k, k) -> tap-major (ky, kx, cin) weight, scale-folded, bf16.
    w_khw = jnp.transpose(weight, (2, 3, 1, 0)).astype(jnp.float32)  # (k,k,Cin,Cout)
    w_khw = w_khw * scale[None, None, None, :]
    if fuse_taps:
        w_t = w_khw.reshape(k * k * Cin, Cout)
        w_t = jnp.pad(w_t, ((0, 0), (0, Cout_p - Cout))).astype(jnp.bfloat16)
    else:
        w_t = w_khw.reshape(k * k, Cin, Cout)
        w_t = jnp.pad(w_t, ((0, 0), (0, 0), (0, Cout_p - Cout))).astype(jnp.bfloat16)
    bias_p = jnp.pad(bias, (0, Cout_p - Cout)).reshape(1, Cout_p).astype(jnp.float32)

    TH = _pick_row_block(Ho, Wo, k, Cin, Cout_p)
    nHb = Ho // TH

    kernel = functools.partial(_conv_bn_silu_kernel, k=k, stride=stride, TH=TH,
                               Wo=Wo, Cin=Cin, Cout_p=Cout_p, fuse_taps=fuse_taps)

    # Whole padded image of batch b stays resident in VMEM across the row-block
    # axis (constant index_map over hb => fetched once per b).  Weight/bias are
    # grid-invariant => single-buffered.
    # TODO(synk): feature maps too large for VMEM need a halo-slab input spec
    # ((TH*stride + k - 1) rows per step via pl.Element or a manual DMA).
    x_spec = pl.BlockSpec((1, Hp, Wp, Cin), lambda b, hb: (b, 0, 0, 0))
    w_spec = _resident_spec(w_t.shape, lambda b, hb: (0,) * w_t.ndim)
    b_spec = _resident_spec((1, Cout_p), lambda b, hb: (0, 0))
    o_spec = pl.BlockSpec((1, TH, Wo, Cout_p), lambda b, hb: (b, hb, 0, 0))

    # VMEM budget from the actual buffers (v7x: 64 MiB physical VMEM).
    x_bytes = Hp * Wp * Cin * 2                 # resident padded image / buffer
    w_bytes = k * k * Cin * Cout_p * 2          # single-buffered weight
    o_bytes = TH * Wo * Cout_p * 2              # output tile / buffer
    acc_bytes = TH * Wo * Cout_p * 4            # f32 accumulator scratch
    patch_bytes = TH * Wo * k * k * Cin * 2     # fused-tap patch value
    vmem_needed = (2 * x_bytes + w_bytes + Cout_p * 4
                   + 2 * o_bytes + acc_bytes + patch_bytes)
    vmem_limit = int(min(max(2 * vmem_needed + (4 << 20), 16 << 20), 48 << 20))

    flops = 2 * N * Ho * Wo * (k * k * Cin) * Cout_p
    bytes_accessed = (x_pad.size * 2 + w_t.size * 2 + bias_p.size * 4
                      + N * Ho * Wo * Cout_p * 2)

    out_nhwc = pl.pallas_call(
        kernel,
        out_shape=jax.ShapeDtypeStruct((N, Ho, Wo, Cout_p), jnp.bfloat16),
        grid_spec=pltpu.PrefetchScalarGridSpec(
            num_scalar_prefetch=0,
            grid=(N, nHb),
            in_specs=[x_spec, w_spec, b_spec],
            out_specs=o_spec,
            scratch_shapes=[pltpu.VMEM((TH * Wo, Cout_p), jnp.float32)],
        ),
        compiler_params=pltpu.CompilerParams(
            # TODO(synk): on v7x consider pltpu.CORE_PARALLEL on the batch axis
            # (or pl.core_map) to guarantee both TensorCores are used.
            dimension_semantics=("parallel", "arbitrary"),
            vmem_limit_bytes=vmem_limit,
        ),
        cost_estimate=pl.CostEstimate(
            flops=int(flops),
            transcendentals=int(N * Ho * Wo * Cout_p),
            bytes_accessed=int(bytes_accessed),
        ),
    )(x_pad, w_t, bias_p)

    # Strip lane padding; back to NCHW f32 only for external interface parity.
    out = out_nhwc[..., :Cout]
    out = jnp.transpose(out, (0, 3, 1, 2)).astype(jnp.float32)
    return out


# ----------------------------------------------------------------------------
# Main: deterministic params + input, run once, compare vs plain-JAX reference.
# ----------------------------------------------------------------------------
if __name__ == "__main__":
    key = jax.random.PRNGKey(0)
    k_x, k_w, k_g, k_b, k_m, k_v = jax.random.split(key, 6)

    # Small shapes consistent with BaseConv(in=4, out=8, ksize=3, stride=1).
    N, Cin, H, W = 2, 4, 16, 16
    Cout, ksize, stride = 8, 3, 1

    x = jax.random.normal(k_x, (N, Cin, H, W), dtype=jnp.float32)
    weight = jax.random.normal(k_w, (Cout, Cin, ksize, ksize), dtype=jnp.float32) * 0.1
    bn_gamma = 1.0 + 0.1 * jax.random.normal(k_g, (Cout,), dtype=jnp.float32)
    bn_beta = 0.1 * jax.random.normal(k_b, (Cout,), dtype=jnp.float32)
    bn_mean = 0.1 * jax.random.normal(k_m, (Cout,), dtype=jnp.float32)
    bn_var = jnp.abs(jax.random.normal(k_v, (Cout,), dtype=jnp.float32)) + 0.5

    fwd = jax.jit(functools.partial(base_conv_forward, stride=stride))
    out = fwd(x, weight, bn_gamma, bn_beta, bn_mean, bn_var)
    out = jax.block_until_ready(out)

    # Plain-JAX f32 reference (same inference-mode semantics).
    pad = (ksize - 1) // 2
    ref = jax.lax.conv_general_dilated(
        x, weight, window_strides=(stride, stride),
        padding=[(pad, pad), (pad, pad)],
        dimension_numbers=("NCHW", "OIHW", "NCHW"))
    inv_std = 1.0 / jnp.sqrt(bn_var + 1e-5)
    scale = bn_gamma * inv_std
    bias = bn_beta - bn_mean * scale
    ref = ref * scale[None, :, None, None] + bias[None, :, None, None]
    ref = ref * jax.nn.sigmoid(ref)

    assert out.shape == (N, Cout, H, W)
    max_err = float(jnp.max(jnp.abs(out - ref)))
    # bf16 activations/weights + bf16 writeback => ~1e-2 scale error budget.
    assert jnp.allclose(out, ref, atol=5e-2, rtol=5e-2), max_err
    print("KERNEL_OK")
</pallas_src>

<mosaic_0001>
module attributes {stable_mosaic.version = 11 : i64} {
  func.func @_conv_bn_silu_kernel(%arg0: i32, %arg1: i32, %arg2: memref<1x18x18x4xbf16, #tpu.memory_space<vmem>>, %arg3: memref<9x4x128xbf16, #tpu.memory_space<vmem>>, %arg4: memref<1x128xf32, #tpu.memory_space<vmem>>, %arg5: memref<1x16x16x128xbf16, #tpu.memory_space<vmem>>, %arg6: memref<256x128xf32, #tpu.memory_space<vmem>>) attributes {dimension_semantics = [#tpu.dimension_semantics<parallel>, #tpu.dimension_semantics<arbitrary>], iteration_bounds = array<i64: 2, 1>, scalar_prefetch = 0 : i64, scratch_operands = 1 : i64, tpu.core_type = #tpu.core_type<tc>, window_params = [{transform_indices = @transform_0, window_bounds = array<i64: 1, 18, 18, 4>}, {pipeline_mode = #tpu.pipeline_mode<synchronous>, transform_indices = @transform_1, window_bounds = array<i64: 9, 4, 128>}, {pipeline_mode = #tpu.pipeline_mode<synchronous>, transform_indices = @transform_2, window_bounds = array<i64: 1, 128>}, {transform_indices = @transform_3, window_bounds = array<i64: 1, 16, 16, 128>}]} {
    %c16_i32 = arith.constant 16 : i32
    %0 = arith.muli %arg1, %c16_i32 : i32
    %c1_i32 = arith.constant 1 : i32
    %1 = arith.muli %0, %c1_i32 : i32
    %2 = tpu.assume_multiple %1, 16 : i32
    %c0_i32 = arith.constant 0 : i32
    %3 = arith.addi %2, %c0_i32 : i32
    %c0 = arith.constant 0 : index
    %4 = arith.index_cast %3 : i32 to index
    %c0_0 = arith.constant 0 : index
    %c0_1 = arith.constant 0 : index
    %5 = vector.load %arg2[%c0, %4, %c0_0, %c0_1] : memref<1x18x18x4xbf16, #tpu.memory_space<vmem>>, vector<1x16x18x4xbf16>
    %6 = vector.shape_cast %5 : vector<1x16x18x4xbf16> to vector<16x18x4xbf16>
    %7 = vector.extract_strided_slice %6 {offsets = [0, 0, 0], sizes = [16, 16, 4], strides = [1, 1, 1]} : vector<16x18x4xbf16> to vector<16x16x4xbf16>
    %8 = vector.shape_cast %7 : vector<16x16x4xbf16> to vector<256x4xbf16>
    %9 = vector.extract_strided_slice %6 {offsets = [0, 1, 0], sizes = [16, 16, 4], strides = [1, 1, 1]} : vector<16x18x4xbf16> to vector<16x16x4xbf16>
    %10 = vector.shape_cast %9 : vector<16x16x4xbf16> to vector<256x4xbf16>
    %11 = vector.extract_strided_slice %6 {offsets = [0, 2, 0], sizes = [16, 16, 4], strides = [1, 1, 1]} : vector<16x18x4xbf16> to vector<16x16x4xbf16>
    %12 = vector.shape_cast %11 : vector<16x16x4xbf16> to vector<256x4xbf16>
    %c1_i32_2 = arith.constant 1 : i32
    %13 = arith.addi %2, %c1_i32_2 : i32
    %c0_3 = arith.constant 0 : index
    %14 = arith.index_cast %13 : i32 to index
    %c0_4 = arith.constant 0 : index
    %c0_5 = arith.constant 0 : index
    %15 = vector.load %arg2[%c0_3, %14, %c0_4, %c0_5] : memref<1x18x18x4xbf16, #tpu.memory_space<vmem>>, vector<1x16x18x4xbf16>
    %16 = vector.shape_cast %15 : vector<1x16x18x4xbf16> to vector<16x18x4xbf16>
    %17 = vector.extract_strided_slice %16 {offsets = [0, 0, 0], sizes = [16, 16, 4], strides = [1, 1, 1]} : vector<16x18x4xbf16> to vector<16x16x4xbf16>
    %18 = vector.shape_cast %17 : vector<16x16x4xbf16> to vector<256x4xbf16>
    %19 = vector.extract_strided_slice %16 {offsets = [0, 1, 0], sizes = [16, 16, 4], strides = [1, 1, 1]} : vector<16x18x4xbf16> to vector<16x16x4xbf16>
    %20 = vector.shape_cast %19 : vector<16x16x4xbf16> to vector<256x4xbf16>
    %21 = vector.extract_strided_slice %16 {offsets = [0, 2, 0], sizes = [16, 16, 4], strides = [1, 1, 1]} : vector<16x18x4xbf16> to vector<16x16x4xbf16>
    %22 = vector.shape_cast %21 : vector<16x16x4xbf16> to vector<256x4xbf16>
    %c2_i32 = arith.constant 2 : i32
    %23 = arith.addi %2, %c2_i32 : i32
    %c0_6 = arith.constant 0 : index
    %24 = arith.index_cast %23 : i32 to index
    %c0_7 = arith.constant 0 : index
    %c0_8 = arith.constant 0 : index
    %25 = vector.load %arg2[%c0_6, %24, %c0_7, %c0_8] : memref<1x18x18x4xbf16, #tpu.memory_space<vmem>>, vector<1x16x18x4xbf16>
    %26 = vector.shape_cast %25 : vector<1x16x18x4xbf16> to vector<16x18x4xbf16>
    %27 = vector.extract_strided_slice %26 {offsets = [0, 0, 0], sizes = [16, 16, 4], strides = [1, 1, 1]} : vector<16x18x4xbf16> to vector<16x16x4xbf16>
    %28 = vector.shape_cast %27 : vector<16x16x4xbf16> to vector<256x4xbf16>
    %29 = vector.extract_strided_slice %26 {offsets = [0, 1, 0], sizes = [16, 16, 4], strides = [1, 1, 1]} : vector<16x18x4xbf16> to vector<16x16x4xbf16>
    %30 = vector.shape_cast %29 : vector<16x16x4xbf16> to vector<256x4xbf16>
    %31 = vector.extract_strided_slice %26 {offsets = [0, 2, 0], sizes = [16, 16, 4], strides = [1, 1, 1]} : vector<16x18x4xbf16> to vector<16x16x4xbf16>
    %32 = vector.shape_cast %31 : vector<16x16x4xbf16> to vector<256x4xbf16>
    %c0_9 = arith.constant 0 : index
    %c0_10 = arith.constant 0 : index
    %c0_11 = arith.constant 0 : index
    %33 = vector.load %arg3[%c0_9, %c0_10, %c0_11] : memref<9x4x128xbf16, #tpu.memory_space<vmem>>, vector<1x4x128xbf16>
    %34 = vector.shape_cast %33 : vector<1x4x128xbf16> to vector<4x128xbf16>
    %cst = arith.constant dense<0.000000e+00> : vector<256x128xf32>
    %35 = tpu.matmul %8, %34, %cst {dimension_numbers = #tpu.dot_dimension_numbers<[1], [0], [0], [1], [0, 0, 1, 1], [], []>} : vector<256x4xbf16>, vector<4x128xbf16>, vector<256x128xf32> -> vector<256x128xf32>
    %c0_12 = arith.constant 0 : index
    %c0_13 = arith.constant 0 : index
    %36 = vector.load %arg6[%c0_12, %c0_13] : memref<256x128xf32, #tpu.memory_space<vmem>>, vector<256x128xf32>
    tpu.vector_store %arg6[%c0_12, %c0_13], %35 {strides = array<i32>} : memref<256x128xf32, #tpu.memory_space<vmem>>, vector<256x128xf32>,
    %c0_14 = arith.constant 0 : index
    %c0_15 = arith.constant 0 : index
    %37 = vector.load %arg6[%c0_14, %c0_15] : memref<256x128xf32, #tpu.memory_space<vmem>>, vector<256x128xf32>
    %c1 = arith.constant 1 : index
    %c0_16 = arith.constant 0 : index
    %c0_17 = arith.constant 0 : index
    %38 = vector.load %arg3[%c1, %c0_16, %c0_17] : memref<9x4x128xbf16, #tpu.memory_space<vmem>>, vector<1x4x128xbf16>
    %39 = vector.shape_cast %38 : vector<1x4x128xbf16> to vector<4x128xbf16>
    %cst_18 = arith.constant dense<0.000000e+00> : vector<256x128xf32>
    %40 = tpu.matmul %10, %39, %cst_18 {dimension_numbers = #tpu.dot_dimension_numbers<[1], [0], [0], [1], [0, 0, 1, 1], [], []>} : vector<256x4xbf16>, vector<4x128xbf16>, vector<256x128xf32> -> vector<256x128xf32>
    %41 = arith.addf %37, %40 : vector<256x128xf32>
    %c0_19 = arith.constant 0 : index
    %c0_20 = arith.constant 0 : index
    %42 = vector.load %arg6[%c0_19, %c0_20] : memref<256x128xf32, #tpu.memory_space<vmem>>, vector<256x128xf32>
    tpu.vector_store %arg6[%c0_19, %c0_20], %41 {strides = array<i32>} : memref<256x128xf32, #tpu.memory_space<vmem>>, vector<256x128xf32>,
    %c0_21 = arith.constant 0 : index
    %c0_22 = arith.constant 0 : index
    %43 = vector.load %arg6[%c0_21, %c0_22] : memref<256x128xf32, #tpu.memory_space<vmem>>, vector<256x128xf32>
    %c2 = arith.constant 2 : index
    %c0_23 = arith.constant 0 : index
    %c0_24 = arith.constant 0 : index
    %44 = vector.load %arg3[%c2, %c0_23, %c0_24] : memref<9x4x128xbf16, #tpu.memory_space<vmem>>, vector<1x4x128xbf16>
    %45 = vector.shape_cast %44 : vector<1x4x128xbf16> to vector<4x128xbf16>
    %cst_25 = arith.constant dense<0.000000e+00> : vector<256x128xf32>
    %46 = tpu.matmul %12, %45, %cst_25 {dimension_numbers = #tpu.dot_dimension_numbers<[1], [0], [0], [1], [0, 0, 1, 1], [], []>} : vector<256x4xbf16>, vector<4x128xbf16>, vector<256x128xf32> -> vector<256x128xf32>
    %47 = arith.addf %43, %46 : vector<256x128xf32>
    %c0_26 = arith.constant 0 : index
    %c0_27 = arith.constant 0 : index
    %48 = vector.load %arg6[%c0_26, %c0_27] : memref<256x128xf32, #tpu.memory_space<vmem>>, vector<256x128xf32>
    tpu.vector_store %arg6[%c0_26, %c0_27], %47 {strides = array<i32>} : memref<256x128xf32, #tpu.memory_space<vmem>>, vector<256x128xf32>,
    %c0_28 = arith.constant 0 : index
    %c0_29 = arith.constant 0 : index
    %49 = vector.load %arg6[%c0_28, %c0_29] : memref<256x128xf32, #tpu.memory_space<vmem>>, vector<256x128xf32>
    %c3 = arith.constant 3 : index
    %c0_30 = arith.constant 0 : index
    %c0_31 = arith.constant 0 : index
    %50 = vector.load %arg3[%c3, %c0_30, %c0_31] : memref<9x4x128xbf16, #tpu.memory_space<vmem>>, vector<1x4x128xbf16>
    %51 = vector.shape_cast %50 : vector<1x4x128xbf16> to vector<4x128xbf16>
    %cst_32 = arith.constant dense<0.000000e+00> : vector<256x128xf32>
    %52 = tpu.matmul %18, %51, %cst_32 {dimension_numbers = #tpu.dot_dimension_numbers<[1], [0], [0], [1], [0, 0, 1, 1], [], []>} : vector<256x4xbf16>, vector<4x128xbf16>, vector<256x128xf32> -> vector<256x128xf32>
    %53 = arith.addf %49, %52 : vector<256x128xf32>
    %c0_33 = arith.constant 0 : index
    %c0_34 = arith.constant 0 : index
    %54 = vector.load %arg6[%c0_33, %c0_34] : memref<256x128xf32, #tpu.memory_space<vmem>>, vector<256x128xf32>
    tpu.vector_store %arg6[%c0_33, %c0_34], %53 {strides = array<i32>} : memref<256x128xf32, #tpu.memory_space<vmem>>, vector<256x128xf32>,
    %c0_35 = arith.constant 0 : index
    %c0_36 = arith.constant 0 : index
    %55 = vector.load %arg6[%c0_35, %c0_36] : memref<256x128xf32, #tpu.memory_space<vmem>>, vector<256x128xf32>
    %c4 = arith.constant 4 : index
    %c0_37 = arith.constant 0 : index
    %c0_38 = arith.constant 0 : index
    %56 = vector.load %arg3[%c4, %c0_37, %c0_38] : memref<9x4x128xbf16, #tpu.memory_space<vmem>>, vector<1x4x128xbf16>
    %57 = vector.shape_cast %56 : vector<1x4x128xbf16> to vector<4x128xbf16>
    %cst_39 = arith.constant dense<0.000000e+00> : vector<256x128xf32>
    %58 = tpu.matmul %20, %57, %cst_39 {dimension_numbers = #tpu.dot_dimension_numbers<[1], [0], [0], [1], [0, 0, 1, 1], [], []>} : vector<256x4xbf16>, vector<4x128xbf16>, vector<256x128xf32> -> vector<256x128xf32>
    %59 = arith.addf %55, %58 : vector<256x128xf32>
    %c0_40 = arith.constant 0 : index
    %c0_41 = arith.constant 0 : index
    %60 = vector.load %arg6[%c0_40, %c0_41] : memref<256x128xf32, #tpu.memory_space<vmem>>, vector<256x128xf32>
    tpu.vector_store %arg6[%c0_40, %c0_41], %59 {strides = array<i32>} : memref<256x128xf32, #tpu.memory_space<vmem>>, vector<256x128xf32>,
    %c0_42 = arith.constant 0 : index
    %c0_43 = arith.constant 0 : index
    %61 = vector.load %arg6[%c0_42, %c0_43] : memref<256x128xf32, #tpu.memory_space<vmem>>, vector<256x128xf32>
    %c5 = arith.constant 5 : index
    %c0_44 = arith.constant 0 : index
    %c0_45 = arith.constant 0 : index
    %62 = vector.load %arg3[%c5, %c0_44, %c0_45] : memref<9x4x128xbf16, #tpu.memory_space<vmem>>, vector<1x4x128xbf16>
    %63 = vector.shape_cast %62 : vector<1x4x128xbf16> to vector<4x128xbf16>
    %cst_46 = arith.constant dense<0.000000e+00> : vector<256x128xf32>
    %64 = tpu.matmul %22, %63, %cst_46 {dimension_numbers = #tpu.dot_dimension_numbers<[1], [0], [0], [1], [0, 0, 1, 1], [], []>} : vector<256x4xbf16>, vector<4x128xbf16>, vector<256x128xf32> -> vector<256x128xf32>
    %65 = arith.addf %61, %64 : vector<256x128xf32>
    %c0_47 = arith.constant 0 : index
    %c0_48 = arith.constant 0 : index
    %66 = vector.load %arg6[%c0_47, %c0_48] : memref<256x128xf32, #tpu.memory_space<vmem>>, vector<256x128xf32>
    tpu.vector_store %arg6[%c0_47, %c0_48], %65 {strides = array<i32>} : memref<256x128xf32, #tpu.memory_space<vmem>>, vector<256x128xf32>,
    %c0_49 = arith.constant 0 : index
    %c0_50 = arith.constant 0 : index
    %67 = vector.load %arg6[%c0_49, %c0_50] : memref<256x128xf32, #tpu.memory_space<vmem>>, vector<256x128xf32>
    %c6 = arith.constant 6 : index
    %c0_51 = arith.constant 0 : index
    %c0_52 = arith.constant 0 : index
    %68 = vector.load %arg3[%c6, %c0_51, %c0_52] : memref<9x4x128xbf16, #tpu.memory_space<vmem>>, vector<1x4x128xbf16>
    %69 = vector.shape_cast %68 : vector<1x4x128xbf16> to vector<4x128xbf16>
    %cst_53 = arith.constant dense<0.000000e+00> : vector<256x128xf32>
    %70 = tpu.matmul %28, %69, %cst_53 {dimension_numbers = #tpu.dot_dimension_numbers<[1], [0], [0], [1], [0, 0, 1, 1], [], []>} : vector<256x4xbf16>, vector<4x128xbf16>, vector<256x128xf32> -> vector<256x128xf32>
    %71 = arith.addf %67, %70 : vector<256x128xf32>
    %c0_54 = arith.constant 0 : index
    %c0_55 = arith.constant 0 : index
    %72 = vector.load %arg6[%c0_54, %c0_55] : memref<256x128xf32, #tpu.memory_space<vmem>>, vector<256x128xf32>
    tpu.vector_store %arg6[%c0_54, %c0_55], %71 {strides = array<i32>} : memref<256x128xf32, #tpu.memory_space<vmem>>, vector<256x128xf32>,
    %c0_56 = arith.constant 0 : index
    %c0_57 = arith.constant 0 : index
    %73 = vector.load %arg6[%c0_56, %c0_57] : memref<256x128xf32, #tpu.memory_space<vmem>>, vector<256x128xf32>
    %c7 = arith.constant 7 : index
    %c0_58 = arith.constant 0 : index
    %c0_59 = arith.constant 0 : index
    %74 = vector.load %arg3[%c7, %c0_58, %c0_59] : memref<9x4x128xbf16, #tpu.memory_space<vmem>>, vector<1x4x128xbf16>
    %75 = vector.shape_cast %74 : vector<1x4x128xbf16> to vector<4x128xbf16>
    %cst_60 = arith.constant dense<0.000000e+00> : vector<256x128xf32>
    %76 = tpu.matmul %30, %75, %cst_60 {dimension_numbers = #tpu.dot_dimension_numbers<[1], [0], [0], [1], [0, 0, 1, 1], [], []>} : vector<256x4xbf16>, vector<4x128xbf16>, vector<256x128xf32> -> vector<256x128xf32>
    %77 = arith.addf %73, %76 : vector<256x128xf32>
    %c0_61 = arith.constant 0 : index
    %c0_62 = arith.constant 0 : index
    %78 = vector.load %arg6[%c0_61, %c0_62] : memref<256x128xf32, #tpu.memory_space<vmem>>, vector<256x128xf32>
    tpu.vector_store %arg6[%c0_61, %c0_62], %77 {strides = array<i32>} : memref<256x128xf32, #tpu.memory_space<vmem>>, vector<256x128xf32>,
    %c0_63 = arith.constant 0 : index
    %c0_64 = arith.constant 0 : index
    %79 = vector.load %arg6[%c0_63, %c0_64] : memref<256x128xf32, #tpu.memory_space<vmem>>, vector<256x128xf32>
    %c8 = arith.constant 8 : index
    %c0_65 = arith.constant 0 : index
    %c0_66 = arith.constant 0 : index
    %80 = vector.load %arg3[%c8, %c0_65, %c0_66] : memref<9x4x128xbf16, #tpu.memory_space<vmem>>, vector<1x4x128xbf16>
    %81 = vector.shape_cast %80 : vector<1x4x128xbf16> to vector<4x128xbf16>
    %cst_67 = arith.constant dense<0.000000e+00> : vector<256x128xf32>
    %82 = tpu.matmul %32, %81, %cst_67 {dimension_numbers = #tpu.dot_dimension_numbers<[1], [0], [0], [1], [0, 0, 1, 1], [], []>} : vector<256x4xbf16>, vector<4x128xbf16>, vector<256x128xf32> -> vector<256x128xf32>
    %83 = arith.addf %79, %82 : vector<256x128xf32>
    %c0_68 = arith.constant 0 : index
    %c0_69 = arith.constant 0 : index
    %84 = vector.load %arg6[%c0_68, %c0_69] : memref<256x128xf32, #tpu.memory_space<vmem>>, vector<256x128xf32>
    tpu.vector_store %arg6[%c0_68, %c0_69], %83 {strides = array<i32>} : memref<256x128xf32, #tpu.memory_space<vmem>>, vector<256x128xf32>,
    %c0_70 = arith.constant 0 : index
    %c0_71 = arith.constant 0 : index
    %85 = vector.load %arg6[%c0_70, %c0_71] : memref<256x128xf32, #tpu.memory_space<vmem>>, vector<256x128xf32>
    %c0_72 = arith.constant 0 : index
    %c0_73 = arith.constant 0 : index
    %86 = vector.load %arg4[%c0_72, %c0_73] : memref<1x128xf32, #tpu.memory_space<vmem>>, vector<1x128xf32>
    %87 = vector.broadcast %86 : vector<1x128xf32> to vector<256x128xf32>
    %88 = arith.addf %85, %87 : vector<256x128xf32>
    %cst_74 = arith.constant 5.000000e-01 : f32
    %89 = vector.broadcast %cst_74 : f32 to vector<256x128xf32>
    %90 = arith.mulf %89, %88 : vector<256x128xf32>
    %91 = math.tanh %90 : vector<256x128xf32>
    %cst_75 = arith.constant 1.000000e+00 : f32
    %92 = vector.broadcast %cst_75 : f32 to vector<256x128xf32>
    %93 = arith.addf %91, %92 : vector<256x128xf32>
    %cst_76 = arith.constant 5.000000e-01 : f32
    %94 = vector.broadcast %cst_76 : f32 to vector<256x128xf32>
    %95 = arith.mulf %94, %93 : vector<256x128xf32>
    %96 = arith.mulf %88, %95 : vector<256x128xf32>
    %97 = vector.shape_cast %96 : vector<256x128xf32> to vector<1x16x16x128xf32>
    %98 = arith.truncf %97 : vector<1x16x16x128xf32> to vector<1x16x16x128xbf16>
    %c0_77 = arith.constant 0 : index
    %c0_78 = arith.constant 0 : index
    %c0_79 = arith.constant 0 : index
    %c0_80 = arith.constant 0 : index
    %99 = vector.load %arg5[%c0_77, %c0_78, %c0_79, %c0_80] : memref<1x16x16x128xbf16, #tpu.memory_space<vmem>>, vector<1x16x16x128xbf16>
    tpu.vector_store %arg5[%c0_77, %c0_78, %c0_79, %c0_80], %98 {strides = array<i32>} : memref<1x16x16x128xbf16, #tpu.memory_space<vmem>>, vector<1x16x16x128xbf16>,
    return
  }
  func.func @transform_0(%arg0: i32, %arg1: i32) -> (i32, i32, i32, i32) {
    %c0_i32 = arith.constant 0 : i32
    %c0_i32_0 = arith.constant 0 : i32
    %c0_i32_1 = arith.constant 0 : i32
    %c0_i32_2 = arith.constant 0 : i32
    return %arg0, %c0_i32, %c0_i32_0, %c0_i32_1 : i32, i32, i32, i32
  }
  func.func @transform_1(%arg0: i32, %arg1: i32) -> (i32, i32, i32) {
    %c0_i32 = arith.constant 0 : i32
    %c0_i32_0 = arith.constant 0 : i32
    %c0_i32_1 = arith.constant 0 : i32
    %c0_i32_2 = arith.constant 0 : i32
    return %c0_i32, %c0_i32_0, %c0_i32_1 : i32, i32, i32
  }
  func.func @transform_2(%arg0: i32, %arg1: i32) -> (i32, i32) {
    %c0_i32 = arith.constant 0 : i32
    %c0_i32_0 = arith.constant 0 : i32
    %c0_i32_1 = arith.constant 0 : i32
    return %c0_i32, %c0_i32_0 : i32, i32
  }
  func.func @transform_3(%arg0: i32, %arg1: i32) -> (i32, i32, i32, i32) {
    %c0_i32 = arith.constant 0 : i32
    %c0_i32_0 = arith.constant 0 : i32
    %c0_i32_1 = arith.constant 0 : i32
    return %arg0, %arg1, %c0_i32, %c0_i32_0 : i32, i32, i32, i32
  }
}

</mosaic_0001>

<llo_original>
// kernel: base_conv_forward.1
$region0: #{base_conv_forward.1}
  #allocation0 [shape = 'u32[]', space=smem, size = 0x4, offset = 0x4, fixed_abs, tag = 'smem constant byte address 0x4 - core index']
  #allocation1 [shape = 'u32[144,128]{1,0:T(1,128)}', space=vmem, size = 0x12000, scoped, tag = 'internal scratch']
  #allocation2 [shape = 'f32[256,128]{1,0:T(8,128)}', space=vmem, size = 0x20000, scoped, tag = 'scratch operand']
  %s0 = inlined_call_operand.vmem [shape: bf16[2,18,18,4], index: 0, kind: input, shape index: {}]
  %s1 = inlined_call_operand.vmem [shape: bf16[9,4,128], index: 1, kind: input, shape index: {}]
  %s2 = inlined_call_operand.vmem [shape: f32[1,128], index: 2, kind: input, shape index: {}]
  %s3 = inlined_call_operand.vmem [shape: bf16[2,16,16,128], index: 3, kind: output, shape index: {}]
  %s4 = sld [smem:[#allocation0]]
  $region45: #{base_conv_forward.1} parent=0
    _
  %s6 = ssub.s32 1, %s4
  %s7 = scalar_select 0, %s6, %s4
  loop: start=0, step=1, limit=4
  $region2: #{base_conv_forward.1} parent=0 // loop_pre_header
    _
  $region3: #{base_conv_forward.1} parent=0 // loop_header
    %s9 = sphi 0, %s13
    %p10 = scmp.ge.s32.totalorder %s9, 4
    %s16 = sphi 0, %s28
    %s17 = sphi 0, %s24
    %s18 = sphi 0, %s16
    %s19 = sphi 0, %s17
    %s20 = sphi 0, %s18
    %s21 = sphi 0, %s19
    %s31 = sphi 0, %s33
    %s34 = sphi 0, %s31
    %s35 = sphi 0, %s34
    %s51 = sphi 0, %s35
    %s55 = sphi 0, %s55
    %s57 = sphi 0, %s55
    %s58 = sphi 0, %s57
    %s72 = sphi 0, %s58
    %s76 = sphi 0, %s76
    %s78 = sphi 0, %s76
    %s79 = sphi 0, %s78
    %s93 = sphi 0, %s79
    %s101 = sphi 0, %s103
    %s104 = sphi 0, %s101
    %s105 = sphi 0, %s104
    %s121 = sphi 0, %s105
  $region4: #{base_conv_forward.1} parent=0 // loop_header_branch
    %12 = sbr.rel (%p10) target = $region8
  $region5: #{base_conv_forward.1} parent=0 // loop_body
    %s14 = ssub.s32 %s9, 1
    %s15 = ssub.s32 %s9, 2
    %s22 = sadd.s32 1, %s17
    %p23 = scmp.ge.s32.totalorder %s22, 1
    %s24 = scalar_select %p23, 0, %s22
    %s25 = sadd.s32 1, %s16
    %s26 = scalar_select %p23, %s25, %s16
    %p27 = scmp.ge.s32.totalorder %s26, 2
    %s28 = scalar_select %p27, 0, %s26
    %s29 = ssub.s32 %s16, %s28
    %p30 = scmp.eq.s32.totalorder %s29, 0
    %s32 = sadd.s32 %s31, 1
    %s33 = scalar_select %p30, %s31, %s32
    %p36 = pneg %p30
    %p37 = scmp.eq.s32.totalorder %s9, 1
    %p38 = por %p36, %p37
    %p39 = scmp.ne.s32.totalorder %s31, %s34
    %p40 = scmp.eq.s32.totalorder %s9, 0
    %p41 = por %p39, %p40
    %p42 = scmp.ne.s32.totalorder %s31, %s34
    %p43 = scmp.eq.s32.totalorder %s14, 1
    %p44 = por %p42, %p43
    %p45 = scmp.ne.s32.totalorder %s34, %s35
    %p46 = scmp.eq.s32.totalorder %s14, 0
    %p47 = por %p45, %p46
    %p48 = scmp.ne.s32.totalorder %s34, %s35
    %p49 = scmp.eq.s32.totalorder %s15, 1
    %p50 = por %p48, %p49
    %p52 = scmp.ne.s32.totalorder %s35, %s51
    %p53 = scmp.eq.s32.totalorder %s15, 0
    %p54 = por %p52, %p53
    %s56 = sadd.s32 %s55, 1
    %p59 = scmp.eq.s32.totalorder %s9, 1
    %p60 = scmp.ne.s32.totalorder %s55, %s57
    %p61 = scmp.eq.s32.totalorder %s9, 0
    %p62 = por %p60, %p61
    %p63 = scmp.ne.s32.totalorder %s55, %s57
    %p64 = scmp.eq.s32.totalorder %s14, 1
    %p65 = por %p63, %p64
    %p66 = scmp.ne.s32.totalorder %s57, %s58
    %p67 = scmp.eq.s32.totalorder %s14, 0
    %p68 = por %p66, %p67
    %p69 = scmp.ne.s32.totalorder %s57, %s58
    %p70 = scmp.eq.s32.totalorder %s15, 1
    %p71 = por %p69, %p70
    %p73 = scmp.ne.s32.totalorder %s58, %s72
    %p74 = scmp.eq.s32.totalorder %s15, 0
    %p75 = por %p73, %p74
    %s77 = sadd.s32 %s76, 1
    %p80 = scmp.eq.s32.totalorder %s9, 1
    %p81 = scmp.ne.s32.totalorder %s76, %s78
    %p82 = scmp.eq.s32.totalorder %s9, 0
    %p83 = por %p81, %p82
    %p84 = scmp.ne.s32.totalorder %s76, %s78
    %p85 = scmp.eq.s32.totalorder %s14, 1
    %p86 = por %p84, %p85
    %p87 = scmp.ne.s32.totalorder %s78, %s79
    %p88 = scmp.eq.s32.totalorder %s14, 0
    %p89 = por %p87, %p88
    %p90 = scmp.ne.s32.totalorder %s78, %s79
    %p91 = scmp.eq.s32.totalorder %s15, 1
    %p92 = por %p90, %p91
    %p94 = scmp.ne.s32.totalorder %s79, %s93
    %p95 = scmp.eq.s32.totalorder %s15, 0
    %p96 = por %p94, %p95
    %s97 = ssub.s32 %s16, %s28
    %s98 = ssub.s32 %s17, %s24
    %s99 = sor.u32 %s97, %s98
    %p100 = scmp.eq.s32.totalorder %s99, 0
    %s102 = sadd.s32 %s101, 1
    %s103 = scalar_select %p100, %s101, %s102
    %p106 = pneg %p100
    %p107 = scmp.eq.s32.totalorder %s9, 1
    %p108 = por %p106, %p107
    %p109 = scmp.ne.s32.totalorder %s101, %s104
    %p110 = scmp.eq.s32.totalorder %s9, 0
    %p111 = por %p109, %p110
    %p112 = scmp.ne.s32.totalorder %s101, %s104
    %p113 = scmp.eq.s32.totalorder %s14, 1
    %p114 = por %p112, %p113
    %p115 = scmp.ne.s32.totalorder %s104, %s105
    %p116 = scmp.eq.s32.totalorder %s14, 0
    %p117 = por %p115, %p116
    %p118 = scmp.ne.s32.totalorder %s104, %s105
    %p119 = scmp.eq.s32.totalorder %s15, 1
    %p120 = por %p118, %p119
    %p122 = scmp.ne.s32.totalorder %s105, %s121
    %p123 = scmp.eq.s32.totalorder %s15, 0
    %p124 = por %p122, %p123
    %p125 = scmp.le.s32.totalorder 1, %s9
    %p126 = scmp.lt.s32.totalorder %s9, 3
    %p127 = pnand %p125, %p126
    %p128 = pneg %p127
    // Predicated region
    $region9: #{base_conv_forward.1} parent=5 // pred_check
      _
    $region10: #{base_conv_forward.1} parent=5 // pred_check_branch
      %130 = sbr.rel (%p127) target = $region12
    $region11: #{base_conv_forward.1} parent=5 // pred_region
      %s131 = ssub.s32 %s9, 1
      // Predicated region
      $region13: #{base_conv_forward.1} parent=11 // pred_check
        %p132 = pneg %p68
      $region14: #{base_conv_forward.1} parent=11 // pred_check_branch
        %134 = sbr.rel (%p132) target = $region16
      $region15: #{base_conv_forward.1} parent=11 // pred_region
        _
      $region16: #{base_conv_forward.1} parent=11 // pred_fallthru
        _
      // Predicated region
      $region17: #{base_conv_forward.1} parent=11 // pred_check
        %p135 = pneg %p89
      $region18: #{base_conv_forward.1} parent=11 // pred_check_branch
        %137 = sbr.rel (%p135) target = $region20
      $region19: #{base_conv_forward.1} parent=11 // pred_region
        _
      $region20: #{base_conv_forward.1} parent=11 // pred_fallthru
        _
    $region12: #{base_conv_forward.1} parent=5 // pred_fallthru
      _
    %p138 = scmp.lt.s32.totalorder %s9, 2
    // Predicated region
    $region21: #{base_conv_forward.1} parent=5 // pred_check
      %p139 = pneg %p138
    $region22: #{base_conv_forward.1} parent=5 // pred_check_branch
      %141 = sbr.rel (%p139) target = $region24
    $region23: #{base_conv_forward.1} parent=5 // pred_region
      // Predicated region
      $region25: #{base_conv_forward.1} parent=23 // pred_check
        %p142 = pneg %p41
      $region26: #{base_conv_forward.1} parent=23 // pred_check_branch
        %144 = sbr.rel (%p142) target = $region28
      $region27: #{base_conv_forward.1} parent=23 // pred_region
        %p145 = scmp.lt.s32.totalorder %s16, 1
        %s146 = scalar_select %p145, %s16, 1
        %s147 = smul.addr %s146, 54
        %s148 = smul.addr %s147, 4
        %s149 = scalar_lea.vmem %s0, %s148
      $region28: #{base_conv_forward.1} parent=23 // pred_fallthru
        _
    $region24: #{base_conv_forward.1} parent=5 // pred_fallthru
      _
    %p150 = scmp.le.s32.totalorder 1, %s9
    %p151 = scmp.lt.s32.totalorder %s9, 3
    %p152 = pnand %p150, %p151
    %p153 = pneg %p152
    // Predicated region
    $region29: #{base_conv_forward.1} parent=5 // pred_check
      _
    $region30: #{base_conv_forward.1} parent=5 // pred_check_branch
      %155 = sbr.rel (%p152) target = $region32
    $region31: #{base_conv_forward.1} parent=5 // pred_region
      %s156 = ssub.s32 %s9, 1
      %p157 = scmp.lt.s32.totalorder %s18, 1
      %s158 = scalar_select %p157, %s18, 1
      %s159 = smul.addr %s158, 54
      %s160 = smul.addr %s159, 4
      %s161 = scalar_lea.vmem %s0, %s160
      %p162 = pneg %p47
      %p163 = pneg %p44
      %p164 = pneg %p68
      %p165 = pneg %p65
      %p166 = pneg %p89
      %p167 = pneg %p86
      %p168 = pneg %p117
      %p169 = pneg %p114
      %s170 = smul.u32 16, %s19
      %p171 = scmp.lt.s32.totalorder %s18, 1
      %s172 = scalar_select %p171, %s18, 1
      %p173 = scmp.lt.s32.totalorder %s170, 15
      %s174 = scalar_select %p173, %s170, 15
      %s175 = smul.addr %s174, 2
      %s176 = smul.addr %s172, 32
      %s177 = sadd.s32 %s175, %s176
      %s178 = smul.addr %s177, 4
      %s179 = scalar_lea.vmem %s3, %s178
      %p180 = scmp.lt.s32.totalorder %s18, 1
      %s181 = scalar_select %p180, %s18, 1
      %s182 = smul.addr %s181, 54
      %s183 = smul.addr %s182, 4
      %s184 = scalar_lea.vmem %s0, %s183
      %s185 = smul.u32 16, %s19
      %p186 = scmp.lt.s32.totalorder %s18, 1
      %s187 = scalar_select %p186, %s18, 1
      %p188 = scmp.lt.s32.totalorder %s185, 15
      %s189 = scalar_select %p188, %s185, 15
      %s190 = smul.addr %s189, 2
      %s191 = smul.addr %s187, 32
      %s192 = sadd.s32 %s190, %s191
      %s193 = smul.addr %s192, 4
      %s194 = scalar_lea.vmem %s3, %s193
      %s195 = smul.u32 16, %s19
      %s197 = smul.u32 %s19, 16
      %s198 = smul.u32 %s197, 3
      %s199 = smul.addr %s198, 4
      %s200 = scalar_lea.vmem %s184, %s199
      %v201 = vld [vmem:[%s200] sm:$0xf]
      %v202 = vld [vmem:[%s200 + $0x4] sm:$0xf]
      %v203 = vld [vmem:[%s200 + $0x8] sm:$0x1]
      %v204 = vld [vmem:[%s200 + $0xc] sm:$0xf]
      %v205 = vld [vmem:[%s200 + $0x10] sm:$0xf]
      %v206 = vld [vmem:[%s200 + $0x14] sm:$0x1]
      %v207 = vld [vmem:[%s200 + $0x18] sm:$0xf]
      %v208 = vld [vmem:[%s200 + $0x1c] sm:$0xf]
      %v209 = vld [vmem:[%s200 + $0x20] sm:$0x1]
      %v210 = vld [vmem:[%s200 + $0x24] sm:$0xf]
      %v211 = vld [vmem:[%s200 + $0x28] sm:$0xf]
      %v212 = vld [vmem:[%s200 + $0x2c] sm:$0x1]
      %v213 = vld [vmem:[%s200 + $0x30] sm:$0xf]
      %v214 = vld [vmem:[%s200 + $0x34] sm:$0xf]
      %v215 = vld [vmem:[%s200 + $0x38] sm:$0x1]
      %v216 = vld [vmem:[%s200 + $0x3c] sm:$0xf]
      %v217 = vld [vmem:[%s200 + $0x40] sm:$0xf]
      %v218 = vld [vmem:[%s200 + $0x44] sm:$0x1]
      %v219 = vld [vmem:[%s200 + $0x48] sm:$0xf]
      %v220 = vld [vmem:[%s200 + $0x4c] sm:$0xf]
      %v221 = vld [vmem:[%s200 + $0x50] sm:$0x1]
      %v222 = vld [vmem:[%s200 + $0x54] sm:$0xf]
      %v223 = vld [vmem:[%s200 + $0x58] sm:$0xf]
      %v224 = vld [vmem:[%s200 + $0x5c] sm:$0x1]
      %v225 = vld [vmem:[%s200 + $0x60] sm:$0xf]
      %v226 = vld [vmem:[%s200 + $0x64] sm:$0xf]
      %v227 = vld [vmem:[%s200 + $0x68] sm:$0x1]
      %v228 = vld [vmem:[%s200 + $0x6c] sm:$0xf]
      %v229 = vld [vmem:[%s200 + $0x70] sm:$0xf]
      %v230 = vld [vmem:[%s200 + $0x74] sm:$0x1]
      %v231 = vld [vmem:[%s200 + $0x78] sm:$0xf]
      %v232 = vld [vmem:[%s200 + $0x7c] sm:$0xf]
      %v233 = vld [vmem:[%s200 + $0x80] sm:$0x1]
      %v234 = vld [vmem:[%s200 + $0x84] sm:$0xf]
      %v235 = vld [vmem:[%s200 + $0x88] sm:$0xf]
      %v236 = vld [vmem:[%s200 + $0x8c] sm:$0x1]
      %v237 = vld [vmem:[%s200 + $0x90] sm:$0xf]
      %v238 = vld [vmem:[%s200 + $0x94] sm:$0xf]
      %v239 = vld [vmem:[%s200 + $0x98] sm:$0x1]
      %v240 = vld [vmem:[%s200 + $0x9c] sm:$0xf]
      %v241 = vld [vmem:[%s200 + $0xa0] sm:$0xf]
      %v242 = vld [vmem:[%s200 + $0xa4] sm:$0x1]
      %v243 = vld [vmem:[%s200 + $0xa8] sm:$0xf]
      %v244 = vld [vmem:[%s200 + $0xac] sm:$0xf]
      %v245 = vld [vmem:[%s200 + $0xb0] sm:$0x1]
      %v246 = vld [vmem:[%s200 + $0xb4] sm:$0xf]
      %v247 = vld [vmem:[%s200 + $0xb8] sm:$0xf]
      %v248 = vld [vmem:[%s200 + $0xbc] sm:$0x1]
      %vm249 = vsmask.f32 3328
      %vm250 = vsmask.f32 7440
      %vm251 = vmor %vm249, %vm250
      %v253 = vshrl.u32 %v201, 16
      %v255 = vrot.slane %v253, 4
      %v256 = vshll.u32 %v201, 16
      %v258 = vrot.slane %v256, 5
      %v259 = vor.u32 %v255, %v258
      %v260 = vrot.slane %v259, 4
      %v262 = vshll.u32 %v202, 16
      %v264 = vrot.slane %v262, 5
      %v265 = vsel %vm251, %v260, %v264
      %v266 = vshrl.u32 %v202, 16
      %v268 = vrot.slane %v266, 4
      %v269 = vor.u32 %v268, %v264
      %v270 = vrot.slane %v269, 4
      %v272 = vshll.u32 %v203, 16
      %v274 = vrot.slane %v272, 5
      %v275 = vsel %vm251, %v270, %v274
      %v277 = vshrl.u32 %v204, 16
      %v279 = vrot.slane %v277, 4
      %v280 = vshll.u32 %v204, 16
      %v282 = vrot.slane %v280, 5
      %v283 = vor.u32 %v279, %v282
      %v284 = vrot.slane %v283, 4
      %v286 = vshll.u32 %v205, 16
      %v288 = vrot.slane %v286, 5
      %v289 = vsel %vm251, %v284, %v288
      %v290 = vshrl.u32 %v205, 16
      %v292 = vrot.slane %v290, 4
      %v293 = vor.u32 %v292, %v288
      %v294 = vrot.slane %v293, 4
      %v296 = vshll.u32 %v206, 16
      %v298 = vrot.slane %v296, 5
      %v299 = vsel %vm251, %v294, %v298
      %v301 = vshrl.u32 %v207, 16
      %v303 = vrot.slane %v301, 4
      %v304 = vshll.u32 %v207, 16
      %v306 = vrot.slane %v304, 5
      %v307 = vor.u32 %v303, %v306
      %v308 = vrot.slane %v307, 4
      %v310 = vshll.u32 %v208, 16
      %v312 = vrot.slane %v310, 5
      %v313 = vsel %vm251, %v308, %v312
      %v314 = vshrl.u32 %v208, 16
      %v316 = vrot.slane %v314, 4
      %v317 = vor.u32 %v316, %v312
      %v318 = vrot.slane %v317, 4
      %v320 = vshll.u32 %v209, 16
      %v322 = vrot.slane %v320, 5
      %v323 = vsel %vm251, %v318, %v322
      %v325 = vshrl.u32 %v210, 16
      %v327 = vrot.slane %v325, 4
      %v328 = vshll.u32 %v210, 16
      %v330 = vrot.slane %v328, 5
      %v331 = vor.u32 %v327, %v330
      %v332 = vrot.slane %v331, 4
      %v334 = vshll.u32 %v211, 16
      %v336 = vrot.slane %v334, 5
      %v337 = vsel %vm251, %v332, %v336
      %v338 = vshrl.u32 %v211, 16
      %v340 = vrot.slane %v338, 4
      %v341 = vor.u32 %v340, %v336
      %v342 = vrot.slane %v341, 4
      %v344 = vshll.u32 %v212, 16
      %v346 = vrot.slane %v344, 5
      %v347 = vsel %vm251, %v342, %v346
      %v349 = vshrl.u32 %v213, 16
      %v351 = vrot.slane %v349, 4
      %v352 = vshll.u32 %v213, 16
      %v354 = vrot.slane %v352, 5
      %v355 = vor.u32 %v351, %v354
      %v356 = vrot.slane %v355, 4
      %v358 = vshll.u32 %v214, 16
      %v360 = vrot.slane %v358, 5
      %v361 = vsel %vm251, %v356, %v360
      %v362 = vshrl.u32 %v214, 16
      %v364 = vrot.slane %v362, 4
      %v365 = vor.u32 %v364, %v360
      %v366 = vrot.slane %v365, 4
      %v368 = vshll.u32 %v215, 16
      %v370 = vrot.slane %v368, 5
      %v371 = vsel %vm251, %v366, %v370
      %v373 = vshrl.u32 %v216, 16
      %v375 = vrot.slane %v373, 4
      %v376 = vshll.u32 %v216, 16
      %v378 = vrot.slane %v376, 5
      %v379 = vor.u32 %v375, %v378
      %v380 = vrot.slane %v379, 4
      %v382 = vshll.u32 %v217, 16
      %v384 = vrot.slane %v382, 5
      %v385 = vsel %vm251, %v380, %v384
      %v386 = vshrl.u32 %v217, 16
      %v388 = vrot.slane %v386, 4
      %v389 = vor.u32 %v388, %v384
      %v390 = vrot.slane %v389, 4
      %v392 = vshll.u32 %v218, 16
      %v394 = vrot.slane %v392, 5
      %v395 = vsel %vm251, %v390, %v394
      %v397 = vshrl.u32 %v219, 16
      %v399 = vrot.slane %v397, 4
      %v400 = vshll.u32 %v219, 16
      %v402 = vrot.slane %v400, 5
      %v403 = vor.u32 %v399, %v402
      %v404 = vrot.slane %v403, 4
      %v406 = vshll.u32 %v220, 16
      %v408 = vrot.slane %v406, 5
      %v409 = vsel %vm251, %v404, %v408
      %v410 = vshrl.u32 %v220, 16
      %v412 = vrot.slane %v410, 4
      %v413 = vor.u32 %v412, %v408
      %v414 = vrot.slane %v413, 4
      %v416 = vshll.u32 %v221, 16
      %v418 = vrot.slane %v416, 5
      %v419 = vsel %vm251, %v414, %v418
      %v421 = vshrl.u32 %v222, 16
      %v423 = vrot.slane %v421, 4
      %v424 = vshll.u32 %v222, 16
      %v426 = vrot.slane %v424, 5
      %v427 = vor.u32 %v423, %v426
      %v428 = vrot.slane %v427, 4
      %v430 = vshll.u32 %v223, 16
      %v432 = vrot.slane %v430, 5
      %v433 = vsel %vm251, %v428, %v432
      %v434 = vshrl.u32 %v223, 16
      %v436 = vrot.slane %v434, 4
      %v437 = vor.u32 %v436, %v432
      %v438 = vrot.slane %v437, 4
      %v440 = vshll.u32 %v224, 16
      %v442 = vrot.slane %v440, 5
      %v443 = vsel %vm251, %v438, %v442
      %v445 = vshrl.u32 %v225, 16
      %v447 = vrot.slane %v445, 4
      %v448 = vshll.u32 %v225, 16
      %v450 = vrot.slane %v448, 5
      %v451 = vor.u32 %v447, %v450
      %v452 = vrot.slane %v451, 4
      %v454 = vshll.u32 %v226, 16
      %v456 = vrot.slane %v454, 5
      %v457 = vsel %vm251, %v452, %v456
      %v458 = vshrl.u32 %v226, 16
      %v460 = vrot.slane %v458, 4
      %v461 = vor.u32 %v460, %v456
      %v462 = vrot.slane %v461, 4
      %v464 = vshll.u32 %v227, 16
      %v466 = vrot.slane %v464, 5
      %v467 = vsel %vm251, %v462, %v466
      %v469 = vshrl.u32 %v228, 16
      %v471 = vrot.slane %v469, 4
      %v472 = vshll.u32 %v228, 16
      %v474 = vrot.slane %v472, 5
      %v475 = vor.u32 %v471, %v474
      %v476 = vrot.slane %v475, 4
      %v478 = vshll.u32 %v229, 16
      %v480 = vrot.slane %v478, 5
      %v481 = vsel %vm251, %v476, %v480
      %v482 = vshrl.u32 %v229, 16
      %v484 = vrot.slane %v482, 4
      %v485 = vor.u32 %v484, %v480
      %v486 = vrot.slane %v485, 4
      %v488 = vshll.u32 %v230, 16
      %v490 = vrot.slane %v488, 5
      %v491 = vsel %vm251, %v486, %v490
      %v493 = vshrl.u32 %v231, 16
      %v495 = vrot.slane %v493, 4
      %v496 = vshll.u32 %v231, 16
      %v498 = vrot.slane %v496, 5
      %v499 = vor.u32 %v495, %v498
      %v500 = vrot.slane %v499, 4
      %v502 = vshll.u32 %v232, 16
      %v504 = vrot.slane %v502, 5
      %v505 = vsel %vm251, %v500, %v504
      %v506 = vshrl.u32 %v232, 16
      %v508 = vrot.slane %v506, 4
      %v509 = vor.u32 %v508, %v504
      %v510 = vrot.slane %v509, 4
      %v512 = vshll.u32 %v233, 16
      %v514 = vrot.slane %v512, 5
      %v515 = vsel %vm251, %v510, %v514
      %v517 = vshrl.u32 %v234, 16
      %v519 = vrot.slane %v517, 4
      %v520 = vshll.u32 %v234, 16
      %v522 = vrot.slane %v520, 5
      %v523 = vor.u32 %v519, %v522
      %v524 = vrot.slane %v523, 4
      %v526 = vshll.u32 %v235, 16
      %v528 = vrot.slane %v526, 5
      %v529 = vsel %vm251, %v524, %v528
      %v530 = vshrl.u32 %v235, 16
      %v532 = vrot.slane %v530, 4
      %v533 = vor.u32 %v532, %v528
      %v534 = vrot.slane %v533, 4
      %v536 = vshll.u32 %v236, 16
      %v538 = vrot.slane %v536, 5
      %v539 = vsel %vm251, %v534, %v538
      %v541 = vshrl.u32 %v237, 16
      %v543 = vrot.slane %v541, 4
      %v544 = vshll.u32 %v237, 16
      %v546 = vrot.slane %v544, 5
      %v547 = vor.u32 %v543, %v546
      %v548 = vrot.slane %v547, 4
      %v550 = vshll.u32 %v238, 16
      %v552 = vrot.slane %v550, 5
      %v553 = vsel %vm251, %v548, %v552
      %v554 = vshrl.u32 %v238, 16
      %v556 = vrot.slane %v554, 4
      %v557 = vor.u32 %v556, %v552
      %v558 = vrot.slane %v557, 4
      %v560 = vshll.u32 %v239, 16
      %v562 = vrot.slane %v560, 5
      %v563 = vsel %vm251, %v558, %v562
      %v565 = vshrl.u32 %v240, 16
      %v567 = vrot.slane %v565, 4
      %v568 = vshll.u32 %v240, 16
      %v570 = vrot.slane %v568, 5
      %v571 = vor.u32 %v567, %v570
      %v572 = vrot.slane %v571, 4
      %v574 = vshll.u32 %v241, 16
      %v576 = vrot.slane %v574, 5
      %v577 = vsel %vm251, %v572, %v576
      %v578 = vshrl.u32 %v241, 16
      %v580 = vrot.slane %v578, 4
      %v581 = vor.u32 %v580, %v576
      %v582 = vrot.slane %v581, 4
      %v584 = vshll.u32 %v242, 16
      %v586 = vrot.slane %v584, 5
      %v587 = vsel %vm251, %v582, %v586
      %v589 = vshrl.u32 %v243, 16
      %v591 = vrot.slane %v589, 4
      %v592 = vshll.u32 %v243, 16
      %v594 = vrot.slane %v592, 5
      %v595 = vor.u32 %v591, %v594
      %v596 = vrot.slane %v595, 4
      %v598 = vshll.u32 %v244, 16
      %v600 = vrot.slane %v598, 5
      %v601 = vsel %vm251, %v596, %v600
      %v602 = vshrl.u32 %v244, 16
      %v604 = vrot.slane %v602, 4
      %v605 = vor.u32 %v604, %v600
      %v606 = vrot.slane %v605, 4
      %v608 = vshll.u32 %v245, 16
      %v610 = vrot.slane %v608, 5
      %v611 = vsel %vm251, %v606, %v610
      %v613 = vshrl.u32 %v246, 16
      %v615 = vrot.slane %v613, 4
      %v616 = vshll.u32 %v246, 16
      %v618 = vrot.slane %v616, 5
      %v619 = vor.u32 %v615, %v618
      %v620 = vrot.slane %v619, 4
      %v622 = vshll.u32 %v247, 16
      %v624 = vrot.slane %v622, 5
      %v625 = vsel %vm251, %v620, %v624
      %v626 = vshrl.u32 %v247, 16
      %v628 = vrot.slane %v626, 4
      %v629 = vor.u32 %v628, %v624
      %v630 = vrot.slane %v629, 4
      %v632 = vshll.u32 %v248, 16
      %v634 = vrot.slane %v632, 5
      %v635 = vsel %vm251, %v630, %v634
      %vm684 = vcmask 1042432
      %vm685 = vcmask 1046532
      %vm686 = vmor %vm684, %vm685
      %v687 = vrot.slane %v201, 5
      %v688 = vrot.slane %v687, 4
      %v689 = vrot.slane %v202, 5
      %v690 = vsel %vm686, %v688, %v689
      %v691 = vrot.slane %v689, 4
      %v692 = vrot.slane %v203, 5
      %v693 = vsel %vm686, %v691, %v692
      %v694 = vrot.slane %v204, 5
      %v695 = vrot.slane %v694, 4
      %v696 = vrot.slane %v205, 5
      %v697 = vsel %vm686, %v695, %v696
      %v698 = vrot.slane %v696, 4
      %v699 = vrot.slane %v206, 5
      %v700 = vsel %vm686, %v698, %v699
      %v701 = vrot.slane %v207, 5
      %v702 = vrot.slane %v701, 4
      %v703 = vrot.slane %v208, 5
      %v704 = vsel %vm686, %v702, %v703
      %v705 = vrot.slane %v703, 4
      %v706 = vrot.slane %v209, 5
      %v707 = vsel %vm686, %v705, %v706
      %v708 = vrot.slane %v210, 5
      %v709 = vrot.slane %v708, 4
      %v710 = vrot.slane %v211, 5
      %v711 = vsel %vm686, %v709, %v710
      %v712 = vrot.slane %v710, 4
      %v713 = vrot.slane %v212, 5
      %v714 = vsel %vm686, %v712, %v713
      %v715 = vrot.slane %v213, 5
      %v716 = vrot.slane %v715, 4
      %v717 = vrot.slane %v214, 5
      %v718 = vsel %vm686, %v716, %v717
      %v719 = vrot.slane %v717, 4
      %v720 = vrot.slane %v215, 5
      %v721 = vsel %vm686, %v719, %v720
      %v722 = vrot.slane %v216, 5
      %v723 = vrot.slane %v722, 4
      %v724 = vrot.slane %v217, 5
      %v725 = vsel %vm686, %v723, %v724
      %v726 = vrot.slane %v724, 4
      %v727 = vrot.slane %v218, 5
      %v728 = vsel %vm686, %v726, %v727
      %v729 = vrot.slane %v219, 5
      %v730 = vrot.slane %v729, 4
      %v731 = vrot.slane %v220, 5
      %v732 = vsel %vm686, %v730, %v731
      %v733 = vrot.slane %v731, 4
      %v734 = vrot.slane %v221, 5
      %v735 = vsel %vm686, %v733, %v734
      %v736 = vrot.slane %v222, 5
      %v737 = vrot.slane %v736, 4
      %v738 = vrot.slane %v223, 5
      %v739 = vsel %vm686, %v737, %v738
      %v740 = vrot.slane %v738, 4
      %v741 = vrot.slane %v224, 5
      %v742 = vsel %vm686, %v740, %v741
      %v743 = vrot.slane %v225, 5
      %v744 = vrot.slane %v743, 4
      %v745 = vrot.slane %v226, 5
      %v746 = vsel %vm686, %v744, %v745
      %v747 = vrot.slane %v745, 4
      %v748 = vrot.slane %v227, 5
      %v749 = vsel %vm686, %v747, %v748
      %v750 = vrot.slane %v228, 5
      %v751 = vrot.slane %v750, 4
      %v752 = vrot.slane %v229, 5
      %v753 = vsel %vm686, %v751, %v752
      %v754 = vrot.slane %v752, 4
      %v755 = vrot.slane %v230, 5
      %v756 = vsel %vm686, %v754, %v755
      %v757 = vrot.slane %v231, 5
      %v758 = vrot.slane %v757, 4
      %v759 = vrot.slane %v232, 5
      %v760 = vsel %vm686, %v758, %v759
      %v761 = vrot.slane %v759, 4
      %v762 = vrot.slane %v233, 5
      %v763 = vsel %vm686, %v761, %v762
      %v764 = vrot.slane %v234, 5
      %v765 = vrot.slane %v764, 4
      %v766 = vrot.slane %v235, 5
      %v767 = vsel %vm686, %v765, %v766
      %v768 = vrot.slane %v766, 4
      %v769 = vrot.slane %v236, 5
      %v770 = vsel %vm686, %v768, %v769
      %v771 = vrot.slane %v237, 5
      %v772 = vrot.slane %v771, 4
      %v773 = vrot.slane %v238, 5
      %v774 = vsel %vm686, %v772, %v773
      %v775 = vrot.slane %v773, 4
      %v776 = vrot.slane %v239, 5
      %v777 = vsel %vm686, %v775, %v776
      %v778 = vrot.slane %v240, 5
      %v779 = vrot.slane %v778, 4
      %v780 = vrot.slane %v241, 5
      %v781 = vsel %vm686, %v779, %v780
      %v782 = vrot.slane %v780, 4
      %v783 = vrot.slane %v242, 5
      %v784 = vsel %vm686, %v782, %v783
      %v785 = vrot.slane %v243, 5
      %v786 = vrot.slane %v785, 4
      %v787 = vrot.slane %v244, 5
      %v788 = vsel %vm686, %v786, %v787
      %v789 = vrot.slane %v787, 4
      %v790 = vrot.slane %v245, 5
      %v791 = vsel %vm686, %v789, %v790
      %v792 = vrot.slane %v246, 5
      %v793 = vrot.slane %v792, 4
      %v794 = vrot.slane %v247, 5
      %v795 = vsel %vm686, %v793, %v794
      %v796 = vrot.slane %v794, 4
      %v797 = vrot.slane %v248, 5
      %v798 = vsel %vm686, %v796, %v797
      %s799 = sadd.s32 %s197, 1
      %s800 = smul.u32 %s799, 3
      %s801 = smul.addr %s800, 4
      %s802 = scalar_lea.vmem %s184, %s801
      %v803 = vld [vmem:[%s802] sm:$0xf]
      %v804 = vld [vmem:[%s802 + $0x4] sm:$0xf]
      %v805 = vld [vmem:[%s802 + $0x8] sm:$0x1]
      %v806 = vld [vmem:[%s802 + $0xc] sm:$0xf]
      %v807 = vld [vmem:[%s802 + $0x10] sm:$0xf]
      %v808 = vld [vmem:[%s802 + $0x14] sm:$0x1]
      %v809 = vld [vmem:[%s802 + $0x18] sm:$0xf]
      %v810 = vld [vmem:[%s802 + $0x1c] sm:$0xf]
      %v811 = vld [vmem:[%s802 + $0x20] sm:$0x1]
      %v812 = vld [vmem:[%s802 + $0x24] sm:$0xf]
      %v813 = vld [vmem:[%s802 + $0x28] sm:$0xf]
      %v814 = vld [vmem:[%s802 + $0x2c] sm:$0x1]
      %v815 = vld [vmem:[%s802 + $0x30] sm:$0xf]
      %v816 = vld [vmem:[%s802 + $0x34] sm:$0xf]
      %v817 = vld [vmem:[%s802 + $0x38] sm:$0x1]
      %v818 = vld [vmem:[%s802 + $0x3c] sm:$0xf]
      %v819 = vld [vmem:[%s802 + $0x40] sm:$0xf]
      %v820 = vld [vmem:[%s802 + $0x44] sm:$0x1]
      %v821 = vld [vmem:[%s802 + $0x48] sm:$0xf]
      %v822 = vld [vmem:[%s802 + $0x4c] sm:$0xf]
      %v823 = vld [vmem:[%s802 + $0x50] sm:$0x1]
      %v824 = vld [vmem:[%s802 + $0x54] sm:$0xf]
      %v825 = vld [vmem:[%s802 + $0x58] sm:$0xf]
      %v826 = vld [vmem:[%s802 + $0x5c] sm:$0x1]
      %v827 = vld [vmem:[%s802 + $0x60] sm:$0xf]
      %v828 = vld [vmem:[%s802 + $0x64] sm:$0xf]
      %v829 = vld [vmem:[%s802 + $0x68] sm:$0x1]
      %v830 = vld [vmem:[%s802 + $0x6c] sm:$0xf]
      %v831 = vld [vmem:[%s802 + $0x70] sm:$0xf]
      %v832 = vld [vmem:[%s802 + $0x74] sm:$0x1]
      %v833 = vld [vmem:[%s802 + $0x78] sm:$0xf]
      %v834 = vld [vmem:[%s802 + $0x7c] sm:$0xf]
      %v835 = vld [vmem:[%s802 + $0x80] sm:$0x1]
      %v836 = vld [vmem:[%s802 + $0x84] sm:$0xf]
      %v837 = vld [vmem:[%s802 + $0x88] sm:$0xf]
      %v838 = vld [vmem:[%s802 + $0x8c] sm:$0x1]
      %v839 = vld [vmem:[%s802 + $0x90] sm:$0xf]
      %v840 = vld [vmem:[%s802 + $0x94] sm:$0xf]
      %v841 = vld [vmem:[%s802 + $0x98] sm:$0x1]
      %v842 = vld [vmem:[%s802 + $0x9c] sm:$0xf]
      %v843 = vld [vmem:[%s802 + $0xa0] sm:$0xf]
      %v844 = vld [vmem:[%s802 + $0xa4] sm:$0x1]
      %v845 = vld [vmem:[%s802 + $0xa8] sm:$0xf]
      %v846 = vld [vmem:[%s802 + $0xac] sm:$0xf]
      %v847 = vld [vmem:[%s802 + $0xb0] sm:$0x1]
      %v848 = vld [vmem:[%s802 + $0xb4] sm:$0xf]
      %v849 = vld [vmem:[%s802 + $0xb8] sm:$0xf]
      %v850 = vld [vmem:[%s802 + $0xbc] sm:$0x1]
      %v852 = vshrl.u32 %v803, 16
      %v854 = vrot.slane %v852, 4
      %v855 = vshll.u32 %v803, 16
      %v857 = vrot.slane %v855, 5
      %v858 = vor.u32 %v854, %v857
      %v859 = vrot.slane %v858, 4
      %v861 = vshll.u32 %v804, 16
      %v863 = vrot.slane %v861, 5
      %v864 = vsel %vm251, %v859, %v863
      %v865 = vshrl.u32 %v804, 16
      %v867 = vrot.slane %v865, 4
      %v868 = vor.u32 %v867, %v863
      %v869 = vrot.slane %v868, 4
      %v871 = vshll.u32 %v805, 16
      %v873 = vrot.slane %v871, 5
      %v874 = vsel %vm251, %v869, %v873
      %v876 = vshrl.u32 %v806, 16
      %v878 = vrot.slane %v876, 4
      %v879 = vshll.u32 %v806, 16
      %v881 = vrot.slane %v879, 5
      %v882 = vor.u32 %v878, %v881
      %v883 = vrot.slane %v882, 4
      %v885 = vshll.u32 %v807, 16
      %v887 = vrot.slane %v885, 5
      %v888 = vsel %vm251, %v883, %v887
      %v889 = vshrl.u32 %v807, 16
      %v891 = vrot.slane %v889, 4
      %v892 = vor.u32 %v891, %v887
      %v893 = vrot.slane %v892, 4
      %v895 = vshll.u32 %v808, 16
      %v897 = vrot.slane %v895, 5
      %v898 = vsel %vm251, %v893, %v897
      %v900 = vshrl.u32 %v809, 16
      %v902 = vrot.slane %v900, 4
      %v903 = vshll.u32 %v809, 16
      %v905 = vrot.slane %v903, 5
      %v906 = vor.u32 %v902, %v905
      %v907 = vrot.slane %v906, 4
      %v909 = vshll.u32 %v810, 16
      %v911 = vrot.slane %v909, 5
      %v912 = vsel %vm251, %v907, %v911
      %v913 = vshrl.u32 %v810, 16
      %v915 = vrot.slane %v913, 4
      %v916 = vor.u32 %v915, %v911
      %v917 = vrot.slane %v916, 4
      %v919 = vshll.u32 %v811, 16
      %v921 = vrot.slane %v919, 5
      %v922 = vsel %vm251, %v917, %v921
      %v924 = vshrl.u32 %v812, 16
      %v926 = vrot.slane %v924, 4
      %v927 = vshll.u32 %v812, 16
      %v929 = vrot.slane %v927, 5
      %v930 = vor.u32 %v926, %v929
      %v931 = vrot.slane %v930, 4
      %v933 = vshll.u32 %v813, 16
      %v935 = vrot.slane %v933, 5
      %v936 = vsel %vm251, %v931, %v935
      %v937 = vshrl.u32 %v813, 16
      %v939 = vrot.slane %v937, 4
      %v940 = vor.u32 %v939, %v935
      %v941 = vrot.slane %v940, 4
      %v943 = vshll.u32 %v814, 16
      %v945 = vrot.slane %v943, 5
      %v946 = vsel %vm251, %v941, %v945
      %v948 = vshrl.u32 %v815, 16
      %v950 = vrot.slane %v948, 4
      %v951 = vshll.u32 %v815, 16
      %v953 = vrot.slane %v951, 5
      %v954 = vor.u32 %v950, %v953
      %v955 = vrot.slane %v954, 4
      %v957 = vshll.u32 %v816, 16
      %v959 = vrot.slane %v957, 5
      %v960 = vsel %vm251, %v955, %v959
      %v961 = vshrl.u32 %v816, 16
      %v963 = vrot.slane %v961, 4
      %v964 = vor.u32 %v963, %v959
      %v965 = vrot.slane %v964, 4
      %v967 = vshll.u32 %v817, 16
      %v969 = vrot.slane %v967, 5
      %v970 = vsel %vm251, %v965, %v969
      %v972 = vshrl.u32 %v818, 16
      %v974 = vrot.slane %v972, 4
      %v975 = vshll.u32 %v818, 16
      %v977 = vrot.slane %v975, 5
      %v978 = vor.u32 %v974, %v977
      %v979 = vrot.slane %v978, 4
      %v981 = vshll.u32 %v819, 16
      %v983 = vrot.slane %v981, 5
      %v984 = vsel %vm251, %v979, %v983
      %v985 = vshrl.u32 %v819, 16
      %v987 = vrot.slane %v985, 4
      %v988 = vor.u32 %v987, %v983
      %v989 = vrot.slane %v988, 4
      %v991 = vshll.u32 %v820, 16
      %v993 = vrot.slane %v991, 5
      %v994 = vsel %vm251, %v989, %v993
      %v996 = vshrl.u32 %v821, 16
      %v998 = vrot.slane %v996, 4
      %v999 = vshll.u32 %v821, 16
      %v1001 = vrot.slane %v999, 5
      %v1002 = vor.u32 %v998, %v1001
      %v1003 = vrot.slane %v1002, 4
      %v1005 = vshll.u32 %v822, 16
      %v1007 = vrot.slane %v1005, 5
      %v1008 = vsel %vm251, %v1003, %v1007
      %v1009 = vshrl.u32 %v822, 16
      %v1011 = vrot.slane %v1009, 4
      %v1012 = vor.u32 %v1011, %v1007
      %v1013 = vrot.slane %v1012, 4
      %v1015 = vshll.u32 %v823, 16
      %v1017 = vrot.slane %v1015, 5
      %v1018 = vsel %vm251, %v1013, %v1017
      %v1020 = vshrl.u32 %v824, 16
      %v1022 = vrot.slane %v1020, 4
      %v1023 = vshll.u32 %v824, 16
      %v1025 = vrot.slane %v1023, 5
      %v1026 = vor.u32 %v1022, %v1025
      %v1027 = vrot.slane %v1026, 4
      %v1029 = vshll.u32 %v825, 16
      %v1031 = vrot.slane %v1029, 5
      %v1032 = vsel %vm251, %v1027, %v1031
      %v1033 = vshrl.u32 %v825, 16
      %v1035 = vrot.slane %v1033, 4
      %v1036 = vor.u32 %v1035, %v1031
      %v1037 = vrot.slane %v1036, 4
      %v1039 = vshll.u32 %v826, 16
      %v1041 = vrot.slane %v1039, 5
      %v1042 = vsel %vm251, %v1037, %v1041
      %v1044 = vshrl.u32 %v827, 16
      %v1046 = vrot.slane %v1044, 4
      %v1047 = vshll.u32 %v827, 16
      %v1049 = vrot.slane %v1047, 5
      %v1050 = vor.u32 %v1046, %v1049
      %v1051 = vrot.slane %v1050, 4
      %v1053 = vshll.u32 %v828, 16
      %v1055 = vrot.slane %v1053, 5
      %v1056 = vsel %vm251, %v1051, %v1055
      %v1057 = vshrl.u32 %v828, 16
      %v1059 = vrot.slane %v1057, 4
      %v1060 = vor.u32 %v1059, %v1055
      %v1061 = vrot.slane %v1060, 4
      %v1063 = vshll.u32 %v829, 16
      %v1065 = vrot.slane %v1063, 5
      %v1066 = vsel %vm251, %v1061, %v1065
      %v1068 = vshrl.u32 %v830, 16
      %v1070 = vrot.slane %v1068, 4
      %v1071 = vshll.u32 %v830, 16
      %v1073 = vrot.slane %v1071, 5
      %v1074 = vor.u32 %v1070, %v1073
      %v1075 = vrot.slane %v1074, 4
      %v1077 = vshll.u32 %v831, 16
      %v1079 = vrot.slane %v1077, 5
      %v1080 = vsel %vm251, %v1075, %v1079
      %v1081 = vshrl.u32 %v831, 16
      %v1083 = vrot.slane %v1081, 4
      %v1084 = vor.u32 %v1083, %v1079
      %v1085 = vrot.slane %v1084, 4
      %v1087 = vshll.u32 %v832, 16
      %v1089 = vrot.slane %v1087, 5
      %v1090 = vsel %vm251, %v1085, %v1089
      %v1092 = vshrl.u32 %v833, 16
      %v1094 = vrot.slane %v1092, 4
      %v1095 = vshll.u32 %v833, 16
      %v1097 = vrot.slane %v1095, 5
      %v1098 = vor.u32 %v1094, %v1097
      %v1099 = vrot.slane %v1098, 4
      %v1101 = vshll.u32 %v834, 16
      %v1103 = vrot.slane %v1101, 5
      %v1104 = vsel %vm251, %v1099, %v1103
      %v1105 = vshrl.u32 %v834, 16
      %v1107 = vrot.slane %v1105, 4
      %v1108 = vor.u32 %v1107, %v1103
      %v1109 = vrot.slane %v1108, 4
      %v1111 = vshll.u32 %v835, 16
      %v1113 = vrot.slane %v1111, 5
      %v1114 = vsel %vm251, %v1109, %v1113
      %v1116 = vshrl.u32 %v836, 16
      %v1118 = vrot.slane %v1116, 4
      %v1119 = vshll.u32 %v836, 16
      %v1121 = vrot.slane %v1119, 5
      %v1122 = vor.u32 %v1118, %v1121
      %v1123 = vrot.slane %v1122, 4
      %v1125 = vshll.u32 %v837, 16
      %v1127 = vrot.slane %v1125, 5
      %v1128 = vsel %vm251, %v1123, %v1127
      %v1129 = vshrl.u32 %v837, 16
      %v1131 = vrot.slane %v1129, 4
      %v1132 = vor.u32 %v1131, %v1127
      %v1133 = vrot.slane %v1132, 4
      %v1135 = vshll.u32 %v838, 16
      %v1137 = vrot.slane %v1135, 5
      %v1138 = vsel %vm251, %v1133, %v1137
      %v1140 = vshrl.u32 %v839, 16
      %v1142 = vrot.slane %v1140, 4
      %v1143 = vshll.u32 %v839, 16
      %v1145 = vrot.slane %v1143, 5
      %v1146 = vor.u32 %v1142, %v1145
      %v1147 = vrot.slane %v1146, 4
      %v1149 = vshll.u32 %v840, 16
      %v1151 = vrot.slane %v1149, 5
      %v1152 = vsel %vm251, %v1147, %v1151
      %v1153 = vshrl.u32 %v840, 16
      %v1155 = vrot.slane %v1153, 4
      %v1156 = vor.u32 %v1155, %v1151
      %v1157 = vrot.slane %v1156, 4
      %v1159 = vshll.u32 %v841, 16
      %v1161 = vrot.slane %v1159, 5
      %v1162 = vsel %vm251, %v1157, %v1161
      %v1164 = vshrl.u32 %v842, 16
      %v1166 = vrot.slane %v1164, 4
      %v1167 = vshll.u32 %v842, 16
      %v1169 = vrot.slane %v1167, 5
      %v1170 = vor.u32 %v1166, %v1169
      %v1171 = vrot.slane %v1170, 4
      %v1173 = vshll.u32 %v843, 16
      %v1175 = vrot.slane %v1173, 5
      %v1176 = vsel %vm251, %v1171, %v1175
      %v1177 = vshrl.u32 %v843, 16
      %v1179 = vrot.slane %v1177, 4
      %v1180 = vor.u32 %v1179, %v1175
      %v1181 = vrot.slane %v1180, 4
      %v1183 = vshll.u32 %v844, 16
      %v1185 = vrot.slane %v1183, 5
      %v1186 = vsel %vm251, %v1181, %v1185
      %v1188 = vshrl.u32 %v845, 16
      %v1190 = vrot.slane %v1188, 4
      %v1191 = vshll.u32 %v845, 16
      %v1193 = vrot.slane %v1191, 5
      %v1194 = vor.u32 %v1190, %v1193
      %v1195 = vrot.slane %v1194, 4
      %v1197 = vshll.u32 %v846, 16
      %v1199 = vrot.slane %v1197, 5
      %v1200 = vsel %vm251, %v1195, %v1199
      %v1201 = vshrl.u32 %v846, 16
      %v1203 = vrot.slane %v1201, 4
      %v1204 = vor.u32 %v1203, %v1199
      %v1205 = vrot.slane %v1204, 4
      %v1207 = vshll.u32 %v847, 16
      %v1209 = vrot.slane %v1207, 5
      %v1210 = vsel %vm251, %v1205, %v1209
      %v1212 = vshrl.u32 %v848, 16
      %v1214 = vrot.slane %v1212, 4
      %v1215 = vshll.u32 %v848, 16
      %v1217 = vrot.slane %v1215, 5
      %v1218 = vor.u32 %v1214, %v1217
      %v1219 = vrot.slane %v1218, 4
      %v1221 = vshll.u32 %v849, 16
      %v1223 = vrot.slane %v1221, 5
      %v1224 = vsel %vm251, %v1219, %v1223
      %v1225 = vshrl.u32 %v849, 16
      %v1227 = vrot.slane %v1225, 4
      %v1228 = vor.u32 %v1227, %v1223
      %v1229 = vrot.slane %v1228, 4
      %v1231 = vshll.u32 %v850, 16
      %v1233 = vrot.slane %v1231, 5
      %v1234 = vsel %vm251, %v1229, %v1233
      %v1283 = vrot.slane %v803, 5
      %v1284 = vrot.slane %v1283, 4
      %v1285 = vrot.slane %v804, 5
      %v1286 = vsel %vm686, %v1284, %v1285
      %v1287 = vrot.slane %v1285, 4
      %v1288 = vrot.slane %v805, 5
      %v1289 = vsel %vm686, %v1287, %v1288
      %v1290 = vrot.slane %v806, 5
      %v1291 = vrot.slane %v1290, 4
      %v1292 = vrot.slane %v807, 5
      %v1293 = vsel %vm686, %v1291, %v1292
      %v1294 = vrot.slane %v1292, 4
      %v1295 = vrot.slane %v808, 5
      %v1296 = vsel %vm686, %v1294, %v1295
      %v1297 = vrot.slane %v809, 5
      %v1298 = vrot.slane %v1297, 4
      %v1299 = vrot.slane %v810, 5
      %v1300 = vsel %vm686, %v1298, %v1299
      %v1301 = vrot.slane %v1299, 4
      %v1302 = vrot.slane %v811, 5
      %v1303 = vsel %vm686, %v1301, %v1302
      %v1304 = vrot.slane %v812, 5
      %v1305 = vrot.slane %v1304, 4
      %v1306 = vrot.slane %v813, 5
      %v1307 = vsel %vm686, %v1305, %v1306
      %v1308 = vrot.slane %v1306, 4
      %v1309 = vrot.slane %v814, 5
      %v1310 = vsel %vm686, %v1308, %v1309
      %v1311 = vrot.slane %v815, 5
      %v1312 = vrot.slane %v1311, 4
      %v1313 = vrot.slane %v816, 5
      %v1314 = vsel %vm686, %v1312, %v1313
      %v1315 = vrot.slane %v1313, 4
      %v1316 = vrot.slane %v817, 5
      %v1317 = vsel %vm686, %v1315, %v1316
      %v1318 = vrot.slane %v818, 5
      %v1319 = vrot.slane %v1318, 4
      %v1320 = vrot.slane %v819, 5
      %v1321 = vsel %vm686, %v1319, %v1320
      %v1322 = vrot.slane %v1320, 4
      %v1323 = vrot.slane %v820, 5
      %v1324 = vsel %vm686, %v1322, %v1323
      %v1325 = vrot.slane %v821, 5
      %v1326 = vrot.slane %v1325, 4
      %v1327 = vrot.slane %v822, 5
      %v1328 = vsel %vm686, %v1326, %v1327
      %v1329 = vrot.slane %v1327, 4
      %v1330 = vrot.slane %v823, 5
      %v1331 = vsel %vm686, %v1329, %v1330
      %v1332 = vrot.slane %v824, 5
      %v1333 = vrot.slane %v1332, 4
      %v1334 = vrot.slane %v825, 5
      %v1335 = vsel %vm686, %v1333, %v1334
      %v1336 = vrot.slane %v1334, 4
      %v1337 = vrot.slane %v826, 5
      %v1338 = vsel %vm686, %v1336, %v1337
      %v1339 = vrot.slane %v827, 5
      %v1340 = vrot.slane %v1339, 4
      %v1341 = vrot.slane %v828, 5
      %v1342 = vsel %vm686, %v1340, %v1341
      %v1343 = vrot.slane %v1341, 4
      %v1344 = vrot.slane %v829, 5
      %v1345 = vsel %vm686, %v1343, %v1344
      %v1346 = vrot.slane %v830, 5
      %v1347 = vrot.slane %v1346, 4
      %v1348 = vrot.slane %v831, 5
      %v1349 = vsel %vm686, %v1347, %v1348
      %v1350 = vrot.slane %v1348, 4
      %v1351 = vrot.slane %v832, 5
      %v1352 = vsel %vm686, %v1350, %v1351
      %v1353 = vrot.slane %v833, 5
      %v1354 = vrot.slane %v1353, 4
      %v1355 = vrot.slane %v834, 5
      %v1356 = vsel %vm686, %v1354, %v1355
      %v1357 = vrot.slane %v1355, 4
      %v1358 = vrot.slane %v835, 5
      %v1359 = vsel %vm686, %v1357, %v1358
      %v1360 = vrot.slane %v836, 5
      %v1361 = vrot.slane %v1360, 4
      %v1362 = vrot.slane %v837, 5
      %v1363 = vsel %vm686, %v1361, %v1362
      %v1364 = vrot.slane %v1362, 4
      %v1365 = vrot.slane %v838, 5
      %v1366 = vsel %vm686, %v1364, %v1365
      %v1367 = vrot.slane %v839, 5
      %v1368 = vrot.slane %v1367, 4
      %v1369 = vrot.slane %v840, 5
      %v1370 = vsel %vm686, %v1368, %v1369
      %v1371 = vrot.slane %v1369, 4
      %v1372 = vrot.slane %v841, 5
      %v1373 = vsel %vm686, %v1371, %v1372
      %v1374 = vrot.slane %v842, 5
      %v1375 = vrot.slane %v1374, 4
      %v1376 = vrot.slane %v843, 5
      %v1377 = vsel %vm686, %v1375, %v1376
      %v1378 = vrot.slane %v1376, 4
      %v1379 = vrot.slane %v844, 5
      %v1380 = vsel %vm686, %v1378, %v1379
      %v1381 = vrot.slane %v845, 5
      %v1382 = vrot.slane %v1381, 4
      %v1383 = vrot.slane %v846, 5
      %v1384 = vsel %vm686, %v1382, %v1383
      %v1385 = vrot.slane %v1383, 4
      %v1386 = vrot.slane %v847, 5
      %v1387 = vsel %vm686, %v1385, %v1386
      %v1388 = vrot.slane %v848, 5
      %v1389 = vrot.slane %v1388, 4
      %v1390 = vrot.slane %v849, 5
      %v1391 = vsel %vm686, %v1389, %v1390
      %v1392 = vrot.slane %v1390, 4
      %v1393 = vrot.slane %v850, 5
      %v1394 = vsel %vm686, %v1392, %v1393
      %s1395 = sadd.s32 %s197, 2
      %s1396 = smul.u32 %s1395, 3
      %s1397 = smul.addr %s1396, 4
      %s1398 = scalar_lea.vmem %s184, %s1397
      %v1399 = vld [vmem:[%s1398] sm:$0xf]
      %v1400 = vld [vmem:[%s1398 + $0x4] sm:$0xf]
      %v1401 = vld [vmem:[%s1398 + $0x8] sm:$0x1]
      %v1402 = vld [vmem:[%s1398 + $0xc] sm:$0xf]
      %v1403 = vld [vmem:[%s1398 + $0x10] sm:$0xf]
      %v1404 = vld [vmem:[%s1398 + $0x14] sm:$0x1]
      %v1405 = vld [vmem:[%s1398 + $0x18] sm:$0xf]
      %v1406 = vld [vmem:[%s1398 + $0x1c] sm:$0xf]
      %v1407 = vld [vmem:[%s1398 + $0x20] sm:$0x1]
      %v1408 = vld [vmem:[%s1398 + $0x24] sm:$0xf]
      %v1409 = vld [vmem:[%s1398 + $0x28] sm:$0xf]
      %v1410 = vld [vmem:[%s1398 + $0x2c] sm:$0x1]
      %v1411 = vld [vmem:[%s1398 + $0x30] sm:$0xf]
      %v1412 = vld [vmem:[%s1398 + $0x34] sm:$0xf]
      %v1413 = vld [vmem:[%s1398 + $0x38] sm:$0x1]
      %v1414 = vld [vmem:[%s1398 + $0x3c] sm:$0xf]
      %v1415 = vld [vmem:[%s1398 + $0x40] sm:$0xf]
      %v1416 = vld [vmem:[%s1398 + $0x44] sm:$0x1]
      %v1417 = vld [vmem:[%s1398 + $0x48] sm:$0xf]
      %v1418 = vld [vmem:[%s1398 + $0x4c] sm:$0xf]
      %v1419 = vld [vmem:[%s1398 + $0x50] sm:$0x1]
      %v1420 = vld [vmem:[%s1398 + $0x54] sm:$0xf]
      %v1421 = vld [vmem:[%s1398 + $0x58] sm:$0xf]
      %v1422 = vld [vmem:[%s1398 + $0x5c] sm:$0x1]
      %v1423 = vld [vmem:[%s1398 + $0x60] sm:$0xf]
      %v1424 = vld [vmem:[%s1398 + $0x64] sm:$0xf]
      %v1425 = vld [vmem:[%s1398 + $0x68] sm:$0x1]
      %v1426 = vld [vmem:[%s1398 + $0x6c] sm:$0xf]
      %v1427 = vld [vmem:[%s1398 + $0x70] sm:$0xf]
      %v1428 = vld [vmem:[%s1398 + $0x74] sm:$0x1]
      %v1429 = vld [vmem:[%s1398 + $0x78] sm:$0xf]
      %v1430 = vld [vmem:[%s1398 + $0x7c] sm:$0xf]
      %v1431 = vld [vmem:[%s1398 + $0x80] sm:$0x1]
      %v1432 = vld [vmem:[%s1398 + $0x84] sm:$0xf]
      %v1433 = vld [vmem:[%s1398 + $0x88] sm:$0xf]
      %v1434 = vld [vmem:[%s1398 + $0x8c] sm:$0x1]
      %v1435 = vld [vmem:[%s1398 + $0x90] sm:$0xf]
      %v1436 = vld [vmem:[%s1398 + $0x94] sm:$0xf]
      %v1437 = vld [vmem:[%s1398 + $0x98] sm:$0x1]
      %v1438 = vld [vmem:[%s1398 + $0x9c] sm:$0xf]
      %v1439 = vld [vmem:[%s1398 + $0xa0] sm:$0xf]
      %v1440 = vld [vmem:[%s1398 + $0xa4] sm:$0x1]
      %v1441 = vld [vmem:[%s1398 + $0xa8] sm:$0xf]
      %v1442 = vld [vmem:[%s1398 + $0xac] sm:$0xf]
      %v1443 = vld [vmem:[%s1398 + $0xb0] sm:$0x1]
      %v1444 = vld [vmem:[%s1398 + $0xb4] sm:$0xf]
      %v1445 = vld [vmem:[%s1398 + $0xb8] sm:$0xf]
      %v1446 = vld [vmem:[%s1398 + $0xbc] sm:$0x1]
      %v1448 = vshrl.u32 %v1399, 16
      %v1450 = vrot.slane %v1448, 4
      %v1451 = vshll.u32 %v1399, 16
      %v1453 = vrot.slane %v1451, 5
      %v1454 = vor.u32 %v1450, %v1453
      %v1455 = vrot.slane %v1454, 4
      %v1457 = vshll.u32 %v1400, 16
      %v1459 = vrot.slane %v1457, 5
      %v1460 = vsel %vm251, %v1455, %v1459
      %v1461 = vshrl.u32 %v1400, 16
      %v1463 = vrot.slane %v1461, 4
      %v1464 = vor.u32 %v1463, %v1459
      %v1465 = vrot.slane %v1464, 4
      %v1467 = vshll.u32 %v1401, 16
      %v1469 = vrot.slane %v1467, 5
      %v1470 = vsel %vm251, %v1465, %v1469
      %v1472 = vshrl.u32 %v1402, 16
      %v1474 = vrot.slane %v1472, 4
      %v1475 = vshll.u32 %v1402, 16
      %v1477 = vrot.slane %v1475, 5
      %v1478 = vor.u32 %v1474, %v1477
      %v1479 = vrot.slane %v1478, 4
      %v1481 = vshll.u32 %v1403, 16
      %v1483 = vrot.slane %v1481, 5
      %v1484 = vsel %vm251, %v1479, %v1483
      %v1485 = vshrl.u32 %v1403, 16
      %v1487 = vrot.slane %v1485, 4
      %v1488 = vor.u32 %v1487, %v1483
      %v1489 = vrot.slane %v1488, 4
      %v1491 = vshll.u32 %v1404, 16
      %v1493 = vrot.slane %v1491, 5
      %v1494 = vsel %vm251, %v1489, %v1493
      %v1496 = vshrl.u32 %v1405, 16
      %v1498 = vrot.slane %v1496, 4
      %v1499 = vshll.u32 %v1405, 16
      %v1501 = vrot.slane %v1499, 5
      %v1502 = vor.u32 %v1498, %v1501
      %v1503 = vrot.slane %v1502, 4
      %v1505 = vshll.u32 %v1406, 16
      %v1507 = vrot.slane %v1505, 5
      %v1508 = vsel %vm251, %v1503, %v1507
      %v1509 = vshrl.u32 %v1406, 16
      %v1511 = vrot.slane %v1509, 4
      %v1512 = vor.u32 %v1511, %v1507
      %v1513 = vrot.slane %v1512, 4
      %v1515 = vshll.u32 %v1407, 16
      %v1517 = vrot.slane %v1515, 5
      %v1518 = vsel %vm251, %v1513, %v1517
      %v1520 = vshrl.u32 %v1408, 16
      %v1522 = vrot.slane %v1520, 4
      %v1523 = vshll.u32 %v1408, 16
      %v1525 = vrot.slane %v1523, 5
      %v1526 = vor.u32 %v1522, %v1525
      %v1527 = vrot.slane %v1526, 4
      %v1529 = vshll.u32 %v1409, 16
      %v1531 = vrot.slane %v1529, 5
      %v1532 = vsel %vm251, %v1527, %v1531
      %v1533 = vshrl.u32 %v1409, 16
      %v1535 = vrot.slane %v1533, 4
      %v1536 = vor.u32 %v1535, %v1531
      %v1537 = vrot.slane %v1536, 4
      %v1539 = vshll.u32 %v1410, 16
      %v1541 = vrot.slane %v1539, 5
      %v1542 = vsel %vm251, %v1537, %v1541
      %v1544 = vshrl.u32 %v1411, 16
      %v1546 = vrot.slane %v1544, 4
      %v1547 = vshll.u32 %v1411, 16
      %v1549 = vrot.slane %v1547, 5
      %v1550 = vor.u32 %v1546, %v1549
      %v1551 = vrot.slane %v1550, 4
      %v1553 = vshll.u32 %v1412, 16
      %v1555 = vrot.slane %v1553, 5
      %v1556 = vsel %vm251, %v1551, %v1555
      %v1557 = vshrl.u32 %v1412, 16
      %v1559 = vrot.slane %v1557, 4
      %v1560 = vor.u32 %v1559, %v1555
      %v1561 = vrot.slane %v1560, 4
      %v1563 = vshll.u32 %v1413, 16
      %v1565 = vrot.slane %v1563, 5
      %v1566 = vsel %vm251, %v1561, %v1565
      %v1568 = vshrl.u32 %v1414, 16
      %v1570 = vrot.slane %v1568, 4
      %v1571 = vshll.u32 %v1414, 16
      %v1573 = vrot.slane %v1571, 5
      %v1574 = vor.u32 %v1570, %v1573
      %v1575 = vrot.slane %v1574, 4
      %v1577 = vshll.u32 %v1415, 16
      %v1579 = vrot.slane %v1577, 5
      %v1580 = vsel %vm251, %v1575, %v1579
      %v1581 = vshrl.u32 %v1415, 16
      %v1583 = vrot.slane %v1581, 4
      %v1584 = vor.u32 %v1583, %v1579
      %v1585 = vrot.slane %v1584, 4
      %v1587 = vshll.u32 %v1416, 16
      %v1589 = vrot.slane %v1587, 5
      %v1590 = vsel %vm251, %v1585, %v1589
      %v1592 = vshrl.u32 %v1417, 16
      %v1594 = vrot.slane %v1592, 4
      %v1595 = vshll.u32 %v1417, 16
      %v1597 = vrot.slane %v1595, 5
      %v1598 = vor.u32 %v1594, %v1597
      %v1599 = vrot.slane %v1598, 4
      %v1601 = vshll.u32 %v1418, 16
      %v1603 = vrot.slane %v1601, 5
      %v1604 = vsel %vm251, %v1599, %v1603
      %v1605 = vshrl.u32 %v1418, 16
      %v1607 = vrot.slane %v1605, 4
      %v1608 = vor.u32 %v1607, %v1603
      %v1609 = vrot.slane %v1608, 4
      %v1611 = vshll.u32 %v1419, 16
      %v1613 = vrot.slane %v1611, 5
      %v1614 = vsel %vm251, %v1609, %v1613
      %v1616 = vshrl.u32 %v1420, 16
      %v1618 = vrot.slane %v1616, 4
      %v1619 = vshll.u32 %v1420, 16
      %v1621 = vrot.slane %v1619, 5
      %v1622 = vor.u32 %v1618, %v1621
      %v1623 = vrot.slane %v1622, 4
      %v1625 = vshll.u32 %v1421, 16
      %v1627 = vrot.slane %v1625, 5
      %v1628 = vsel %vm251, %v1623, %v1627
      %v1629 = vshrl.u32 %v1421, 16
      %v1631 = vrot.slane %v1629, 4
      %v1632 = vor.u32 %v1631, %v1627
      %v1633 = vrot.slane %v1632, 4
      %v1635 = vshll.u32 %v1422, 16
      %v1637 = vrot.slane %v1635, 5
      %v1638 = vsel %vm251, %v1633, %v1637
      %v1640 = vshrl.u32 %v1423, 16
      %v1642 = vrot.slane %v1640, 4
      %v1643 = vshll.u32 %v1423, 16
      %v1645 = vrot.slane %v1643, 5
      %v1646 = vor.u32 %v1642, %v1645
      %v1647 = vrot.slane %v1646, 4
      %v1649 = vshll.u32 %v1424, 16
      %v1651 = vrot.slane %v1649, 5
      %v1652 = vsel %vm251, %v1647, %v1651
      %v1653 = vshrl.u32 %v1424, 16
      %v1655 = vrot.slane %v1653, 4
      %v1656 = vor.u32 %v1655, %v1651
      %v1657 = vrot.slane %v1656, 4
      %v1659 = vshll.u32 %v1425, 16
      %v1661 = vrot.slane %v1659, 5
      %v1662 = vsel %vm251, %v1657, %v1661
      %v1664 = vshrl.u32 %v1426, 16
      %v1666 = vrot.slane %v1664, 4
      %v1667 = vshll.u32 %v1426, 16
      %v1669 = vrot.slane %v1667, 5
      %v1670 = vor.u32 %v1666, %v1669
      %v1671 = vrot.slane %v1670, 4
      %v1673 = vshll.u32 %v1427, 16
      %v1675 = vrot.slane %v1673, 5
      %v1676 = vsel %vm251, %v1671, %v1675
      %v1677 = vshrl.u32 %v1427, 16
      %v1679 = vrot.slane %v1677, 4
      %v1680 = vor.u32 %v1679, %v1675
      %v1681 = vrot.slane %v1680, 4
      %v1683 = vshll.u32 %v1428, 16
      %v1685 = vrot.slane %v1683, 5
      %v1686 = vsel %vm251, %v1681, %v1685
      %v1688 = vshrl.u32 %v1429, 16
      %v1690 = vrot.slane %v1688, 4
      %v1691 = vshll.u32 %v1429, 16
      %v1693 = vrot.slane %v1691, 5
      %v1694 = vor.u32 %v1690, %v1693
      %v1695 = vrot.slane %v1694, 4
      %v1697 = vshll.u32 %v1430, 16
      %v1699 = vrot.slane %v1697, 5
      %v1700 = vsel %vm251, %v1695, %v1699
      %v1701 = vshrl.u32 %v1430, 16
      %v1703 = vrot.slane %v1701, 4
      %v1704 = vor.u32 %v1703, %v1699
      %v1705 = vrot.slane %v1704, 4
      %v1707 = vshll.u32 %v1431, 16
      %v1709 = vrot.slane %v1707, 5
      %v1710 = vsel %vm251, %v1705, %v1709
      %v1712 = vshrl.u32 %v1432, 16
      %v1714 = vrot.slane %v1712, 4
      %v1715 = vshll.u32 %v1432, 16
      %v1717 = vrot.slane %v1715, 5
      %v1718 = vor.u32 %v1714, %v1717
      %v1719 = vrot.slane %v1718, 4
      %v1721 = vshll.u32 %v1433, 16
      %v1723 = vrot.slane %v1721, 5
      %v1724 = vsel %vm251, %v1719, %v1723
      %v1725 = vshrl.u32 %v1433, 16
      %v1727 = vrot.slane %v1725, 4
      %v1728 = vor.u32 %v1727, %v1723
      %v1729 = vrot.slane %v1728, 4
      %v1731 = vshll.u32 %v1434, 16
      %v1733 = vrot.slane %v1731, 5
      %v1734 = vsel %vm251, %v1729, %v1733
      %v1736 = vshrl.u32 %v1435, 16
      %v1738 = vrot.slane %v1736, 4
      %v1739 = vshll.u32 %v1435, 16
      %v1741 = vrot.slane %v1739, 5
      %v1742 = vor.u32 %v1738, %v1741
      %v1743 = vrot.slane %v1742, 4
      %v1745 = vshll.u32 %v1436, 16
      %v1747 = vrot.slane %v1745, 5
      %v1748 = vsel %vm251, %v1743, %v1747
      %v1749 = vshrl.u32 %v1436, 16
      %v1751 = vrot.slane %v1749, 4
      %v1752 = vor.u32 %v1751, %v1747
      %v1753 = vrot.slane %v1752, 4
      %v1755 = vshll.u32 %v1437, 16
      %v1757 = vrot.slane %v1755, 5
      %v1758 = vsel %vm251, %v1753, %v1757
      %v1760 = vshrl.u32 %v1438, 16
      %v1762 = vrot.slane %v1760, 4
      %v1763 = vshll.u32 %v1438, 16
      %v1765 = vrot.slane %v1763, 5
      %v1766 = vor.u32 %v1762, %v1765
      %v1767 = vrot.slane %v1766, 4
      %v1769 = vshll.u32 %v1439, 16
      %v1771 = vrot.slane %v1769, 5
      %v1772 = vsel %vm251, %v1767, %v1771
      %v1773 = vshrl.u32 %v1439, 16
      %v1775 = vrot.slane %v1773, 4
      %v1776 = vor.u32 %v1775, %v1771
      %v1777 = vrot.slane %v1776, 4
      %v1779 = vshll.u32 %v1440, 16
      %v1781 = vrot.slane %v1779, 5
      %v1782 = vsel %vm251, %v1777, %v1781
      %v1784 = vshrl.u32 %v1441, 16
      %v1786 = vrot.slane %v1784, 4
      %v1787 = vshll.u32 %v1441, 16
      %v1789 = vrot.slane %v1787, 5
      %v1790 = vor.u32 %v1786, %v1789
      %v1791 = vrot.slane %v1790, 4
      %v1793 = vshll.u32 %v1442, 16
      %v1795 = vrot.slane %v1793, 5
      %v1796 = vsel %vm251, %v1791, %v1795
      %v1797 = vshrl.u32 %v1442, 16
      %v1799 = vrot.slane %v1797, 4
      %v1800 = vor.u32 %v1799, %v1795
      %v1801 = vrot.slane %v1800, 4
      %v1803 = vshll.u32 %v1443, 16
      %v1805 = vrot.slane %v1803, 5
      %v1806 = vsel %vm251, %v1801, %v1805
      %v1808 = vshrl.u32 %v1444, 16
      %v1810 = vrot.slane %v1808, 4
      %v1811 = vshll.u32 %v1444, 16
      %v1813 = vrot.slane %v1811, 5
      %v1814 = vor.u32 %v1810, %v1813
      %v1815 = vrot.slane %v1814, 4
      %v1817 = vshll.u32 %v1445, 16
      %v1819 = vrot.slane %v1817, 5
      %v1820 = vsel %vm251, %v1815, %v1819
      %v1821 = vshrl.u32 %v1445, 16
      %v1823 = vrot.slane %v1821, 4
      %v1824 = vor.u32 %v1823, %v1819
      %v1825 = vrot.slane %v1824, 4
      %v1827 = vshll.u32 %v1446, 16
      %v1829 = vrot.slane %v1827, 5
      %v1830 = vsel %vm251, %v1825, %v1829
      %v1879 = vrot.slane %v1399, 5
      %v1880 = vrot.slane %v1879, 4
      %v1881 = vrot.slane %v1400, 5
      %v1882 = vsel %vm686, %v1880, %v1881
      %v1883 = vrot.slane %v1881, 4
      %v1884 = vrot.slane %v1401, 5
      %v1885 = vsel %vm686, %v1883, %v1884
      %v1886 = vrot.slane %v1402, 5
      %v1887 = vrot.slane %v1886, 4
      %v1888 = vrot.slane %v1403, 5
      %v1889 = vsel %vm686, %v1887, %v1888
      %v1890 = vrot.slane %v1888, 4
      %v1891 = vrot.slane %v1404, 5
      %v1892 = vsel %vm686, %v1890, %v1891
      %v1893 = vrot.slane %v1405, 5
      %v1894 = vrot.slane %v1893, 4
      %v1895 = vrot.slane %v1406, 5
      %v1896 = vsel %vm686, %v1894, %v1895
      %v1897 = vrot.slane %v1895, 4
      %v1898 = vrot.slane %v1407, 5
      %v1899 = vsel %vm686, %v1897, %v1898
      %v1900 = vrot.slane %v1408, 5
      %v1901 = vrot.slane %v1900, 4
      %v1902 = vrot.slane %v1409, 5
      %v1903 = vsel %vm686, %v1901, %v1902
      %v1904 = vrot.slane %v1902, 4
      %v1905 = vrot.slane %v1410, 5
      %v1906 = vsel %vm686, %v1904, %v1905
      %v1907 = vrot.slane %v1411, 5
      %v1908 = vrot.slane %v1907, 4
      %v1909 = vrot.slane %v1412, 5
      %v1910 = vsel %vm686, %v1908, %v1909
      %v1911 = vrot.slane %v1909, 4
      %v1912 = vrot.slane %v1413, 5
      %v1913 = vsel %vm686, %v1911, %v1912
      %v1914 = vrot.slane %v1414, 5
      %v1915 = vrot.slane %v1914, 4
      %v1916 = vrot.slane %v1415, 5
      %v1917 = vsel %vm686, %v1915, %v1916
      %v1918 = vrot.slane %v1916, 4
      %v1919 = vrot.slane %v1416, 5
      %v1920 = vsel %vm686, %v1918, %v1919
      %v1921 = vrot.slane %v1417, 5
      %v1922 = vrot.slane %v1921, 4
      %v1923 = vrot.slane %v1418, 5
      %v1924 = vsel %vm686, %v1922, %v1923
      %v1925 = vrot.slane %v1923, 4
      %v1926 = vrot.slane %v1419, 5
      %v1927 = vsel %vm686, %v1925, %v1926
      %v1928 = vrot.slane %v1420, 5
      %v1929 = vrot.slane %v1928, 4
      %v1930 = vrot.slane %v1421, 5
      %v1931 = vsel %vm686, %v1929, %v1930
      %v1932 = vrot.slane %v1930, 4
      %v1933 = vrot.slane %v1422, 5
      %v1934 = vsel %vm686, %v1932, %v1933
      %v1935 = vrot.slane %v1423, 5
      %v1936 = vrot.slane %v1935, 4
      %v1937 = vrot.slane %v1424, 5
      %v1938 = vsel %vm686, %v1936, %v1937
      %v1939 = vrot.slane %v1937, 4
      %v1940 = vrot.slane %v1425, 5
      %v1941 = vsel %vm686, %v1939, %v1940
      %v1942 = vrot.slane %v1426, 5
      %v1943 = vrot.slane %v1942, 4
      %v1944 = vrot.slane %v1427, 5
      %v1945 = vsel %vm686, %v1943, %v1944
      %v1946 = vrot.slane %v1944, 4
      %v1947 = vrot.slane %v1428, 5
      %v1948 = vsel %vm686, %v1946, %v1947
      %v1949 = vrot.slane %v1429, 5
      %v1950 = vrot.slane %v1949, 4
      %v1951 = vrot.slane %v1430, 5
      %v1952 = vsel %vm686, %v1950, %v1951
      %v1953 = vrot.slane %v1951, 4
      %v1954 = vrot.slane %v1431, 5
      %v1955 = vsel %vm686, %v1953, %v1954
      %v1956 = vrot.slane %v1432, 5
      %v1957 = vrot.slane %v1956, 4
      %v1958 = vrot.slane %v1433, 5
      %v1959 = vsel %vm686, %v1957, %v1958
      %v1960 = vrot.slane %v1958, 4
      %v1961 = vrot.slane %v1434, 5
      %v1962 = vsel %vm686, %v1960, %v1961
      %v1963 = vrot.slane %v1435, 5
      %v1964 = vrot.slane %v1963, 4
      %v1965 = vrot.slane %v1436, 5
      %v1966 = vsel %vm686, %v1964, %v1965
      %v1967 = vrot.slane %v1965, 4
      %v1968 = vrot.slane %v1437, 5
      %v1969 = vsel %vm686, %v1967, %v1968
      %v1970 = vrot.slane %v1438, 5
      %v1971 = vrot.slane %v1970, 4
      %v1972 = vrot.slane %v1439, 5
      %v1973 = vsel %vm686, %v1971, %v1972
      %v1974 = vrot.slane %v1972, 4
      %v1975 = vrot.slane %v1440, 5
      %v1976 = vsel %vm686, %v1974, %v1975
      %v1977 = vrot.slane %v1441, 5
      %v1978 = vrot.slane %v1977, 4
      %v1979 = vrot.slane %v1442, 5
      %v1980 = vsel %vm686, %v1978, %v1979
      %v1981 = vrot.slane %v1979, 4
      %v1982 = vrot.slane %v1443, 5
      %v1983 = vsel %vm686, %v1981, %v1982
      %v1984 = vrot.slane %v1444, 5
      %v1985 = vrot.slane %v1984, 4
      %v1986 = vrot.slane %v1445, 5
      %v1987 = vsel %vm686, %v1985, %v1986
      %v1988 = vrot.slane %v1986, 4
      %v1989 = vrot.slane %v1446, 5
      %v1990 = vsel %vm686, %v1988, %v1989
      %v1991 = vld [vmem:[%s1] sm:$0x3]
      %v1992 = vunpack.c.l.b16 %v201
      %v1993 = vunpack.c.l.b16 %v202
      %v1994 = vunpack.c.l.b16 %v204
      %v1995 = vunpack.c.l.b16 %v205
      %v1996 = vunpack.c.l.b16 %v207
      %v1997 = vunpack.c.l.b16 %v208
      %v1998 = vunpack.c.l.b16 %v210
      %v1999 = vunpack.c.l.b16 %v211
      %v2000 = vunpack.c.l.b16 %v213
      %v2001 = vunpack.c.l.b16 %v214
      %v2002 = vunpack.c.l.b16 %v216
      %v2003 = vunpack.c.l.b16 %v217
      %v2004 = vunpack.c.l.b16 %v219
      %v2005 = vunpack.c.l.b16 %v220
      %v2006 = vunpack.c.l.b16 %v222
      %v2007 = vunpack.c.l.b16 %v223
      %v2008 = vunpack.c.l.b16 %v225
      %v2009 = vunpack.c.l.b16 %v226
      %v2010 = vunpack.c.l.b16 %v228
      %v2011 = vunpack.c.l.b16 %v229
      %v2012 = vunpack.c.l.b16 %v231
      %v2013 = vunpack.c.l.b16 %v232
      %v2014 = vunpack.c.l.b16 %v234
      %v2015 = vunpack.c.l.b16 %v235
      %v2016 = vunpack.c.l.b16 %v237
      %v2017 = vunpack.c.l.b16 %v238
      %v2018 = vunpack.c.l.b16 %v240
      %v2019 = vunpack.c.l.b16 %v241
      %v2020 = vunpack.c.l.b16 %v243
      %v2021 = vunpack.c.l.b16 %v244
      %v2022 = vunpack.c.l.b16 %v246
      %v2023 = vunpack.c.l.b16 %v247
      %v2024 = vpack.c.b16 %v1993, %v1992
      %v2025 = vpack.c.b16 %v1995, %v1994
      %v2026 = vpack.c.b16 %v1997, %v1996
      %v2027 = vpack.c.b16 %v1999, %v1998
      %v2028 = vpack.c.b16 %v2001, %v2000
      %v2029 = vpack.c.b16 %v2003, %v2002
      %v2030 = vpack.c.b16 %v2005, %v2004
      %v2031 = vpack.c.b16 %v2007, %v2006
      %v2032 = vpack.c.b16 %v2009, %v2008
      %v2033 = vpack.c.b16 %v2011, %v2010
      %v2034 = vpack.c.b16 %v2013, %v2012
      %v2035 = vpack.c.b16 %v2015, %v2014
      %v2036 = vpack.c.b16 %v2017, %v2016
      %v2037 = vpack.c.b16 %v2019, %v2018
      %v2038 = vpack.c.b16 %v2021, %v2020
      %v2039 = vpack.c.b16 %v2023, %v2022
      %vm2040 = vcmask 31744
      %v2042 = vsel %vm2040, %v2024, 0
      %v2045 = vsel %vm2040, %v2025, 0
      %v2048 = vsel %vm2040, %v2026, 0
      %v2051 = vsel %vm2040, %v2027, 0
      %v2054 = vsel %vm2040, %v2028, 0
      %v2057 = vsel %vm2040, %v2029, 0
      %v2060 = vsel %vm2040, %v2030, 0
      %v2063 = vsel %vm2040, %v2031, 0
      %v2066 = vsel %vm2040, %v2032, 0
      %v2069 = vsel %vm2040, %v2033, 0
      %v2072 = vsel %vm2040, %v2034, 0
      %v2075 = vsel %vm2040, %v2035, 0
      %v2078 = vsel %vm2040, %v2036, 0
      %v2081 = vsel %vm2040, %v2037, 0
      %v2084 = vsel %vm2040, %v2038, 0
      %v2087 = vsel %vm2040, %v2039, 0
      %vm2089 = vcmask 1041408
      %v2091 = vsel %vm2089, %v1991, 0
      %2093 = vmatprep.subr.bf16.mxu0 0
      %2094 = vmatpush1.bf16.msra.mxu0 0
      %2095 = vmatprep.subr.bf16.mxu0 0
      %2096 = vmatpush1.bf16.msra.mxu0 0
      %2097 = vmatprep.subr.bf16.mxu0 0
      %2098 = vmatpush1.bf16.msra.mxu0 0
      %2099 = vmatprep.subr.bf16.mxu0 0
      %2100 = vmatpush1.bf16.msra.mxu0 0
      %2101 = vmatprep.subr.bf16.mxu0 0
      %2102 = vmatpush1.bf16.msra.mxu0 0
      %2103 = vmatprep.subr.bf16.mxu0 0
      %2104 = vmatpush1.bf16.msra.mxu0 0
      %2105 = vmatprep.subr.bf16.mxu0 0
      %2106 = vmatpush1.bf16.msra.mxu0 0
      %2107 = vmatprep.subr.bf16.mxu0 0
      %2108 = vmatpush1.bf16.msra.mxu0 %v2091
      %2109 = vmatprep.subr.bf16.mxu0 0
      %2110 = vmatpush2.bf16.msra.mxu0 0
      %2111 = vmatprep.subr.bf16.mxu0 0
      %2112 = vmatpush2.bf16.msra.mxu0 0
      %2113 = vmatprep.subr.bf16.mxu0 0
      %2114 = vmatpush2.bf16.msra.mxu0 0
      %2115 = vmatprep.subr.bf16.mxu0 0
      %2116 = vmatpush2.bf16.msra.mxu0 0
      %2117 = vmatprep.subr.bf16.mxu0 0
      %2118 = vmatpush2.bf16.msra.mxu0 0
      %2119 = vmatprep.subr.bf16.mxu0 0
      %2120 = vmatpush2.bf16.msra.mxu0 0
      %2121 = vmatprep.subr.bf16.mxu0 0
      %2122 = vmatpush2.bf16.msra.mxu0 0
      %2123 = vmatprep.subr.bf16.mxu0 0
      %2124 = vmatpush2.bf16.msra.mxu0 0
      %2125 = vmatprep.mubr.bf16.mxu0 0
      %2126 = vmatmul.mubr.bf16.gmra.mxu0 %v2042
      %v2127 = vpop.f32.mrf.mxu0
      %v2128 = vadd.f32 0.0, %v2127
      %v2129 = vpop.f32.mrf.mxu0
      %v2130 = vpop.f32.mrf.mxu0
      %v2131 = vadd.f32 0.0, %v2130
      %v2132 = vpop.f32.mrf.mxu0
      %2133 = vmatprep.mubr.bf16.mxu0 0
      %2134 = vmatmul.mubr.bf16.gmra.mxu0 %v2045
      %v2135 = vpop.f32.mrf.mxu0
      %v2136 = vadd.f32 0.0, %v2135
      %v2137 = vpop.f32.mrf.mxu0
      %v2138 = vpop.f32.mrf.mxu0
      %v2139 = vadd.f32 0.0, %v2138
      %v2140 = vpop.f32.mrf.mxu0
      %2141 = vmatprep.mubr.bf16.mxu0 0
      %2142 = vmatmul.mubr.bf16.gmra.mxu0 %v2048
      %v2143 = vpop.f32.mrf.mxu0
      %v2144 = vadd.f32 0.0, %v2143
      %v2145 = vpop.f32.mrf.mxu0
      %v2146 = vpop.f32.mrf.mxu0
      %v2147 = vadd.f32 0.0, %v2146
      %v2148 = vpop.f32.mrf.mxu0
      %2149 = vmatprep.mubr.bf16.mxu0 0
      %2150 = vmatmul.mubr.bf16.gmra.mxu0 %v2051
      %v2151 = vpop.f32.mrf.mxu0
      %v2152 = vadd.f32 0.0, %v2151
      %v2153 = vpop.f32.mrf.mxu0
      %v2154 = vpop.f32.mrf.mxu0
      %v2155 = vadd.f32 0.0, %v2154
      %v2156 = vpop.f32.mrf.mxu0
      %2157 = vmatprep.mubr.bf16.mxu0 0
      %2158 = vmatmul.mubr.bf16.gmra.mxu0 %v2054
      %v2159 = vpop.f32.mrf.mxu0
      %v2160 = vadd.f32 0.0, %v2159
      %v2161 = vpop.f32.mrf.mxu0
      %v2162 = vpop.f32.mrf.mxu0
      %v2163 = vadd.f32 0.0, %v2162
      %v2164 = vpop.f32.mrf.mxu0
      %2165 = vmatprep.mubr.bf16.mxu0 0
      %2166 = vmatmul.mubr.bf16.gmra.mxu0 %v2057
      %v2167 = vpop.f32.mrf.mxu0
      %v2168 = vadd.f32 0.0, %v2167
      %v2169 = vpop.f32.mrf.mxu0
      %v2170 = vpop.f32.mrf.mxu0
      %v2171 = vadd.f32 0.0, %v2170
      %v2172 = vpop.f32.mrf.mxu0
      %2173 = vmatprep.mubr.bf16.mxu0 0
      %2174 = vmatmul.mubr.bf16.gmra.mxu0 %v2060
      %v2175 = vpop.f32.mrf.mxu0
      %v2176 = vadd.f32 0.0, %v2175
      %v2177 = vpop.f32.mrf.mxu0
      %v2178 = vpop.f32.mrf.mxu0
      %v2179 = vadd.f32 0.0, %v2178
      %v2180 = vpop.f32.mrf.mxu0
      %2181 = vmatprep.mubr.bf16.mxu0 0
      %2182 = vmatmul.mubr.bf16.gmra.mxu0 %v2063
      %v2183 = vpop.f32.mrf.mxu0
      %v2184 = vadd.f32 0.0, %v2183
      %v2185 = vpop.f32.mrf.mxu0
      %v2186 = vpop.f32.mrf.mxu0
      %v2187 = vadd.f32 0.0, %v2186
      %v2188 = vpop.f32.mrf.mxu0
      %2189 = vmatprep.mubr.bf16.mxu0 0
      %2190 = vmatmul.mubr.bf16.gmra.mxu0 %v2066
      %v2191 = vpop.f32.mrf.mxu0
      %v2192 = vadd.f32 0.0, %v2191
      %v2193 = vpop.f32.mrf.mxu0
      %v2194 = vpop.f32.mrf.mxu0
      %v2195 = vadd.f32 0.0, %v2194
      %v2196 = vpop.f32.mrf.mxu0
      %2197 = vmatprep.mubr.bf16.mxu0 0
      %2198 = vmatmul.mubr.bf16.gmra.mxu0 %v2069
      %v2199 = vpop.f32.mrf.mxu0
      %v2200 = vadd.f32 0.0, %v2199
      %v2201 = vpop.f32.mrf.mxu0
      %v2202 = vpop.f32.mrf.mxu0
      %v2203 = vadd.f32 0.0, %v2202
      %v2204 = vpop.f32.mrf.mxu0
      %2205 = vmatprep.mubr.bf16.mxu0 0
      %2206 = vmatmul.mubr.bf16.gmra.mxu0 %v2072
      %v2207 = vpop.f32.mrf.mxu0
      %v2208 = vadd.f32 0.0, %v2207
      %v2209 = vpop.f32.mrf.mxu0
      %v2210 = vpop.f32.mrf.mxu0
      %v2211 = vadd.f32 0.0, %v2210
      %v2212 = vpop.f32.mrf.mxu0
      %2213 = vmatprep.mubr.bf16.mxu0 0
      %2214 = vmatmul.mubr.bf16.gmra.mxu0 %v2075
      %v2215 = vpop.f32.mrf.mxu0
      %v2216 = vadd.f32 0.0, %v2215
      %v2217 = vpop.f32.mrf.mxu0
      %v2218 = vpop.f32.mrf.mxu0
      %v2219 = vadd.f32 0.0, %v2218
      %v2220 = vpop.f32.mrf.mxu0
      %2221 = vmatprep.mubr.bf16.mxu0 0
      %2222 = vmatmul.mubr.bf16.gmra.mxu0 %v2078
      %v2223 = vpop.f32.mrf.mxu0
      %v2224 = vadd.f32 0.0, %v2223
      %v2225 = vpop.f32.mrf.mxu0
      %v2226 = vpop.f32.mrf.mxu0
      %v2227 = vadd.f32 0.0, %v2226
      %v2228 = vpop.f32.mrf.mxu0
      %2229 = vmatprep.mubr.bf16.mxu0 0
      %2230 = vmatmul.mubr.bf16.gmra.mxu0 %v2081
      %v2231 = vpop.f32.mrf.mxu0
      %v2232 = vadd.f32 0.0, %v2231
      %v2233 = vpop.f32.mrf.mxu0
      %v2234 = vpop.f32.mrf.mxu0
      %v2235 = vadd.f32 0.0, %v2234
      %v2236 = vpop.f32.mrf.mxu0
      %2237 = vmatprep.mubr.bf16.mxu0 0
      %2238 = vmatmul.mubr.bf16.gmra.mxu0 %v2084
      %v2239 = vpop.f32.mrf.mxu0
      %v2240 = vadd.f32 0.0, %v2239
      %v2241 = vpop.f32.mrf.mxu0
      %v2242 = vpop.f32.mrf.mxu0
      %v2243 = vadd.f32 0.0, %v2242
      %v2244 = vpop.f32.mrf.mxu0
      %2245 = vmatprep.mubr.bf16.mxu0 0
      %2246 = vmatmul.mubr.bf16.gmra.mxu0 %v2087
      %v2247 = vpop.f32.mrf.mxu0
      %v2248 = vadd.f32 0.0, %v2247
      %v2249 = vpop.f32.mrf.mxu0
      %v2250 = vpop.f32.mrf.mxu0
      %v2251 = vadd.f32 0.0, %v2250
      %v2252 = vpop.f32.mrf.mxu0
      %2253 = vdwg.mxu0
      %2254 = vst [vmem:[#allocation2] sm:$0xff] %v2128
      %2255 = vst [vmem:[#allocation2 + $0x8] sm:$0xff] %v2131
      %2256 = vst [vmem:[#allocation2 + $0x10] sm:$0xff] %v2136
      %2257 = vst [vmem:[#allocation2 + $0x18] sm:$0xff] %v2139
      %2258 = vst [vmem:[#allocation2 + $0x20] sm:$0xff] %v2144
      %2259 = vst [vmem:[#allocation2 + $0x28] sm:$0xff] %v2147
      %2260 = vst [vmem:[#allocation2 + $0x30] sm:$0xff] %v2152
      %2261 = vst [vmem:[#allocation2 + $0x38] sm:$0xff] %v2155
      %2262 = vst [vmem:[#allocation2 + $0x40] sm:$0xff] %v2160
      %2263 = vst [vmem:[#allocation2 + $0x48] sm:$0xff] %v2163
      %2264 = vst [vmem:[#allocation2 + $0x50] sm:$0xff] %v2168
      %2265 = vst [vmem:[#allocation2 + $0x58] sm:$0xff] %v2171
      %2266 = vst [vmem:[#allocation2 + $0x60] sm:$0xff] %v2176
      %2267 = vst [vmem:[#allocation2 + $0x68] sm:$0xff] %v2179
      %2268 = vst [vmem:[#allocation2 + $0x70] sm:$0xff] %v2184
      %2269 = vst [vmem:[#allocation2 + $0x78] sm:$0xff] %v2187
      %2270 = vst [vmem:[#allocation2 + $0x80] sm:$0xff] %v2192
      %2271 = vst [vmem:[#allocation2 + $0x88] sm:$0xff] %v2195
      %2272 = vst [vmem:[#allocation2 + $0x90] sm:$0xff] %v2200
      %2273 = vst [vmem:[#allocation2 + $0x98] sm:$0xff] %v2203
      %2274 = vst [vmem:[#allocation2 + $0xa0] sm:$0xff] %v2208
      %2275 = vst [vmem:[#allocation2 + $0xa8] sm:$0xff] %v2211
      %2276 = vst [vmem:[#allocation2 + $0xb0] sm:$0xff] %v2216
      %2277 = vst [vmem:[#allocation2 + $0xb8] sm:$0xff] %v2219
      %2278 = vst [vmem:[#allocation2 + $0xc0] sm:$0xff] %v2224
      %2279 = vst [vmem:[#allocation2 + $0xc8] sm:$0xff] %v2227
      %2280 = vst [vmem:[#allocation2 + $0xd0] sm:$0xff] %v2232
      %2281 = vst [vmem:[#allocation2 + $0xd8] sm:$0xff] %v2235
      %2282 = vst [vmem:[#allocation2 + $0xe0] sm:$0xff] %v2240
      %2283 = vst [vmem:[#allocation2 + $0xe8] sm:$0xff] %v2243
      %2284 = vst [vmem:[#allocation2 + $0xf0] sm:$0xff] %v2248
      %2285 = vst [vmem:[#allocation2 + $0xf8] sm:$0xff] %v2251
      %v2286 = vld [vmem:[#allocation2] sm:$0xff]
      %v2287 = vld [vmem:[#allocation2 + $0x8] sm:$0xff]
      %v2288 = vld [vmem:[#allocation2 + $0x10] sm:$0xff]
      %v2289 = vld [vmem:[#allocation2 + $0x18] sm:$0xff]
      %v2290 = vld [vmem:[#allocation2 + $0x20] sm:$0xff]
      %v2291 = vld [vmem:[#allocation2 + $0x28] sm:$0xff]
      %v2292 = vld [vmem:[#allocation2 + $0x30] sm:$0xff]
      %v2293 = vld [vmem:[#allocation2 + $0x38] sm:$0xff]
      %v2294 = vld [vmem:[#allocation2 + $0x40] sm:$0xff]
      %v2295 = vld [vmem:[#allocation2 + $0x48] sm:$0xff]
      %v2296 = vld [vmem:[#allocation2 + $0x50] sm:$0xff]
      %v2297 = vld [vmem:[#allocation2 + $0x58] sm:$0xff]
      %v2298 = vld [vmem:[#allocation2 + $0x60] sm:$0xff]
      %v2299 = vld [vmem:[#allocation2 + $0x68] sm:$0xff]
      %v2300 = vld [vmem:[#allocation2 + $0x70] sm:$0xff]
      %v2301 = vld [vmem:[#allocation2 + $0x78] sm:$0xff]
      %v2302 = vld [vmem:[#allocation2 + $0x80] sm:$0xff]
      %v2303 = vld [vmem:[#allocation2 + $0x88] sm:$0xff]
      %v2304 = vld [vmem:[#allocation2 + $0x90] sm:$0xff]
      %v2305 = vld [vmem:[#allocation2 + $0x98] sm:$0xff]
      %v2306 = vld [vmem:[#allocation2 + $0xa0] sm:$0xff]
      %v2307 = vld [vmem:[#allocation2 + $0xa8] sm:$0xff]
      %v2308 = vld [vmem:[#allocation2 + $0xb0] sm:$0xff]
      %v2309 = vld [vmem:[#allocation2 + $0xb8] sm:$0xff]
      %v2310 = vld [vmem:[#allocation2 + $0xc0] sm:$0xff]
      %v2311 = vld [vmem:[#allocation2 + $0xc8] sm:$0xff]
      %v2312 = vld [vmem:[#allocation2 + $0xd0] sm:$0xff]
      %v2313 = vld [vmem:[#allocation2 + $0xd8] sm:$0xff]
      %v2314 = vld [vmem:[#allocation2 + $0xe0] sm:$0xff]
      %v2315 = vld [vmem:[#allocation2 + $0xe8] sm:$0xff]
      %v2316 = vld [vmem:[#allocation2 + $0xf0] sm:$0xff]
      %v2317 = vld [vmem:[#allocation2 + $0xf8] sm:$0xff]
      %s2318 = scalar_lea.vmem %s1, 2
      %v2319 = vld [vmem:[%s2318] sm:$0x3]
      %v2320 = vunpack.c.l.b16 %v265
      %v2321 = vunpack.c.l.b16 %v275
      %v2322 = vunpack.c.l.b16 %v289
      %v2323 = vunpack.c.l.b16 %v299
      %v2324 = vunpack.c.l.b16 %v313
      %v2325 = vunpack.c.l.b16 %v323
      %v2326 = vunpack.c.l.b16 %v337
      %v2327 = vunpack.c.l.b16 %v347
      %v2328 = vunpack.c.l.b16 %v361
      %v2329 = vunpack.c.l.b16 %v371
      %v2330 = vunpack.c.l.b16 %v385
      %v2331 = vunpack.c.l.b16 %v395
      %v2332 = vunpack.c.l.b16 %v409
      %v2333 = vunpack.c.l.b16 %v419
      %v2334 = vunpack.c.l.b16 %v433
      %v2335 = vunpack.c.l.b16 %v443
      %v2336 = vunpack.c.l.b16 %v457
      %v2337 = vunpack.c.l.b16 %v467
      %v2338 = vunpack.c.l.b16 %v481
      %v2339 = vunpack.c.l.b16 %v491
      %v2340 = vunpack.c.l.b16 %v505
      %v2341 = vunpack.c.l.b16 %v515
      %v2342 = vunpack.c.l.b16 %v529
      %v2343 = vunpack.c.l.b16 %v539
      %v2344 = vunpack.c.l.b16 %v553
      %v2345 = vunpack.c.l.b16 %v563
      %v2346 = vunpack.c.l.b16 %v577
      %v2347 = vunpack.c.l.b16 %v587
      %v2348 = vunpack.c.l.b16 %v601
      %v2349 = vunpack.c.l.b16 %v611
      %v2350 = vunpack.c.l.b16 %v625
      %v2351 = vunpack.c.l.b16 %v635
      %v2352 = vpack.c.b16 %v2321, %v2320
      %v2353 = vpack.c.b16 %v2323, %v2322
      %v2354 = vpack.c.b16 %v2325, %v2324
      %v2355 = vpack.c.b16 %v2327, %v2326
      %v2356 = vpack.c.b16 %v2329, %v2328
      %v2357 = vpack.c.b16 %v2331, %v2330
      %v2358 = vpack.c.b16 %v2333, %v2332
      %v2359 = vpack.c.b16 %v2335, %v2334
      %v2360 = vpack.c.b16 %v2337, %v2336
      %v2361 = vpack.c.b16 %v2339, %v2338
      %v2362 = vpack.c.b16 %v2341, %v2340
      %v2363 = vpack.c.b16 %v2343, %v2342
      %v2364 = vpack.c.b16 %v2345, %v2344
      %v2365 = vpack.c.b16 %v2347, %v2346
      %v2366 = vpack.c.b16 %v2349, %v2348
      %v2367 = vpack.c.b16 %v2351, %v2350
      %v2369 = vsel %vm2040, %v2352, 0
      %v2372 = vsel %vm2040, %v2353, 0
      %v2375 = vsel %vm2040, %v2354, 0
      %v2378 = vsel %vm2040, %v2355, 0
      %v2381 = vsel %vm2040, %v2356, 0
      %v2384 = vsel %vm2040, %v2357, 0
      %v2387 = vsel %vm2040, %v2358, 0
      %v2390 = vsel %vm2040, %v2359, 0
      %v2393 = vsel %vm2040, %v2360, 0
      %v2396 = vsel %vm2040, %v2361, 0
      %v2399 = vsel %vm2040, %v2362, 0
      %v2402 = vsel %vm2040, %v2363, 0
      %v2405 = vsel %vm2040, %v2364, 0
      %v2408 = vsel %vm2040, %v2365, 0
      %v2411 = vsel %vm2040, %v2366, 0
      %v2414 = vsel %vm2040, %v2367, 0
      %v2417 = vsel %vm2089, %v2319, 0
      %2419 = vmatprep.subr.bf16.mxu0 0
      %2420 = vmatpush1.bf16.msra.mxu0 0
      %2421 = vmatprep.subr.bf16.mxu0 0
      %2422 = vmatpush1.bf16.msra.mxu0 0
      %2423 = vmatprep.subr.bf16.mxu0 0
      %2424 = vmatpush1.bf16.msra.mxu0 0
      %2425 = vmatprep.subr.bf16.mxu0 0
      %2426 = vmatpush1.bf16.msra.mxu0 0
      %2427 = vmatprep.subr.bf16.mxu0 0
      %2428 = vmatpush1.bf16.msra.mxu0 0
      %2429 = vmatprep.subr.bf16.mxu0 0
      %2430 = vmatpush1.bf16.msra.mxu0 0
      %2431 = vmatprep.subr.bf16.mxu0 0
      %2432 = vmatpush1.bf16.msra.mxu0 0
      %2433 = vmatprep.subr.bf16.mxu0 0
      %2434 = vmatpush1.bf16.msra.mxu0 %v2417
      %2435 = vmatprep.subr.bf16.mxu0 0
      %2436 = vmatpush2.bf16.msra.mxu0 0
      %2437 = vmatprep.subr.bf16.mxu0 0
      %2438 = vmatpush2.bf16.msra.mxu0 0
      %2439 = vmatprep.subr.bf16.mxu0 0
      %2440 = vmatpush2.bf16.msra.mxu0 0
      %2441 = vmatprep.subr.bf16.mxu0 0
      %2442 = vmatpush2.bf16.msra.mxu0 0
      %2443 = vmatprep.subr.bf16.mxu0 0
      %2444 = vmatpush2.bf16.msra.mxu0 0
      %2445 = vmatprep.subr.bf16.mxu0 0
      %2446 = vmatpush2.bf16.msra.mxu0 0
      %2447 = vmatprep.subr.bf16.mxu0 0
      %2448 = vmatpush2.bf16.msra.mxu0 0
      %2449 = vmatprep.subr.bf16.mxu0 0
      %2450 = vmatpush2.bf16.msra.mxu0 0
      %2451 = vmatprep.mubr.bf16.mxu0 0
      %2452 = vmatmul.mubr.bf16.gmra.mxu0 %v2369
      %v2453 = vpop.f32.mrf.mxu0
      %v2454 = vadd.f32 0.0, %v2453
      %v2455 = vpop.f32.mrf.mxu0
      %v2456 = vpop.f32.mrf.mxu0
      %v2457 = vadd.f32 0.0, %v2456
      %v2458 = vpop.f32.mrf.mxu0
      %2459 = vmatprep.mubr.bf16.mxu0 0
      %2460 = vmatmul.mubr.bf16.gmra.mxu0 %v2372
      %v2461 = vpop.f32.mrf.mxu0
      %v2462 = vadd.f32 0.0, %v2461
      %v2463 = vpop.f32.mrf.mxu0
      %v2464 = vpop.f32.mrf.mxu0
      %v2465 = vadd.f32 0.0, %v2464
      %v2466 = vpop.f32.mrf.mxu0
      %2467 = vmatprep.mubr.bf16.mxu0 0
      %2468 = vmatmul.mubr.bf16.gmra.mxu0 %v2375
      %v2469 = vpop.f32.mrf.mxu0
      %v2470 = vadd.f32 0.0, %v2469
      %v2471 = vpop.f32.mrf.mxu0
      %v2472 = vpop.f32.mrf.mxu0
      %v2473 = vadd.f32 0.0, %v2472
      %v2474 = vpop.f32.mrf.mxu0
      %2475 = vmatprep.mubr.bf16.mxu0 0
      %2476 = vmatmul.mubr.bf16.gmra.mxu0 %v2378
      %v2477 = vpop.f32.mrf.mxu0
      %v2478 = vadd.f32 0.0, %v2477
      %v2479 = vpop.f32.mrf.mxu0
      %v2480 = vpop.f32.mrf.mxu0
      %v2481 = vadd.f32 0.0, %v2480
      %v2482 = vpop.f32.mrf.mxu0
      %2483 = vmatprep.mubr.bf16.mxu0 0
      %2484 = vmatmul.mubr.bf16.gmra.mxu0 %v2381
      %v2485 = vpop.f32.mrf.mxu0
      %v2486 = vadd.f32 0.0, %v2485
      %v2487 = vpop.f32.mrf.mxu0
      %v2488 = vpop.f32.mrf.mxu0
      %v2489 = vadd.f32 0.0, %v2488
      %v2490 = vpop.f32.mrf.mxu0
      %2491 = vmatprep.mubr.bf16.mxu0 0
      %2492 = vmatmul.mubr.bf16.gmra.mxu0 %v2384
      %v2493 = vpop.f32.mrf.mxu0
      %v2494 = vadd.f32 0.0, %v2493
      %v2495 = vpop.f32.mrf.mxu0
      %v2496 = vpop.f32.mrf.mxu0
      %v2497 = vadd.f32 0.0, %v2496
      %v2498 = vpop.f32.mrf.mxu0
      %2499 = vmatprep.mubr.bf16.mxu0 0
      %2500 = vmatmul.mubr.bf16.gmra.mxu0 %v2387
      %v2501 = vpop.f32.mrf.mxu0
      %v2502 = vadd.f32 0.0, %v2501
      %v2503 = vpop.f32.mrf.mxu0
      %v2504 = vpop.f32.mrf.mxu0
      %v2505 = vadd.f32 0.0, %v2504
      %v2506 = vpop.f32.mrf.mxu0
      %2507 = vmatprep.mubr.bf16.mxu0 0
      %2508 = vmatmul.mubr.bf16.gmra.mxu0 %v2390
      %v2509 = vpop.f32.mrf.mxu0
      %v2510 = vadd.f32 0.0, %v2509
      %v2511 = vpop.f32.mrf.mxu0
      %v2512 = vpop.f32.mrf.mxu0
      %v2513 = vadd.f32 0.0, %v2512
      %v2514 = vpop.f32.mrf.mxu0
      %2515 = vmatprep.mubr.bf16.mxu0 0
      %2516 = vmatmul.mubr.bf16.gmra.mxu0 %v2393
      %v2517 = vpop.f32.mrf.mxu0
      %v2518 = vadd.f32 0.0, %v2517
      %v2519 = vpop.f32.mrf.mxu0
      %v2520 = vpop.f32.mrf.mxu0
      %v2521 = vadd.f32 0.0, %v2520
      %v2522 = vpop.f32.mrf.mxu0
      %2523 = vmatprep.mubr.bf16.mxu0 0
      %2524 = vmatmul.mubr.bf16.gmra.mxu0 %v2396
      %v2525 = vpop.f32.mrf.mxu0
      %v2526 = vadd.f32 0.0, %v2525
      %v2527 = vpop.f32.mrf.mxu0
      %v2528 = vpop.f32.mrf.mxu0
      %v2529 = vadd.f32 0.0, %v2528
      %v2530 = vpop.f32.mrf.mxu0
      %2531 = vmatprep.mubr.bf16.mxu0 0
      %2532 = vmatmul.mubr.bf16.gmra.mxu0 %v2399
      %v2533 = vpop.f32.mrf.mxu0
      %v2534 = vadd.f32 0.0, %v2533
      %v2535 = vpop.f32.mrf.mxu0
      %v2536 = vpop.f32.mrf.mxu0
      %v2537 = vadd.f32 0.0, %v2536
      %v2538 = vpop.f32.mrf.mxu0
      %2539 = vmatprep.mubr.bf16.mxu0 0
      %2540 = vmatmul.mubr.bf16.gmra.mxu0 %v2402
      %v2541 = vpop.f32.mrf.mxu0
      %v2542 = vadd.f32 0.0, %v2541
      %v2543 = vpop.f32.mrf.mxu0
      %v2544 = vpop.f32.mrf.mxu0
      %v2545 = vadd.f32 0.0, %v2544
      %v2546 = vpop.f32.mrf.mxu0
      %2547 = vmatprep.mubr.bf16.mxu0 0
      %2548 = vmatmul.mubr.bf16.gmra.mxu0 %v2405
      %v2549 = vpop.f32.mrf.mxu0
      %v2550 = vadd.f32 0.0, %v2549
      %v2551 = vpop.f32.mrf.mxu0
      %v2552 = vpop.f32.mrf.mxu0
      %v2553 = vadd.f32 0.0, %v2552
      %v2554 = vpop.f32.mrf.mxu0
      %2555 = vmatprep.mubr.bf16.mxu0 0
      %2556 = vmatmul.mubr.bf16.gmra.mxu0 %v2408
      %v2557 = vpop.f32.mrf.mxu0
      %v2558 = vadd.f32 0.0, %v2557
      %v2559 = vpop.f32.mrf.mxu0
      %v2560 = vpop.f32.mrf.mxu0
      %v2561 = vadd.f32 0.0, %v2560
      %v2562 = vpop.f32.mrf.mxu0
      %2563 = vmatprep.mubr.bf16.mxu0 0
      %2564 = vmatmul.mubr.bf16.gmra.mxu0 %v2411
      %v2565 = vpop.f32.mrf.mxu0
      %v2566 = vadd.f32 0.0, %v2565
      %v2567 = vpop.f32.mrf.mxu0
      %v2568 = vpop.f32.mrf.mxu0
      %v2569 = vadd.f32 0.0, %v2568
      %v2570 = vpop.f32.mrf.mxu0
      %2571 = vmatprep.mubr.bf16.mxu0 0
      %2572 = vmatmul.mubr.bf16.gmra.mxu0 %v2414
      %v2573 = vpop.f32.mrf.mxu0
      %v2574 = vadd.f32 0.0, %v2573
      %v2575 = vpop.f32.mrf.mxu0
      %v2576 = vpop.f32.mrf.mxu0
      %v2577 = vadd.f32 0.0, %v2576
      %v2578 = vpop.f32.mrf.mxu0
      %2579 = vdwg.mxu0
      %v2580 = vadd.f32 %v2286, %v2454
      %v2581 = vadd.f32 %v2287, %v2457
      %v2582 = vadd.f32 %v2288, %v2462
      %v2583 = vadd.f32 %v2289, %v2465
      %v2584 = vadd.f32 %v2290, %v2470
      %v2585 = vadd.f32 %v2291, %v2473
      %v2586 = vadd.f32 %v2292, %v2478
      %v2587 = vadd.f32 %v2293, %v2481
      %v2588 = vadd.f32 %v2294, %v2486
      %v2589 = vadd.f32 %v2295, %v2489
      %v2590 = vadd.f32 %v2296, %v2494
      %v2591 = vadd.f32 %v2297, %v2497
      %v2592 = vadd.f32 %v2298, %v2502
      %v2593 = vadd.f32 %v2299, %v2505
      %v2594 = vadd.f32 %v2300, %v2510
      %v2595 = vadd.f32 %v2301, %v2513
      %v2596 = vadd.f32 %v2302, %v2518
      %v2597 = vadd.f32 %v2303, %v2521
      %v2598 = vadd.f32 %v2304, %v2526
      %v2599 = vadd.f32 %v2305, %v2529
      %v2600 = vadd.f32 %v2306, %v2534
      %v2601 = vadd.f32 %v2307, %v2537
      %v2602 = vadd.f32 %v2308, %v2542
      %v2603 = vadd.f32 %v2309, %v2545
      %v2604 = vadd.f32 %v2310, %v2550
      %v2605 = vadd.f32 %v2311, %v2553
      %v2606 = vadd.f32 %v2312, %v2558
      %v2607 = vadd.f32 %v2313, %v2561
      %v2608 = vadd.f32 %v2314, %v2566
      %v2609 = vadd.f32 %v2315, %v2569
      %v2610 = vadd.f32 %v2316, %v2574
      %v2611 = vadd.f32 %v2317, %v2577
      %2612 = vst [vmem:[#allocation2] sm:$0xff] %v2580
      %2613 = vst [vmem:[#allocation2 + $0x8] sm:$0xff] %v2581
      %2614 = vst [vmem:[#allocation2 + $0x10] sm:$0xff] %v2582
      %2615 = vst [vmem:[#allocation2 + $0x18] sm:$0xff] %v2583
      %2616 = vst [vmem:[#allocation2 + $0x20] sm:$0xff] %v2584
      %2617 = vst [vmem:[#allocation2 + $0x28] sm:$0xff] %v2585
      %2618 = vst [vmem:[#allocation2 + $0x30] sm:$0xff] %v2586
      %2619 = vst [vmem:[#allocation2 + $0x38] sm:$0xff] %v2587
      %2620 = vst [vmem:[#allocation2 + $0x40] sm:$0xff] %v2588
      %2621 = vst [vmem:[#allocation2 + $0x48] sm:$0xff] %v2589
      %2622 = vst [vmem:[#allocation2 + $0x50] sm:$0xff] %v2590
      %2623 = vst [vmem:[#allocation2 + $0x58] sm:$0xff] %v2591
      %2624 = vst [vmem:[#allocation2 + $0x60] sm:$0xff] %v2592
      %2625 = vst [vmem:[#allocation2 + $0x68] sm:$0xff] %v2593
      %2626 = vst [vmem:[#allocation2 + $0x70] sm:$0xff] %v2594
      %2627 = vst [vmem:[#allocation2 + $0x78] sm:$0xff] %v2595
      %2628 = vst [vmem:[#allocation2 + $0x80] sm:$0xff] %v2596
      %2629 = vst [vmem:[#allocation2 + $0x88] sm:$0xff] %v2597
      %2630 = vst [vmem:[#allocation2 + $0x90] sm:$0xff] %v2598
      %2631 = vst [vmem:[#allocation2 + $0x98] sm:$0xff] %v2599
      %2632 = vst [vmem:[#allocation2 + $0xa0] sm:$0xff] %v2600
      %2633 = vst [vmem:[#allocation2 + $0xa8] sm:$0xff] %v2601
      %2634 = vst [vmem:[#allocation2 + $0xb0] sm:$0xff] %v2602
      %2635 = vst [vmem:[#allocation2 + $0xb8] sm:$0xff] %v2603
      %2636 = vst [vmem:[#allocation2 + $0xc0] sm:$0xff] %v2604
      %2637 = vst [vmem:[#allocation2 + $0xc8] sm:$0xff] %v2605
      %2638 = vst [vmem:[#allocation2 + $0xd0] sm:$0xff] %v2606
      %2639 = vst [vmem:[#allocation2 + $0xd8] sm:$0xff] %v2607
      %2640 = vst [vmem:[#allocation2 + $0xe0] sm:$0xff] %v2608
      %2641 = vst [vmem:[#allocation2 + $0xe8] sm:$0xff] %v2609
      %2642 = vst [vmem:[#allocation2 + $0xf0] sm:$0xff] %v2610
      %2643 = vst [vmem:[#allocation2 + $0xf8] sm:$0xff] %v2611
      %v2644 = vld [vmem:[#allocation2] sm:$0xff]
      %v2645 = vld [vmem:[#allocation2 + $0x8] sm:$0xff]
      %v2646 = vld [vmem:[#allocation2 + $0x10] sm:$0xff]
      %v2647 = vld [vmem:[#allocation2 + $0x18] sm:$0xff]
      %v2648 = vld [vmem:[#allocation2 + $0x20] sm:$0xff]
      %v2649 = vld [vmem:[#allocation2 + $0x28] sm:$0xff]
      %v2650 = vld [vmem:[#allocation2 + $0x30] sm:$0xff]
      %v2651 = vld [vmem:[#allocation2 + $0x38] sm:$0xff]
      %v2652 = vld [vmem:[#allocation2 + $0x40] sm:$0xff]
      %v2653 = vld [vmem:[#allocation2 + $0x48] sm:$0xff]
      %v2654 = vld [vmem:[#allocation2 + $0x50] sm:$0xff]
      %v2655 = vld [vmem:[#allocation2 + $0x58] sm:$0xff]
      %v2656 = vld [vmem:[#allocation2 + $0x60] sm:$0xff]
      %v2657 = vld [vmem:[#allocation2 + $0x68] sm:$0xff]
      %v2658 = vld [vmem:[#allocation2 + $0x70] sm:$0xff]
      %v2659 = vld [vmem:[#allocation2 + $0x78] sm:$0xff]
      %v2660 = vld [vmem:[#allocation2 + $0x80] sm:$0xff]
      %v2661 = vld [vmem:[#allocation2 + $0x88] sm:$0xff]
      %v2662 = vld [vmem:[#allocation2 + $0x90] sm:$0xff]
      %v2663 = vld [vmem:[#allocation2 + $0x98] sm:$0xff]
      %v2664 = vld [vmem:[#allocation2 + $0xa0] sm:$0xff]
      %v2665 = vld [vmem:[#allocation2 + $0xa8] sm:$0xff]
      %v2666 = vld [vmem:[#allocation2 + $0xb0] sm:$0xff]
      %v2667 = vld [vmem:[#allocation2 + $0xb8] sm:$0xff]
      %v2668 = vld [vmem:[#allocation2 + $0xc0] sm:$0xff]
      %v2669 = vld [vmem:[#allocation2 + $0xc8] sm:$0xff]
      %v2670 = vld [vmem:[#allocation2 + $0xd0] sm:$0xff]
      %v2671 = vld [vmem:[#allocation2 + $0xd8] sm:$0xff]
      %v2672 = vld [vmem:[#allocation2 + $0xe0] sm:$0xff]
      %v2673 = vld [vmem:[#allocation2 + $0xe8] sm:$0xff]
      %v2674 = vld [vmem:[#allocation2 + $0xf0] sm:$0xff]
      %v2675 = vld [vmem:[#allocation2 + $0xf8] sm:$0xff]
      %s2676 = scalar_lea.vmem %s1, 4
      %v2677 = vld [vmem:[%s2676] sm:$0x3]
      %v2678 = vunpack.c.l.b16 %v690
      %v2679 = vunpack.c.l.b16 %v693
      %v2680 = vunpack.c.l.b16 %v697
      %v2681 = vunpack.c.l.b16 %v700
      %v2682 = vunpack.c.l.b16 %v704
      %v2683 = vunpack.c.l.b16 %v707
      %v2684 = vunpack.c.l.b16 %v711
      %v2685 = vunpack.c.l.b16 %v714
      %v2686 = vunpack.c.l.b16 %v718
      %v2687 = vunpack.c.l.b16 %v721
      %v2688 = vunpack.c.l.b16 %v725
      %v2689 = vunpack.c.l.b16 %v728
      %v2690 = vunpack.c.l.b16 %v732
      %v2691 = vunpack.c.l.b16 %v735
      %v2692 = vunpack.c.l.b16 %v739
      %v2693 = vunpack.c.l.b16 %v742
      %v2694 = vunpack.c.l.b16 %v746
      %v2695 = vunpack.c.l.b16 %v749
      %v2696 = vunpack.c.l.b16 %v753
      %v2697 = vunpack.c.l.b16 %v756
      %v2698 = vunpack.c.l.b16 %v760
      %v2699 = vunpack.c.l.b16 %v763
      %v2700 = vunpack.c.l.b16 %v767
      %v2701 = vunpack.c.l.b16 %v770
      %v2702 = vunpack.c.l.b16 %v774
      %v2703 = vunpack.c.l.b16 %v777
      %v2704 = vunpack.c.l.b16 %v781
      %v2705 = vunpack.c.l.b16 %v784
      %v2706 = vunpack.c.l.b16 %v788
      %v2707 = vunpack.c.l.b16 %v791
      %v2708 = vunpack.c.l.b16 %v795
      %v2709 = vunpack.c.l.b16 %v798
      %v2710 = vpack.c.b16 %v2679, %v2678
      %v2711 = vpack.c.b16 %v2681, %v2680
      %v2712 = vpack.c.b16 %v2683, %v2682
      %v2713 = vpack.c.b16 %v2685, %v2684
      %v2714 = vpack.c.b16 %v2687, %v2686
      %v2715 = vpack.c.b16 %v2689, %v2688
      %v2716 = vpack.c.b16 %v2691, %v2690
      %v2717 = vpack.c.b16 %v2693, %v2692
      %v2718 = vpack.c.b16 %v2695, %v2694
      %v2719 = vpack.c.b16 %v2697, %v2696
      %v2720 = vpack.c.b16 %v2699, %v2698
      %v2721 = vpack.c.b16 %v2701, %v2700
      %v2722 = vpack.c.b16 %v2703, %v2702
      %v2723 = vpack.c.b16 %v2705, %v2704
      %v2724 = vpack.c.b16 %v2707, %v2706
      %v2725 = vpack.c.b16 %v2709, %v2708
      %v2727 = vsel %vm2040, %v2710, 0
      %v2730 = vsel %vm2040, %v2711, 0
      %v2733 = vsel %vm2040, %v2712, 0
      %v2736 = vsel %vm2040, %v2713, 0
      %v2739 = vsel %vm2040, %v2714, 0
      %v2742 = vsel %vm2040, %v2715, 0
      %v2745 = vsel %vm2040, %v2716, 0
      %v2748 = vsel %vm2040, %v2717, 0
      %v2751 = vsel %vm2040, %v2718, 0
      %v2754 = vsel %vm2040, %v2719, 0
      %v2757 = vsel %vm2040, %v2720, 0
      %v2760 = vsel %vm2040, %v2721, 0
      %v2763 = vsel %vm2040, %v2722, 0
      %v2766 = vsel %vm2040, %v2723, 0
      %v2769 = vsel %vm2040, %v2724, 0
      %v2772 = vsel %vm2040, %v2725, 0
      %v2775 = vsel %vm2089, %v2677, 0
      %2777 = vmatprep.subr.bf16.mxu0 0
      %2778 = vmatpush1.bf16.msra.mxu0 0
      %2779 = vmatprep.subr.bf16.mxu0 0
      %2780 = vmatpush1.bf16.msra.mxu0 0
      %2781 = vmatprep.subr.bf16.mxu0 0
      %2782 = vmatpush1.bf16.msra.mxu0 0
      %2783 = vmatprep.subr.bf16.mxu0 0
      %2784 = vmatpush1.bf16.msra.mxu0 0
      %2785 = vmatprep.subr.bf16.mxu0 0
      %2786 = vmatpush1.bf16.msra.mxu0 0
      %2787 = vmatprep.subr.bf16.mxu0 0
      %2788 = vmatpush1.bf16.msra.mxu0 0
      %2789 = vmatprep.subr.bf16.mxu0 0
      %2790 = vmatpush1.bf16.msra.mxu0 0
      %2791 = vmatprep.subr.bf16.mxu0 0
      %2792 = vmatpush1.bf16.msra.mxu0 %v2775
      %2793 = vmatprep.subr.bf16.mxu0 0
      %2794 = vmatpush2.bf16.msra.mxu0 0
      %2795 = vmatprep.subr.bf16.mxu0 0
      %2796 = vmatpush2.bf16.msra.mxu0 0
      %2797 = vmatprep.subr.bf16.mxu0 0
      %2798 = vmatpush2.bf16.msra.mxu0 0
      %2799 = vmatprep.subr.bf16.mxu0 0
      %2800 = vmatpush2.bf16.msra.mxu0 0
      %2801 = vmatprep.subr.bf16.mxu0 0
      %2802 = vmatpush2.bf16.msra.mxu0 0
      %2803 = vmatprep.subr.bf16.mxu0 0
      %2804 = vmatpush2.bf16.msra.mxu0 0
      %2805 = vmatprep.subr.bf16.mxu0 0
      %2806 = vmatpush2.bf16.msra.mxu0 0
      %2807 = vmatprep.subr.bf16.mxu0 0
      %2808 = vmatpush2.bf16.msra.mxu0 0
      %2809 = vmatprep.mubr.bf16.mxu0 0
      %2810 = vmatmul.mubr.bf16.gmra.mxu0 %v2727
      %v2811 = vpop.f32.mrf.mxu0
      %v2812 = vadd.f32 0.0, %v2811
      %v2813 = vpop.f32.mrf.mxu0
      %v2814 = vpop.f32.mrf.mxu0
      %v2815 = vadd.f32 0.0, %v2814
      %v2816 = vpop.f32.mrf.mxu0
      %2817 = vmatprep.mubr.bf16.mxu0 0
      %2818 = vmatmul.mubr.bf16.gmra.mxu0 %v2730
      %v2819 = vpop.f32.mrf.mxu0
      %v2820 = vadd.f32 0.0, %v2819
      %v2821 = vpop.f32.mrf.mxu0
      %v2822 = vpop.f32.mrf.mxu0
      %v2823 = vadd.f32 0.0, %v2822
      %v2824 = vpop.f32.mrf.mxu0
      %2825 = vmatprep.mubr.bf16.mxu0 0
      %2826 = vmatmul.mubr.bf16.gmra.mxu0 %v2733
      %v2827 = vpop.f32.mrf.mxu0
      %v2828 = vadd.f32 0.0, %v2827
      %v2829 = vpop.f32.mrf.mxu0
      %v2830 = vpop.f32.mrf.mxu0
      %v2831 = vadd.f32 0.0, %v2830
      %v2832 = vpop.f32.mrf.mxu0
      %2833 = vmatprep.mubr.bf16.mxu0 0
      %2834 = vmatmul.mubr.bf16.gmra.mxu0 %v2736
      %v2835 = vpop.f32.mrf.mxu0
      %v2836 = vadd.f32 0.0, %v2835
      %v2837 = vpop.f32.mrf.mxu0
      %v2838 = vpop.f32.mrf.mxu0
      %v2839 = vadd.f32 0.0, %v2838
      %v2840 = vpop.f32.mrf.mxu0
      %2841 = vmatprep.mubr.bf16.mxu0 0
      %2842 = vmatmul.mubr.bf16.gmra.mxu0 %v2739
      %v2843 = vpop.f32.mrf.mxu0
      %v2844 = vadd.f32 0.0, %v2843
      %v2845 = vpop.f32.mrf.mxu0
      %v2846 = vpop.f32.mrf.mxu0
      %v2847 = vadd.f32 0.0, %v2846
      %v2848 = vpop.f32.mrf.mxu0
      %2849 = vmatprep.mubr.bf16.mxu0 0
      %2850 = vmatmul.mubr.bf16.gmra.mxu0 %v2742
      %v2851 = vpop.f32.mrf.mxu0
      %v2852 = vadd.f32 0.0, %v2851
      %v2853 = vpop.f32.mrf.mxu0
      %v2854 = vpop.f32.mrf.mxu0
      %v2855 = vadd.f32 0.0, %v2854
      %v2856 = vpop.f32.mrf.mxu0
      %2857 = vmatprep.mubr.bf16.mxu0 0
      %2858 = vmatmul.mubr.bf16.gmra.mxu0 %v2745
      %v2859 = vpop.f32.mrf.mxu0
      %v2860 = vadd.f32 0.0, %v2859
      %v2861 = vpop.f32.mrf.mxu0
      %v2862 = vpop.f32.mrf.mxu0
      %v2863 = vadd.f32 0.0, %v2862
      %v2864 = vpop.f32.mrf.mxu0
      %2865 = vmatprep.mubr.bf16.mxu0 0
      %2866 = vmatmul.mubr.bf16.gmra.mxu0 %v2748
      %v2867 = vpop.f32.mrf.mxu0
      %v2868 = vadd.f32 0.0, %v2867
      %v2869 = vpop.f32.mrf.mxu0
      %v2870 = vpop.f32.mrf.mxu0
      %v2871 = vadd.f32 0.0, %v2870
      %v2872 = vpop.f32.mrf.mxu0
      %2873 = vmatprep.mubr.bf16.mxu0 0
      %2874 = vmatmul.mubr.bf16.gmra.mxu0 %v2751
      %v2875 = vpop.f32.mrf.mxu0
      %v2876 = vadd.f32 0.0, %v2875
      %v2877 = vpop.f32.mrf.mxu0
      %v2878 = vpop.f32.mrf.mxu0
      %v2879 = vadd.f32 0.0, %v2878
      %v2880 = vpop.f32.mrf.mxu0
      %2881 = vmatprep.mubr.bf16.mxu0 0
      %2882 = vmatmul.mubr.bf16.gmra.mxu0 %v2754
      %v2883 = vpop.f32.mrf.mxu0
      %v2884 = vadd.f32 0.0, %v2883
      %v2885 = vpop.f32.mrf.mxu0
      %v2886 = vpop.f32.mrf.mxu0
      %v2887 = vadd.f32 0.0, %v2886
      %v2888 = vpop.f32.mrf.mxu0
      %2889 = vmatprep.mubr.bf16.mxu0 0
      %2890 = vmatmul.mubr.bf16.gmra.mxu0 %v2757
      %v2891 = vpop.f32.mrf.mxu0
      %v2892 = vadd.f32 0.0, %v2891
      %v2893 = vpop.f32.mrf.mxu0
      %v2894 = vpop.f32.mrf.mxu0
      %v2895 = vadd.f32 0.0, %v2894
      %v2896 = vpop.f32.mrf.mxu0
      %2897 = vmatprep.mubr.bf16.mxu0 0
      %2898 = vmatmul.mubr.bf16.gmra.mxu0 %v2760
      %v2899 = vpop.f32.mrf.mxu0
      %v2900 = vadd.f32 0.0, %v2899
      %v2901 = vpop.f32.mrf.mxu0
      %v2902 = vpop.f32.mrf.mxu0
      %v2903 = vadd.f32 0.0, %v2902
      %v2904 = vpop.f32.mrf.mxu0
      %2905 = vmatprep.mubr.bf16.mxu0 0
      %2906 = vmatmul.mubr.bf16.gmra.mxu0 %v2763
      %v2907 = vpop.f32.mrf.mxu0
      %v2908 = vadd.f32 0.0, %v2907
      %v2909 = vpop.f32.mrf.mxu0
      %v2910 = vpop.f32.mrf.mxu0
      %v2911 = vadd.f32 0.0, %v2910
      %v2912 = vpop.f32.mrf.mxu0
      %2913 = vmatprep.mubr.bf16.mxu0 0
      %2914 = vmatmul.mubr.bf16.gmra.mxu0 %v2766
      %v2915 = vpop.f32.mrf.mxu0
      %v2916 = vadd.f32 0.0, %v2915
      %v2917 = vpop.f32.mrf.mxu0
      %v2918 = vpop.f32.mrf.mxu0
      %v2919 = vadd.f32 0.0, %v2918
      %v2920 = vpop.f32.mrf.mxu0
      %2921 = vmatprep.mubr.bf16.mxu0 0
      %2922 = vmatmul.mubr.bf16.gmra.mxu0 %v2769
      %v2923 = vpop.f32.mrf.mxu0
      %v2924 = vadd.f32 0.0, %v2923
      %v2925 = vpop.f32.mrf.mxu0
      %v2926 = vpop.f32.mrf.mxu0
      %v2927 = vadd.f32 0.0, %v2926
      %v2928 = vpop.f32.mrf.mxu0
      %2929 = vmatprep.mubr.bf16.mxu0 0
      %2930 = vmatmul.mubr.bf16.gmra.mxu0 %v2772
      %v2931 = vpop.f32.mrf.mxu0
      %v2932 = vadd.f32 0.0, %v2931
      %v2933 = vpop.f32.mrf.mxu0
      %v2934 = vpop.f32.mrf.mxu0
      %v2935 = vadd.f32 0.0, %v2934
      %v2936 = vpop.f32.mrf.mxu0
      %2937 = vdwg.mxu0
      %v2938 = vadd.f32 %v2644, %v2812
      %v2939 = vadd.f32 %v2645, %v2815
      %v2940 = vadd.f32 %v2646, %v2820
      %v2941 = vadd.f32 %v2647, %v2823
      %v2942 = vadd.f32 %v2648, %v2828
      %v2943 = vadd.f32 %v2649, %v2831
      %v2944 = vadd.f32 %v2650, %v2836
      %v2945 = vadd.f32 %v2651, %v2839
      %v2946 = vadd.f32 %v2652, %v2844
      %v2947 = vadd.f32 %v2653, %v2847
      %v2948 = vadd.f32 %v2654, %v2852
      %v2949 = vadd.f32 %v2655, %v2855
      %v2950 = vadd.f32 %v2656, %v2860
      %v2951 = vadd.f32 %v2657, %v2863
      %v2952 = vadd.f32 %v2658, %v2868
      %v2953 = vadd.f32 %v2659, %v2871
      %v2954 = vadd.f32 %v2660, %v2876
      %v2955 = vadd.f32 %v2661, %v2879
      %v2956 = vadd.f32 %v2662, %v2884
      %v2957 = vadd.f32 %v2663, %v2887
      %v2958 = vadd.f32 %v2664, %v2892
      %v2959 = vadd.f32 %v2665, %v2895
      %v2960 = vadd.f32 %v2666, %v2900
      %v2961 = vadd.f32 %v2667, %v2903
      %v2962 = vadd.f32 %v2668, %v2908
      %v2963 = vadd.f32 %v2669, %v2911
      %v2964 = vadd.f32 %v2670, %v2916
      %v2965 = vadd.f32 %v2671, %v2919
      %v2966 = vadd.f32 %v2672, %v2924
      %v2967 = vadd.f32 %v2673, %v2927
      %v2968 = vadd.f32 %v2674, %v2932
      %v2969 = vadd.f32 %v2675, %v2935
      %2970 = vst [vmem:[#allocation2] sm:$0xff] %v2938
      %2971 = vst [vmem:[#allocation2 + $0x8] sm:$0xff] %v2939
      %2972 = vst [vmem:[#allocation2 + $0x10] sm:$0xff] %v2940
      %2973 = vst [vmem:[#allocation2 + $0x18] sm:$0xff] %v2941
      %2974 = vst [vmem:[#allocation2 + $0x20] sm:$0xff] %v2942
      %2975 = vst [vmem:[#allocation2 + $0x28] sm:$0xff] %v2943
      %2976 = vst [vmem:[#allocation2 + $0x30] sm:$0xff] %v2944
      %2977 = vst [vmem:[#allocation2 + $0x38] sm:$0xff] %v2945
      %2978 = vst [vmem:[#allocation2 + $0x40] sm:$0xff] %v2946
      %2979 = vst [vmem:[#allocation2 + $0x48] sm:$0xff] %v2947
      %2980 = vst [vmem:[#allocation2 + $0x50] sm:$0xff] %v2948
      %2981 = vst [vmem:[#allocation2 + $0x58] sm:$0xff] %v2949
      %2982 = vst [vmem:[#allocation2 + $0x60] sm:$0xff] %v2950
      %2983 = vst [vmem:[#allocation2 + $0x68] sm:$0xff] %v2951
      %2984 = vst [vmem:[#allocation2 + $0x70] sm:$0xff] %v2952
      %2985 = vst [vmem:[#allocation2 + $0x78] sm:$0xff] %v2953
      %2986 = vst [vmem:[#allocation2 + $0x80] sm:$0xff] %v2954
      %2987 = vst [vmem:[#allocation2 + $0x88] sm:$0xff] %v2955
      %2988 = vst [vmem:[#allocation2 + $0x90] sm:$0xff] %v2956
      %2989 = vst [vmem:[#allocation2 + $0x98] sm:$0xff] %v2957
      %2990 = vst [vmem:[#allocation2 + $0xa0] sm:$0xff] %v2958
      %2991 = vst [vmem:[#allocation2 + $0xa8] sm:$0xff] %v2959
      %2992 = vst [vmem:[#allocation2 + $0xb0] sm:$0xff] %v2960
      %2993 = vst [vmem:[#allocation2 + $0xb8] sm:$0xff] %v2961
      %2994 = vst [vmem:[#allocation2 + $0xc0] sm:$0xff] %v2962
      %2995 = vst [vmem:[#allocation2 + $0xc8] sm:$0xff] %v2963
      %2996 = vst [vmem:[#allocation2 + $0xd0] sm:$0xff] %v2964
      %2997 = vst [vmem:[#allocation2 + $0xd8] sm:$0xff] %v2965
      %2998 = vst [vmem:[#allocation2 + $0xe0] sm:$0xff] %v2966
      %2999 = vst [vmem:[#allocation2 + $0xe8] sm:$0xff] %v2967
      %3000 = vst [vmem:[#allocation2 + $0xf0] sm:$0xff] %v2968
      %3001 = vst [vmem:[#allocation2 + $0xf8] sm:$0xff] %v2969
      %v3002 = vld [vmem:[#allocation2] sm:$0xff]
      %v3003 = vld [vmem:[#allocation2 + $0x8] sm:$0xff]
      %v3004 = vld [vmem:[#allocation2 + $0x10] sm:$0xff]
      %v3005 = vld [vmem:[#allocation2 + $0x18] sm:$0xff]
      %v3006 = vld [vmem:[#allocation2 + $0x20] sm:$0xff]
      %v3007 = vld [vmem:[#allocation2 + $0x28] sm:$0xff]
      %v3008 = vld [vmem:[#allocation2 + $0x30] sm:$0xff]
      %v3009 = vld [vmem:[#allocation2 + $0x38] sm:$0xff]
      %v3010 = vld [vmem:[#allocation2 + $0x40] sm:$0xff]
      %v3011 = vld [vmem:[#allocation2 + $0x48] sm:$0xff]
      %v3012 = vld [vmem:[#allocation2 + $0x50] sm:$0xff]
      %v3013 = vld [vmem:[#allocation2 + $0x58] sm:$0xff]
      %v3014 = vld [vmem:[#allocation2 + $0x60] sm:$0xff]
      %v3015 = vld [vmem:[#allocation2 + $0x68] sm:$0xff]
      %v3016 = vld [vmem:[#allocation2 + $0x70] sm:$0xff]
      %v3017 = vld [vmem:[#allocation2 + $0x78] sm:$0xff]
      %v3018 = vld [vmem:[#allocation2 + $0x80] sm:$0xff]
      %v3019 = vld [vmem:[#allocation2 + $0x88] sm:$0xff]
      %v3020 = vld [vmem:[#allocation2 + $0x90] sm:$0xff]
      %v3021 = vld [vmem:[#allocation2 + $0x98] sm:$0xff]
      %v3022 = vld [vmem:[#allocation2 + $0xa0] sm:$0xff]
      %v3023 = vld [vmem:[#allocation2 + $0xa8] sm:$0xff]
      %v3024 = vld [vmem:[#allocation2 + $0xb0] sm:$0xff]
      %v3025 = vld [vmem:[#allocation2 + $0xb8] sm:$0xff]
      %v3026 = vld [vmem:[#allocation2 + $0xc0] sm:$0xff]
      %v3027 = vld [vmem:[#allocation2 + $0xc8] sm:$0xff]
      %v3028 = vld [vmem:[#allocation2 + $0xd0] sm:$0xff]
      %v3029 = vld [vmem:[#allocation2 + $0xd8] sm:$0xff]
      %v3030 = vld [vmem:[#allocation2 + $0xe0] sm:$0xff]
      %v3031 = vld [vmem:[#allocation2 + $0xe8] sm:$0xff]
      %v3032 = vld [vmem:[#allocation2 + $0xf0] sm:$0xff]
      %v3033 = vld [vmem:[#allocation2 + $0xf8] sm:$0xff]
      %s3034 = scalar_lea.vmem %s1, 6
      %v3035 = vld [vmem:[%s3034] sm:$0x3]
      %v3036 = vunpack.c.l.b16 %v803
      %v3037 = vunpack.c.l.b16 %v804
      %v3038 = vunpack.c.l.b16 %v806
      %v3039 = vunpack.c.l.b16 %v807
      %v3040 = vunpack.c.l.b16 %v809
      %v3041 = vunpack.c.l.b16 %v810
      %v3042 = vunpack.c.l.b16 %v812
      %v3043 = vunpack.c.l.b16 %v813
      %v3044 = vunpack.c.l.b16 %v815
      %v3045 = vunpack.c.l.b16 %v816
      %v3046 = vunpack.c.l.b16 %v818
      %v3047 = vunpack.c.l.b16 %v819
      %v3048 = vunpack.c.l.b16 %v821
      %v3049 = vunpack.c.l.b16 %v822
      %v3050 = vunpack.c.l.b16 %v824
      %v3051 = vunpack.c.l.b16 %v825
      %v3052 = vunpack.c.l.b16 %v827
      %v3053 = vunpack.c.l.b16 %v828
      %v3054 = vunpack.c.l.b16 %v830
      %v3055 = vunpack.c.l.b16 %v831
      %v3056 = vunpack.c.l.b16 %v833
      %v3057 = vunpack.c.l.b16 %v834
      %v3058 = vunpack.c.l.b16 %v836
      %v3059 = vunpack.c.l.b16 %v837
      %v3060 = vunpack.c.l.b16 %v839
      %v3061 = vunpack.c.l.b16 %v840
      %v3062 = vunpack.c.l.b16 %v842
      %v3063 = vunpack.c.l.b16 %v843
      %v3064 = vunpack.c.l.b16 %v845
      %v3065 = vunpack.c.l.b16 %v846
      %v3066 = vunpack.c.l.b16 %v848
      %v3067 = vunpack.c.l.b16 %v849
      %v3068 = vpack.c.b16 %v3037, %v3036
      %v3069 = vpack.c.b16 %v3039, %v3038
      %v3070 = vpack.c.b16 %v3041, %v3040
      %v3071 = vpack.c.b16 %v3043, %v3042
      %v3072 = vpack.c.b16 %v3045, %v3044
      %v3073 = vpack.c.b16 %v3047, %v3046
      %v3074 = vpack.c.b16 %v3049, %v3048
      %v3075 = vpack.c.b16 %v3051, %v3050
      %v3076 = vpack.c.b16 %v3053, %v3052
      %v3077 = vpack.c.b16 %v3055, %v3054
      %v3078 = vpack.c.b16 %v3057, %v3056
      %v3079 = vpack.c.b16 %v3059, %v3058
      %v3080 = vpack.c.b16 %v3061, %v3060
      %v3081 = vpack.c.b16 %v3063, %v3062
      %v3082 = vpack.c.b16 %v3065, %v3064
      %v3083 = vpack.c.b16 %v3067, %v3066
      %v3085 = vsel %vm2040, %v3068, 0
      %v3088 = vsel %vm2040, %v3069, 0
      %v3091 = vsel %vm2040, %v3070, 0
      %v3094 = vsel %vm2040, %v3071, 0
      %v3097 = vsel %vm2040, %v3072, 0
      %v3100 = vsel %vm2040, %v3073, 0
      %v3103 = vsel %vm2040, %v3074, 0
      %v3106 = vsel %vm2040, %v3075, 0
      %v3109 = vsel %vm2040, %v3076, 0
      %v3112 = vsel %vm2040, %v3077, 0
      %v3115 = vsel %vm2040, %v3078, 0
      %v3118 = vsel %vm2040, %v3079, 0
      %v3121 = vsel %vm2040, %v3080, 0
      %v3124 = vsel %vm2040, %v3081, 0
      %v3127 = vsel %vm2040, %v3082, 0
      %v3130 = vsel %vm2040, %v3083, 0
      %v3133 = vsel %vm2089, %v3035, 0
      %3135 = vmatprep.subr.bf16.mxu0 0
      %3136 = vmatpush1.bf16.msra.mxu0 0
      %3137 = vmatprep.subr.bf16.mxu0 0
      %3138 = vmatpush1.bf16.msra.mxu0 0
      %3139 = vmatprep.subr.bf16.mxu0 0
      %3140 = vmatpush1.bf16.msra.mxu0 0
      %3141 = vmatprep.subr.bf16.mxu0 0
      %3142 = vmatpush1.bf16.msra.mxu0 0
      %3143 = vmatprep.subr.bf16.mxu0 0
      %3144 = vmatpush1.bf16.msra.mxu0 0
      %3145 = vmatprep.subr.bf16.mxu0 0
      %3146 = vmatpush1.bf16.msra.mxu0 0
      %3147 = vmatprep.subr.bf16.mxu0 0
      %3148 = vmatpush1.bf16.msra.mxu0 0
      %3149 = vmatprep.subr.bf16.mxu0 0
      %3150 = vmatpush1.bf16.msra.mxu0 %v3133
      %3151 = vmatprep.subr.bf16.mxu0 0
      %3152 = vmatpush2.bf16.msra.mxu0 0
      %3153 = vmatprep.subr.bf16.mxu0 0
      %3154 = vmatpush2.bf16.msra.mxu0 0
      %3155 = vmatprep.subr.bf16.mxu0 0
      %3156 = vmatpush2.bf16.msra.mxu0 0
      %3157 = vmatprep.subr.bf16.mxu0 0
      %3158 = vmatpush2.bf16.msra.mxu0 0
      %3159 = vmatprep.subr.bf16.mxu0 0
      %3160 = vmatpush2.bf16.msra.mxu0 0
      %3161 = vmatprep.subr.bf16.mxu0 0
      %3162 = vmatpush2.bf16.msra.mxu0 0
      %3163 = vmatprep.subr.bf16.mxu0 0
      %3164 = vmatpush2.bf16.msra.mxu0 0
      %3165 = vmatprep.subr.bf16.mxu0 0
      %3166 = vmatpush2.bf16.msra.mxu0 0
      %3167 = vmatprep.mubr.bf16.mxu0 0
      %3168 = vmatmul.mubr.bf16.gmra.mxu0 %v3085
      %v3169 = vpop.f32.mrf.mxu0
      %v3170 = vadd.f32 0.0, %v3169
      %v3171 = vpop.f32.mrf.mxu0
      %v3172 = vpop.f32.mrf.mxu0
      %v3173 = vadd.f32 0.0, %v3172
      %v3174 = vpop.f32.mrf.mxu0
      %3175 = vmatprep.mubr.bf16.mxu0 0
      %3176 = vmatmul.mubr.bf16.gmra.mxu0 %v3088
      %v3177 = vpop.f32.mrf.mxu0
      %v3178 = vadd.f32 0.0, %v3177
      %v3179 = vpop.f32.mrf.mxu0
      %v3180 = vpop.f32.mrf.mxu0
      %v3181 = vadd.f32 0.0, %v3180
      %v3182 = vpop.f32.mrf.mxu0
      %3183 = vmatprep.mubr.bf16.mxu0 0
      %3184 = vmatmul.mubr.bf16.gmra.mxu0 %v3091
      %v3185 = vpop.f32.mrf.mxu0
      %v3186 = vadd.f32 0.0, %v3185
      %v3187 = vpop.f32.mrf.mxu0
      %v3188 = vpop.f32.mrf.mxu0
      %v3189 = vadd.f32 0.0, %v3188
      %v3190 = vpop.f32.mrf.mxu0
      %3191 = vmatprep.mubr.bf16.mxu0 0
      %3192 = vmatmul.mubr.bf16.gmra.mxu0 %v3094
      %v3193 = vpop.f32.mrf.mxu0
      %v3194 = vadd.f32 0.0, %v3193
      %v3195 = vpop.f32.mrf.mxu0
      %v3196 = vpop.f32.mrf.mxu0
      %v3197 = vadd.f32 0.0, %v3196
      %v3198 = vpop.f32.mrf.mxu0
      %3199 = vmatprep.mubr.bf16.mxu0 0
      %3200 = vmatmul.mubr.bf16.gmra.mxu0 %v3097
      %v3201 = vpop.f32.mrf.mxu0
      %v3202 = vadd.f32 0.0, %v3201
      %v3203 = vpop.f32.mrf.mxu0
      %v3204 = vpop.f32.mrf.mxu0
      %v3205 = vadd.f32 0.0, %v3204
      %v3206 = vpop.f32.mrf.mxu0
      %3207 = vmatprep.mubr.bf16.mxu0 0
      %3208 = vmatmul.mubr.bf16.gmra.mxu0 %v3100
      %v3209 = vpop.f32.mrf.mxu0
      %v3210 = vadd.f32 0.0, %v3209
      %v3211 = vpop.f32.mrf.mxu0
      %v3212 = vpop.f32.mrf.mxu0
      %v3213 = vadd.f32 0.0, %v3212
      %v3214 = vpop.f32.mrf.mxu0
      %3215 = vmatprep.mubr.bf16.mxu0 0
      %3216 = vmatmul.mubr.bf16.gmra.mxu0 %v3103
      %v3217 = vpop.f32.mrf.mxu0
      %v3218 = vadd.f32 0.0, %v3217
      %v3219 = vpop.f32.mrf.mxu0
      %v3220 = vpop.f32.mrf.mxu0
      %v3221 = vadd.f32 0.0, %v3220
      %v3222 = vpop.f32.mrf.mxu0
      %3223 = vmatprep.mubr.bf16.mxu0 0
      %3224 = vmatmul.mubr.bf16.gmra.mxu0 %v3106
      %v3225 = vpop.f32.mrf.mxu0
      %v3226 = vadd.f32 0.0, %v3225
      %v3227 = vpop.f32.mrf.mxu0
      %v3228 = vpop.f32.mrf.mxu0
      %v3229 = vadd.f32 0.0, %v3228
      %v3230 = vpop.f32.mrf.mxu0
      %3231 = vmatprep.mubr.bf16.mxu0 0
      %3232 = vmatmul.mubr.bf16.gmra.mxu0 %v3109
      %v3233 = vpop.f32.mrf.mxu0
      %v3234 = vadd.f32 0.0, %v3233
      %v3235 = vpop.f32.mrf.mxu0
      %v3236 = vpop.f32.mrf.mxu0
      %v3237 = vadd.f32 0.0, %v3236
      %v3238 = vpop.f32.mrf.mxu0
      %3239 = vmatprep.mubr.bf16.mxu0 0
      %3240 = vmatmul.mubr.bf16.gmra.mxu0 %v3112
      %v3241 = vpop.f32.mrf.mxu0
      %v3242 = vadd.f32 0.0, %v3241
      %v3243 = vpop.f32.mrf.mxu0
      %v3244 = vpop.f32.mrf.mxu0
      %v3245 = vadd.f32 0.0, %v3244
      %v3246 = vpop.f32.mrf.mxu0
      %3247 = vmatprep.mubr.bf16.mxu0 0
      %3248 = vmatmul.mubr.bf16.gmra.mxu0 %v3115
      %v3249 = vpop.f32.mrf.mxu0
      %v3250 = vadd.f32 0.0, %v3249
      %v3251 = vpop.f32.mrf.mxu0
      %v3252 = vpop.f32.mrf.mxu0
      %v3253 = vadd.f32 0.0, %v3252
      %v3254 = vpop.f32.mrf.mxu0
      %3255 = vmatprep.mubr.bf16.mxu0 0
      %3256 = vmatmul.mubr.bf16.gmra.mxu0 %v3118
      %v3257 = vpop.f32.mrf.mxu0
      %v3258 = vadd.f32 0.0, %v3257
      %v3259 = vpop.f32.mrf.mxu0
      %v3260 = vpop.f32.mrf.mxu0
      %v3261 = vadd.f32 0.0, %v3260
      %v3262 = vpop.f32.mrf.mxu0
      %3263 = vmatprep.mubr.bf16.mxu0 0
      %3264 = vmatmul.mubr.bf16.gmra.mxu0 %v3121
      %v3265 = vpop.f32.mrf.mxu0
      %v3266 = vadd.f32 0.0, %v3265
      %v3267 = vpop.f32.mrf.mxu0
      %v3268 = vpop.f32.mrf.mxu0
      %v3269 = vadd.f32 0.0, %v3268
      %v3270 = vpop.f32.mrf.mxu0
      %3271 = vmatprep.mubr.bf16.mxu0 0
      %3272 = vmatmul.mubr.bf16.gmra.mxu0 %v3124
      %v3273 = vpop.f32.mrf.mxu0
      %v3274 = vadd.f32 0.0, %v3273
      %v3275 = vpop.f32.mrf.mxu0
      %v3276 = vpop.f32.mrf.mxu0
      %v3277 = vadd.f32 0.0, %v3276
      %v3278 = vpop.f32.mrf.mxu0
      %3279 = vmatprep.mubr.bf16.mxu0 0
      %3280 = vmatmul.mubr.bf16.gmra.mxu0 %v3127
      %v3281 = vpop.f32.mrf.mxu0
      %v3282 = vadd.f32 0.0, %v3281
      %v3283 = vpop.f32.mrf.mxu0
      %v3284 = vpop.f32.mrf.mxu0
      %v3285 = vadd.f32 0.0, %v3284
      %v3286 = vpop.f32.mrf.mxu0
      %3287 = vmatprep.mubr.bf16.mxu0 0
      %3288 = vmatmul.mubr.bf16.gmra.mxu0 %v3130
      %v3289 = vpop.f32.mrf.mxu0
      %v3290 = vadd.f32 0.0, %v3289
      %v3291 = vpop.f32.mrf.mxu0
      %v3292 = vpop.f32.mrf.mxu0
      %v3293 = vadd.f32 0.0, %v3292
      %v3294 = vpop.f32.mrf.mxu0
      %3295 = vdwg.mxu0
      %v3296 = vadd.f32 %v3002, %v3170
      %v3297 = vadd.f32 %v3003, %v3173
      %v3298 = vadd.f32 %v3004, %v3178
      %v3299 = vadd.f32 %v3005, %v3181
      %v3300 = vadd.f32 %v3006, %v3186
      %v3301 = vadd.f32 %v3007, %v3189
      %v3302 = vadd.f32 %v3008, %v3194
      %v3303 = vadd.f32 %v3009, %v3197
      %v3304 = vadd.f32 %v3010, %v3202
      %v3305 = vadd.f32 %v3011, %v3205
      %v3306 = vadd.f32 %v3012, %v3210
      %v3307 = vadd.f32 %v3013, %v3213
      %v3308 = vadd.f32 %v3014, %v3218
      %v3309 = vadd.f32 %v3015, %v3221
      %v3310 = vadd.f32 %v3016, %v3226
      %v3311 = vadd.f32 %v3017, %v3229
      %v3312 = vadd.f32 %v3018, %v3234
      %v3313 = vadd.f32 %v3019, %v3237
      %v3314 = vadd.f32 %v3020, %v3242
      %v3315 = vadd.f32 %v3021, %v3245
      %v3316 = vadd.f32 %v3022, %v3250
      %v3317 = vadd.f32 %v3023, %v3253
      %v3318 = vadd.f32 %v3024, %v3258
      %v3319 = vadd.f32 %v3025, %v3261
      %v3320 = vadd.f32 %v3026, %v3266
      %v3321 = vadd.f32 %v3027, %v3269
      %v3322 = vadd.f32 %v3028, %v3274
      %v3323 = vadd.f32 %v3029, %v3277
      %v3324 = vadd.f32 %v3030, %v3282
      %v3325 = vadd.f32 %v3031, %v3285
      %v3326 = vadd.f32 %v3032, %v3290
      %v3327 = vadd.f32 %v3033, %v3293
      %3328 = vst [vmem:[#allocation2] sm:$0xff] %v3296
      %3329 = vst [vmem:[#allocation2 + $0x8] sm:$0xff] %v3297
      %3330 = vst [vmem:[#allocation2 + $0x10] sm:$0xff] %v3298
      %3331 = vst [vmem:[#allocation2 + $0x18] sm:$0xff] %v3299
      %3332 = vst [vmem:[#allocation2 + $0x20] sm:$0xff] %v3300
      %3333 = vst [vmem:[#allocation2 + $0x28] sm:$0xff] %v3301
      %3334 = vst [vmem:[#allocation2 + $0x30] sm:$0xff] %v3302
      %3335 = vst [vmem:[#allocation2 + $0x38] sm:$0xff] %v3303
      %3336 = vst [vmem:[#allocation2 + $0x40] sm:$0xff] %v3304
      %3337 = vst [vmem:[#allocation2 + $0x48] sm:$0xff] %v3305
      %3338 = vst [vmem:[#allocation2 + $0x50] sm:$0xff] %v3306
      %3339 = vst [vmem:[#allocation2 + $0x58] sm:$0xff] %v3307
      %3340 = vst [vmem:[#allocation2 + $0x60] sm:$0xff] %v3308
      %3341 = vst [vmem:[#allocation2 + $0x68] sm:$0xff] %v3309
      %3342 = vst [vmem:[#allocation2 + $0x70] sm:$0xff] %v3310
      %3343 = vst [vmem:[#allocation2 + $0x78] sm:$0xff] %v3311
      %3344 = vst [vmem:[#allocation2 + $0x80] sm:$0xff] %v3312
      %3345 = vst [vmem:[#allocation2 + $0x88] sm:$0xff] %v3313
      %3346 = vst [vmem:[#allocation2 + $0x90] sm:$0xff] %v3314
      %3347 = vst [vmem:[#allocation2 + $0x98] sm:$0xff] %v3315
      %3348 = vst [vmem:[#allocation2 + $0xa0] sm:$0xff] %v3316
      %3349 = vst [vmem:[#allocation2 + $0xa8] sm:$0xff] %v3317
      %3350 = vst [vmem:[#allocation2 + $0xb0] sm:$0xff] %v3318
      %3351 = vst [vmem:[#allocation2 + $0xb8] sm:$0xff] %v3319
      %3352 = vst [vmem:[#allocation2 + $0xc0] sm:$0xff] %v3320
      %3353 = vst [vmem:[#allocation2 + $0xc8] sm:$0xff] %v3321
      %3354 = vst [vmem:[#allocation2 + $0xd0] sm:$0xff] %v3322
      %3355 = vst [vmem:[#allocation2 + $0xd8] sm:$0xff] %v3323
      %3356 = vst [vmem:[#allocation2 + $0xe0] sm:$0xff] %v3324
      %3357 = vst [vmem:[#allocation2 + $0xe8] sm:$0xff] %v3325
      %3358 = vst [vmem:[#allocation2 + $0xf0] sm:$0xff] %v3326
      %3359 = vst [vmem:[#allocation2 + $0xf8] sm:$0xff] %v3327
      %v3360 = vld [vmem:[#allocation2] sm:$0xff]
      %v3361 = vld [vmem:[#allocation2 + $0x8] sm:$0xff]
      %v3362 = vld [vmem:[#allocation2 + $0x10] sm:$0xff]
      %v3363 = vld [vmem:[#allocation2 + $0x18] sm:$0xff]
      %v3364 = vld [vmem:[#allocation2 + $0x20] sm:$0xff]
      %v3365 = vld [vmem:[#allocation2 + $0x28] sm:$0xff]
      %v3366 = vld [vmem:[#allocation2 + $0x30] sm:$0xff]
      %v3367 = vld [vmem:[#allocation2 + $0x38] sm:$0xff]
      %v3368 = vld [vmem:[#allocation2 + $0x40] sm:$0xff]
      %v3369 = vld [vmem:[#allocation2 + $0x48] sm:$0xff]
      %v3370 = vld [vmem:[#allocation2 + $0x50] sm:$0xff]
      %v3371 = vld [vmem:[#allocation2 + $0x58] sm:$0xff]
      %v3372 = vld [vmem:[#allocation2 + $0x60] sm:$0xff]
      %v3373 = vld [vmem:[#allocation2 + $0x68] sm:$0xff]
      %v3374 = vld [vmem:[#allocation2 + $0x70] sm:$0xff]
      %v3375 = vld [vmem:[#allocation2 + $0x78] sm:$0xff]
      %v3376 = vld [vmem:[#allocation2 + $0x80] sm:$0xff]
      %v3377 = vld [vmem:[#allocation2 + $0x88] sm:$0xff]
      %v3378 = vld [vmem:[#allocation2 + $0x90] sm:$0xff]
      %v3379 = vld [vmem:[#allocation2 + $0x98] sm:$0xff]
      %v3380 = vld [vmem:[#allocation2 + $0xa0] sm:$0xff]
      %v3381 = vld [vmem:[#allocation2 + $0xa8] sm:$0xff]
      %v3382 = vld [vmem:[#allocation2 + $0xb0] sm:$0xff]
      %v3383 = vld [vmem:[#allocation2 + $0xb8] sm:$0xff]
      %v3384 = vld [vmem:[#allocation2 + $0xc0] sm:$0xff]
      %v3385 = vld [vmem:[#allocation2 + $0xc8] sm:$0xff]
      %v3386 = vld [vmem:[#allocation2 + $0xd0] sm:$0xff]
      %v3387 = vld [vmem:[#allocation2 + $0xd8] sm:$0xff]
      %v3388 = vld [vmem:[#allocation2 + $0xe0] sm:$0xff]
      %v3389 = vld [vmem:[#allocation2 + $0xe8] sm:$0xff]
      %v3390 = vld [vmem:[#allocation2 + $0xf0] sm:$0xff]
      %v3391 = vld [vmem:[#allocation2 + $0xf8] sm:$0xff]
      %s3392 = scalar_lea.vmem %s1, 8
      %v3393 = vld [vmem:[%s3392] sm:$0x3]
      %v3394 = vunpack.c.l.b16 %v864
      %v3395 = vunpack.c.l.b16 %v874
      %v3396 = vunpack.c.l.b16 %v888
      %v3397 = vunpack.c.l.b16 %v898
      %v3398 = vunpack.c.l.b16 %v912
      %v3399 = vunpack.c.l.b16 %v922
      %v3400 = vunpack.c.l.b16 %v936
      %v3401 = vunpack.c.l.b16 %v946
      %v3402 = vunpack.c.l.b16 %v960
      %v3403 = vunpack.c.l.b16 %v970
      %v3404 = vunpack.c.l.b16 %v984
      %v3405 = vunpack.c.l.b16 %v994
      %v3406 = vunpack.c.l.b16 %v1008
      %v3407 = vunpack.c.l.b16 %v1018
      %v3408 = vunpack.c.l.b16 %v1032
      %v3409 = vunpack.c.l.b16 %v1042
      %v3410 = vunpack.c.l.b16 %v1056
      %v3411 = vunpack.c.l.b16 %v1066
      %v3412 = vunpack.c.l.b16 %v1080
      %v3413 = vunpack.c.l.b16 %v1090
      %v3414 = vunpack.c.l.b16 %v1104
      %v3415 = vunpack.c.l.b16 %v1114
      %v3416 = vunpack.c.l.b16 %v1128
      %v3417 = vunpack.c.l.b16 %v1138
      %v3418 = vunpack.c.l.b16 %v1152
      %v3419 = vunpack.c.l.b16 %v1162
      %v3420 = vunpack.c.l.b16 %v1176
      %v3421 = vunpack.c.l.b16 %v1186
      %v3422 = vunpack.c.l.b16 %v1200
      %v3423 = vunpack.c.l.b16 %v1210
      %v3424 = vunpack.c.l.b16 %v1224
      %v3425 = vunpack.c.l.b16 %v1234
      %v3426 = vpack.c.b16 %v3395, %v3394
      %v3427 = vpack.c.b16 %v3397, %v3396
      %v3428 = vpack.c.b16 %v3399, %v3398
      %v3429 = vpack.c.b16 %v3401, %v3400
      %v3430 = vpack.c.b16 %v3403, %v3402
      %v3431 = vpack.c.b16 %v3405, %v3404
      %v3432 = vpack.c.b16 %v3407, %v3406
      %v3433 = vpack.c.b16 %v3409, %v3408
      %v3434 = vpack.c.b16 %v3411, %v3410
      %v3435 = vpack.c.b16 %v3413, %v3412
      %v3436 = vpack.c.b16 %v3415, %v3414
      %v3437 = vpack.c.b16 %v3417, %v3416
      %v3438 = vpack.c.b16 %v3419, %v3418
      %v3439 = vpack.c.b16 %v3421, %v3420
      %v3440 = vpack.c.b16 %v3423, %v3422
      %v3441 = vpack.c.b16 %v3425, %v3424
      %v3443 = vsel %vm2040, %v3426, 0
      %v3446 = vsel %vm2040, %v3427, 0
      %v3449 = vsel %vm2040, %v3428, 0
      %v3452 = vsel %vm2040, %v3429, 0
      %v3455 = vsel %vm2040, %v3430, 0
      %v3458 = vsel %vm2040, %v3431, 0
      %v3461 = vsel %vm2040, %v3432, 0
      %v3464 = vsel %vm2040, %v3433, 0
      %v3467 = vsel %vm2040, %v3434, 0
      %v3470 = vsel %vm2040, %v3435, 0
      %v3473 = vsel %vm2040, %v3436, 0
      %v3476 = vsel %vm2040, %v3437, 0
      %v3479 = vsel %vm2040, %v3438, 0
      %v3482 = vsel %vm2040, %v3439, 0
      %v3485 = vsel %vm2040, %v3440, 0
      %v3488 = vsel %vm2040, %v3441, 0
      %v3491 = vsel %vm2089, %v3393, 0
      %3493 = vmatprep.subr.bf16.mxu0 0
      %3494 = vmatpush1.bf16.msra.mxu0 0
      %3495 = vmatprep.subr.bf16.mxu0 0
      %3496 = vmatpush1.bf16.msra.mxu0 0
      %3497 = vmatprep.subr.bf16.mxu0 0
      %3498 = vmatpush1.bf16.msra.mxu0 0
      %3499 = vmatprep.subr.bf16.mxu0 0
      %3500 = vmatpush1.bf16.msra.mxu0 0
      %3501 = vmatprep.subr.bf16.mxu0 0
      %3502 = vmatpush1.bf16.msra.mxu0 0
      %3503 = vmatprep.subr.bf16.mxu0 0
      %3504 = vmatpush1.bf16.msra.mxu0 0
      %3505 = vmatprep.subr.bf16.mxu0 0
      %3506 = vmatpush1.bf16.msra.mxu0 0
      %3507 = vmatprep.subr.bf16.mxu0 0
      %3508 = vmatpush1.bf16.msra.mxu0 %v3491
      %3509 = vmatprep.subr.bf16.mxu0 0
      %3510 = vmatpush2.bf16.msra.mxu0 0
      %3511 = vmatprep.subr.bf16.mxu0 0
      %3512 = vmatpush2.bf16.msra.mxu0 0
      %3513 = vmatprep.subr.bf16.mxu0 0
      %3514 = vmatpush2.bf16.msra.mxu0 0
      %3515 = vmatprep.subr.bf16.mxu0 0
      %3516 = vmatpush2.bf16.msra.mxu0 0
      %3517 = vmatprep.subr.bf16.mxu0 0
      %3518 = vmatpush2.bf16.msra.mxu0 0
      %3519 = vmatprep.subr.bf16.mxu0 0
      %3520 = vmatpush2.bf16.msra.mxu0 0
      %3521 = vmatprep.subr.bf16.mxu0 0
      %3522 = vmatpush2.bf16.msra.mxu0 0
      %3523 = vmatprep.subr.bf16.mxu0 0
      %3524 = vmatpush2.bf16.msra.mxu0 0
      %3525 = vmatprep.mubr.bf16.mxu0 0
      %3526 = vmatmul.mubr.bf16.gmra.mxu0 %v3443
      %v3527 = vpop.f32.mrf.mxu0
      %v3528 = vadd.f32 0.0, %v3527
      %v3529 = vpop.f32.mrf.mxu0
      %v3530 = vpop.f32.mrf.mxu0
      %v3531 = vadd.f32 0.0, %v3530
      %v3532 = vpop.f32.mrf.mxu0
      %3533 = vmatprep.mubr.bf16.mxu0 0
      %3534 = vmatmul.mubr.bf16.gmra.mxu0 %v3446
      %v3535 = vpop.f32.mrf.mxu0
      %v3536 = vadd.f32 0.0, %v3535
      %v3537 = vpop.f32.mrf.mxu0
      %v3538 = vpop.f32.mrf.mxu0
      %v3539 = vadd.f32 0.0, %v3538
      %v3540 = vpop.f32.mrf.mxu0
      %3541 = vmatprep.mubr.bf16.mxu0 0
      %3542 = vmatmul.mubr.bf16.gmra.mxu0 %v3449
      %v3543 = vpop.f32.mrf.mxu0
      %v3544 = vadd.f32 0.0, %v3543
      %v3545 = vpop.f32.mrf.mxu0
      %v3546 = vpop.f32.mrf.mxu0
      %v3547 = vadd.f32 0.0, %v3546
      %v3548 = vpop.f32.mrf.mxu0
      %3549 = vmatprep.mubr.bf16.mxu0 0
      %3550 = vmatmul.mubr.bf16.gmra.mxu0 %v3452
      %v3551 = vpop.f32.mrf.mxu0
      %v3552 = vadd.f32 0.0, %v3551
      %v3553 = vpop.f32.mrf.mxu0
      %v3554 = vpop.f32.mrf.mxu0
      %v3555 = vadd.f32 0.0, %v3554
      %v3556 = vpop.f32.mrf.mxu0
      %3557 = vmatprep.mubr.bf16.mxu0 0
      %3558 = vmatmul.mubr.bf16.gmra.mxu0 %v3455
      %v3559 = vpop.f32.mrf.mxu0
      %v3560 = vadd.f32 0.0, %v3559
      %v3561 = vpop.f32.mrf.mxu0
      %v3562 = vpop.f32.mrf.mxu0
      %v3563 = vadd.f32 0.0, %v3562
      %v3564 = vpop.f32.mrf.mxu0
      %3565 = vmatprep.mubr.bf16.mxu0 0
      %3566 = vmatmul.mubr.bf16.gmra.mxu0 %v3458
      %v3567 = vpop.f32.mrf.mxu0
      %v3568 = vadd.f32 0.0, %v3567
      %v3569 = vpop.f32.mrf.mxu0
      %v3570 = vpop.f32.mrf.mxu0
      %v3571 = vadd.f32 0.0, %v3570
      %v3572 = vpop.f32.mrf.mxu0
      %3573 = vmatprep.mubr.bf16.mxu0 0
      %3574 = vmatmul.mubr.bf16.gmra.mxu0 %v3461
      %v3575 = vpop.f32.mrf.mxu0
      %v3576 = vadd.f32 0.0, %v3575
      %v3577 = vpop.f32.mrf.mxu0
      %v3578 = vpop.f32.mrf.mxu0
      %v3579 = vadd.f32 0.0, %v3578
      %v3580 = vpop.f32.mrf.mxu0
      %3581 = vmatprep.mubr.bf16.mxu0 0
      %3582 = vmatmul.mubr.bf16.gmra.mxu0 %v3464
      %v3583 = vpop.f32.mrf.mxu0
      %v3584 = vadd.f32 0.0, %v3583
      %v3585 = vpop.f32.mrf.mxu0
      %v3586 = vpop.f32.mrf.mxu0
      %v3587 = vadd.f32 0.0, %v3586
      %v3588 = vpop.f32.mrf.mxu0
      %3589 = vmatprep.mubr.bf16.mxu0 0
      %3590 = vmatmul.mubr.bf16.gmra.mxu0 %v3467
      %v3591 = vpop.f32.mrf.mxu0
      %v3592 = vadd.f32 0.0, %v3591
      %v3593 = vpop.f32.mrf.mxu0
      %v3594 = vpop.f32.mrf.mxu0
      %v3595 = vadd.f32 0.0, %v3594
      %v3596 = vpop.f32.mrf.mxu0
      %3597 = vmatprep.mubr.bf16.mxu0 0
      %3598 = vmatmul.mubr.bf16.gmra.mxu0 %v3470
      %v3599 = vpop.f32.mrf.mxu0
      %v3600 = vadd.f32 0.0, %v3599
      %v3601 = vpop.f32.mrf.mxu0
      %v3602 = vpop.f32.mrf.mxu0
      %v3603 = vadd.f32 0.0, %v3602
      %v3604 = vpop.f32.mrf.mxu0
      %3605 = vmatprep.mubr.bf16.mxu0 0
      %3606 = vmatmul.mubr.bf16.gmra.mxu0 %v3473
      %v3607 = vpop.f32.mrf.mxu0
      %v3608 = vadd.f32 0.0, %v3607
      %v3609 = vpop.f32.mrf.mxu0
      %v3610 = vpop.f32.mrf.mxu0
      %v3611 = vadd.f32 0.0, %v3610
      %v3612 = vpop.f32.mrf.mxu0
      %3613 = vmatprep.mubr.bf16.mxu0 0
      %3614 = vmatmul.mubr.bf16.gmra.mxu0 %v3476
      %v3615 = vpop.f32.mrf.mxu0
      %v3616 = vadd.f32 0.0, %v3615
      %v3617 = vpop.f32.mrf.mxu0
      %v3618 = vpop.f32.mrf.mxu0
      %v3619 = vadd.f32 0.0, %v3618
      %v3620 = vpop.f32.mrf.mxu0
      %3621 = vmatprep.mubr.bf16.mxu0 0
      %3622 = vmatmul.mubr.bf16.gmra.mxu0 %v3479
      %v3623 = vpop.f32.mrf.mxu0
      %v3624 = vadd.f32 0.0, %v3623
      %v3625 = vpop.f32.mrf.mxu0
      %v3626 = vpop.f32.mrf.mxu0
      %v3627 = vadd.f32 0.0, %v3626
      %v3628 = vpop.f32.mrf.mxu0
      %3629 = vmatprep.mubr.bf16.mxu0 0
      %3630 = vmatmul.mubr.bf16.gmra.mxu0 %v3482
      %v3631 = vpop.f32.mrf.mxu0
      %v3632 = vadd.f32 0.0, %v3631
      %v3633 = vpop.f32.mrf.mxu0
      %v3634 = vpop.f32.mrf.mxu0
      %v3635 = vadd.f32 0.0, %v3634
      %v3636 = vpop.f32.mrf.mxu0
      %3637 = vmatprep.mubr.bf16.mxu0 0
      %3638 = vmatmul.mubr.bf16.gmra.mxu0 %v3485
      %v3639 = vpop.f32.mrf.mxu0
      %v3640 = vadd.f32 0.0, %v3639
      %v3641 = vpop.f32.mrf.mxu0
      %v3642 = vpop.f32.mrf.mxu0
      %v3643 = vadd.f32 0.0, %v3642
      %v3644 = vpop.f32.mrf.mxu0
      %3645 = vmatprep.mubr.bf16.mxu0 0
      %3646 = vmatmul.mubr.bf16.gmra.mxu0 %v3488
      %v3647 = vpop.f32.mrf.mxu0
      %v3648 = vadd.f32 0.0, %v3647
      %v3649 = vpop.f32.mrf.mxu0
      %v3650 = vpop.f32.mrf.mxu0
      %v3651 = vadd.f32 0.0, %v3650
      %v3652 = vpop.f32.mrf.mxu0
      %3653 = vdwg.mxu0
      %v3654 = vadd.f32 %v3360, %v3528
      %v3655 = vadd.f32 %v3361, %v3531
      %v3656 = vadd.f32 %v3362, %v3536
      %v3657 = vadd.f32 %v3363, %v3539
      %v3658 = vadd.f32 %v3364, %v3544
      %v3659 = vadd.f32 %v3365, %v3547
      %v3660 = vadd.f32 %v3366, %v3552
      %v3661 = vadd.f32 %v3367, %v3555
      %v3662 = vadd.f32 %v3368, %v3560
      %v3663 = vadd.f32 %v3369, %v3563
      %v3664 = vadd.f32 %v3370, %v3568
      %v3665 = vadd.f32 %v3371, %v3571
      %v3666 = vadd.f32 %v3372, %v3576
      %v3667 = vadd.f32 %v3373, %v3579
      %v3668 = vadd.f32 %v3374, %v3584
      %v3669 = vadd.f32 %v3375, %v3587
      %v3670 = vadd.f32 %v3376, %v3592
      %v3671 = vadd.f32 %v3377, %v3595
      %v3672 = vadd.f32 %v3378, %v3600
      %v3673 = vadd.f32 %v3379, %v3603
      %v3674 = vadd.f32 %v3380, %v3608
      %v3675 = vadd.f32 %v3381, %v3611
      %v3676 = vadd.f32 %v3382, %v3616
      %v3677 = vadd.f32 %v3383, %v3619
      %v3678 = vadd.f32 %v3384, %v3624
      %v3679 = vadd.f32 %v3385, %v3627
      %v3680 = vadd.f32 %v3386, %v3632
      %v3681 = vadd.f32 %v3387, %v3635
      %v3682 = vadd.f32 %v3388, %v3640
      %v3683 = vadd.f32 %v3389, %v3643
      %v3684 = vadd.f32 %v3390, %v3648
      %v3685 = vadd.f32 %v3391, %v3651
      %3686 = vst [vmem:[#allocation2] sm:$0xff] %v3654
      %3687 = vst [vmem:[#allocation2 + $0x8] sm:$0xff] %v3655
      %3688 = vst [vmem:[#allocation2 + $0x10] sm:$0xff] %v3656
      %3689 = vst [vmem:[#allocation2 + $0x18] sm:$0xff] %v3657
      %3690 = vst [vmem:[#allocation2 + $0x20] sm:$0xff] %v3658
      %3691 = vst [vmem:[#allocation2 + $0x28] sm:$0xff] %v3659
      %3692 = vst [vmem:[#allocation2 + $0x30] sm:$0xff] %v3660
      %3693 = vst [vmem:[#allocation2 + $0x38] sm:$0xff] %v3661
      %3694 = vst [vmem:[#allocation2 + $0x40] sm:$0xff] %v3662
      %3695 = vst [vmem:[#allocation2 + $0x48] sm:$0xff] %v3663
      %3696 = vst [vmem:[#allocation2 + $0x50] sm:$0xff] %v3664
      %3697 = vst [vmem:[#allocation2 + $0x58] sm:$0xff] %v3665
      %3698 = vst [vmem:[#allocation2 + $0x60] sm:$0xff] %v3666
      %3699 = vst [vmem:[#allocation2 + $0x68] sm:$0xff] %v3667
      %3700 = vst [vmem:[#allocation2 + $0x70] sm:$0xff] %v3668
      %3701 = vst [vmem:[#allocation2 + $0x78] sm:$0xff] %v3669
      %3702 = vst [vmem:[#allocation2 + $0x80] sm:$0xff] %v3670
      %3703 = vst [vmem:[#allocation2 + $0x88] sm:$0xff] %v3671
      %3704 = vst [vmem:[#allocation2 + $0x90] sm:$0xff] %v3672
      %3705 = vst [vmem:[#allocation2 + $0x98] sm:$0xff] %v3673
      %3706 = vst [vmem:[#allocation2 + $0xa0] sm:$0xff] %v3674
      %3707 = vst [vmem:[#allocation2 + $0xa8] sm:$0xff] %v3675
      %3708 = vst [vmem:[#allocation2 + $0xb0] sm:$0xff] %v3676
      %3709 = vst [vmem:[#allocation2 + $0xb8] sm:$0xff] %v3677
      %3710 = vst [vmem:[#allocation2 + $0xc0] sm:$0xff] %v3678
      %3711 = vst [vmem:[#allocation2 + $0xc8] sm:$0xff] %v3679
      %3712 = vst [vmem:[#allocation2 + $0xd0] sm:$0xff] %v3680
      %3713 = vst [vmem:[#allocation2 + $0xd8] sm:$0xff] %v3681
      %3714 = vst [vmem:[#allocation2 + $0xe0] sm:$0xff] %v3682
      %3715 = vst [vmem:[#allocation2 + $0xe8] sm:$0xff] %v3683
      %3716 = vst [vmem:[#allocation2 + $0xf0] sm:$0xff] %v3684
      %3717 = vst [vmem:[#allocation2 + $0xf8] sm:$0xff] %v3685
      %v3718 = vld [vmem:[#allocation2] sm:$0xff]
      %v3719 = vld [vmem:[#allocation2 + $0x8] sm:$0xff]
      %v3720 = vld [vmem:[#allocation2 + $0x10] sm:$0xff]
      %v3721 = vld [vmem:[#allocation2 + $0x18] sm:$0xff]
      %v3722 = vld [vmem:[#allocation2 + $0x20] sm:$0xff]
      %v3723 = vld [vmem:[#allocation2 + $0x28] sm:$0xff]
      %v3724 = vld [vmem:[#allocation2 + $0x30] sm:$0xff]
      %v3725 = vld [vmem:[#allocation2 + $0x38] sm:$0xff]
      %v3726 = vld [vmem:[#allocation2 + $0x40] sm:$0xff]
      %v3727 = vld [vmem:[#allocation2 + $0x48] sm:$0xff]
      %v3728 = vld [vmem:[#allocation2 + $0x50] sm:$0xff]
      %v3729 = vld [vmem:[#allocation2 + $0x58] sm:$0xff]
      %v3730 = vld [vmem:[#allocation2 + $0x60] sm:$0xff]
      %v3731 = vld [vmem:[#allocation2 + $0x68] sm:$0xff]
      %v3732 = vld [vmem:[#allocation2 + $0x70] sm:$0xff]
      %v3733 = vld [vmem:[#allocation2 + $0x78] sm:$0xff]
      %v3734 = vld [vmem:[#allocation2 + $0x80] sm:$0xff]
      %v3735 = vld [vmem:[#allocation2 + $0x88] sm:$0xff]
      %v3736 = vld [vmem:[#allocation2 + $0x90] sm:$0xff]
      %v3737 = vld [vmem:[#allocation2 + $0x98] sm:$0xff]
      %v3738 = vld [vmem:[#allocation2 + $0xa0] sm:$0xff]
      %v3739 = vld [vmem:[#allocation2 + $0xa8] sm:$0xff]
      %v3740 = vld [vmem:[#allocation2 + $0xb0] sm:$0xff]
      %v3741 = vld [vmem:[#allocation2 + $0xb8] sm:$0xff]
      %v3742 = vld [vmem:[#allocation2 + $0xc0] sm:$0xff]
      %v3743 = vld [vmem:[#allocation2 + $0xc8] sm:$0xff]
      %v3744 = vld [vmem:[#allocation2 + $0xd0] sm:$0xff]
      %v3745 = vld [vmem:[#allocation2 + $0xd8] sm:$0xff]
      %v3746 = vld [vmem:[#allocation2 + $0xe0] sm:$0xff]
      %v3747 = vld [vmem:[#allocation2 + $0xe8] sm:$0xff]
      %v3748 = vld [vmem:[#allocation2 + $0xf0] sm:$0xff]
      %v3749 = vld [vmem:[#allocation2 + $0xf8] sm:$0xff]
      %s3750 = scalar_lea.vmem %s1, 10
      %v3751 = vld [vmem:[%s3750] sm:$0x3]
      %v3752 = vunpack.c.l.b16 %v1286
      %v3753 = vunpack.c.l.b16 %v1289
      %v3754 = vunpack.c.l.b16 %v1293
      %v3755 = vunpack.c.l.b16 %v1296
      %v3756 = vunpack.c.l.b16 %v1300
      %v3757 = vunpack.c.l.b16 %v1303
      %v3758 = vunpack.c.l.b16 %v1307
      %v3759 = vunpack.c.l.b16 %v1310
      %v3760 = vunpack.c.l.b16 %v1314
      %v3761 = vunpack.c.l.b16 %v1317
      %v3762 = vunpack.c.l.b16 %v1321
      %v3763 = vunpack.c.l.b16 %v1324
      %v3764 = vunpack.c.l.b16 %v1328
      %v3765 = vunpack.c.l.b16 %v1331
      %v3766 = vunpack.c.l.b16 %v1335
      %v3767 = vunpack.c.l.b16 %v1338
      %v3768 = vunpack.c.l.b16 %v1342
      %v3769 = vunpack.c.l.b16 %v1345
      %v3770 = vunpack.c.l.b16 %v1349
      %v3771 = vunpack.c.l.b16 %v1352
      %v3772 = vunpack.c.l.b16 %v1356
      %v3773 = vunpack.c.l.b16 %v1359
      %v3774 = vunpack.c.l.b16 %v1363
      %v3775 = vunpack.c.l.b16 %v1366
      %v3776 = vunpack.c.l.b16 %v1370
      %v3777 = vunpack.c.l.b16 %v1373
      %v3778 = vunpack.c.l.b16 %v1377
      %v3779 = vunpack.c.l.b16 %v1380
      %v3780 = vunpack.c.l.b16 %v1384
      %v3781 = vunpack.c.l.b16 %v1387
      %v3782 = vunpack.c.l.b16 %v1391
      %v3783 = vunpack.c.l.b16 %v1394
      %v3784 = vpack.c.b16 %v3753, %v3752
      %v3785 = vpack.c.b16 %v3755, %v3754
      %v3786 = vpack.c.b16 %v3757, %v3756
      %v3787 = vpack.c.b16 %v3759, %v3758
      %v3788 = vpack.c.b16 %v3761, %v3760
      %v3789 = vpack.c.b16 %v3763, %v3762
      %v3790 = vpack.c.b16 %v3765, %v3764
      %v3791 = vpack.c.b16 %v3767, %v3766
      %v3792 = vpack.c.b16 %v3769, %v3768
      %v3793 = vpack.c.b16 %v3771, %v3770
      %v3794 = vpack.c.b16 %v3773, %v3772
      %v3795 = vpack.c.b16 %v3775, %v3774
      %v3796 = vpack.c.b16 %v3777, %v3776
      %v3797 = vpack.c.b16 %v3779, %v3778
      %v3798 = vpack.c.b16 %v3781, %v3780
      %v3799 = vpack.c.b16 %v3783, %v3782
      %v3801 = vsel %vm2040, %v3784, 0
      %v3804 = vsel %vm2040, %v3785, 0
      %v3807 = vsel %vm2040, %v3786, 0
      %v3810 = vsel %vm2040, %v3787, 0
      %v3813 = vsel %vm2040, %v3788, 0
      %v3816 = vsel %vm2040, %v3789, 0
      %v3819 = vsel %vm2040, %v3790, 0
      %v3822 = vsel %vm2040, %v3791, 0
      %v3825 = vsel %vm2040, %v3792, 0
      %v3828 = vsel %vm2040, %v3793, 0
      %v3831 = vsel %vm2040, %v3794, 0
      %v3834 = vsel %vm2040, %v3795, 0
      %v3837 = vsel %vm2040, %v3796, 0
      %v3840 = vsel %vm2040, %v3797, 0
      %v3843 = vsel %vm2040, %v3798, 0
      %v3846 = vsel %vm2040, %v3799, 0
      %v3849 = vsel %vm2089, %v3751, 0
      %3851 = vmatprep.subr.bf16.mxu0 0
      %3852 = vmatpush1.bf16.msra.mxu0 0
      %3853 = vmatprep.subr.bf16.mxu0 0
      %3854 = vmatpush1.bf16.msra.mxu0 0
      %3855 = vmatprep.subr.bf16.mxu0 0
      %3856 = vmatpush1.bf16.msra.mxu0 0
      %3857 = vmatprep.subr.bf16.mxu0 0
      %3858 = vmatpush1.bf16.msra.mxu0 0
      %3859 = vmatprep.subr.bf16.mxu0 0
      %3860 = vmatpush1.bf16.msra.mxu0 0
      %3861 = vmatprep.subr.bf16.mxu0 0
      %3862 = vmatpush1.bf16.msra.mxu0 0
      %3863 = vmatprep.subr.bf16.mxu0 0
      %3864 = vmatpush1.bf16.msra.mxu0 0
      %3865 = vmatprep.subr.bf16.mxu0 0
      %3866 = vmatpush1.bf16.msra.mxu0 %v3849
      %3867 = vmatprep.subr.bf16.mxu0 0
      %3868 = vmatpush2.bf16.msra.mxu0 0
      %3869 = vmatprep.subr.bf16.mxu0 0
      %3870 = vmatpush2.bf16.msra.mxu0 0
      %3871 = vmatprep.subr.bf16.mxu0 0
      %3872 = vmatpush2.bf16.msra.mxu0 0
      %3873 = vmatprep.subr.bf16.mxu0 0
      %3874 = vmatpush2.bf16.msra.mxu0 0
      %3875 = vmatprep.subr.bf16.mxu0 0
      %3876 = vmatpush2.bf16.msra.mxu0 0
      %3877 = vmatprep.subr.bf16.mxu0 0
      %3878 = vmatpush2.bf16.msra.mxu0 0
      %3879 = vmatprep.subr.bf16.mxu0 0
      %3880 = vmatpush2.bf16.msra.mxu0 0
      %3881 = vmatprep.subr.bf16.mxu0 0
      %3882 = vmatpush2.bf16.msra.mxu0 0
      %3883 = vmatprep.mubr.bf16.mxu0 0
      %3884 = vmatmul.mubr.bf16.gmra.mxu0 %v3801
      %v3885 = vpop.f32.mrf.mxu0
      %v3886 = vadd.f32 0.0, %v3885
      %v3887 = vpop.f32.mrf.mxu0
      %v3888 = vpop.f32.mrf.mxu0
      %v3889 = vadd.f32 0.0, %v3888
      %v3890 = vpop.f32.mrf.mxu0
      %3891 = vmatprep.mubr.bf16.mxu0 0
      %3892 = vmatmul.mubr.bf16.gmra.mxu0 %v3804
      %v3893 = vpop.f32.mrf.mxu0
      %v3894 = vadd.f32 0.0, %v3893
      %v3895 = vpop.f32.mrf.mxu0
      %v3896 = vpop.f32.mrf.mxu0
      %v3897 = vadd.f32 0.0, %v3896
      %v3898 = vpop.f32.mrf.mxu0
      %3899 = vmatprep.mubr.bf16.mxu0 0
      %3900 = vmatmul.mubr.bf16.gmra.mxu0 %v3807
      %v3901 = vpop.f32.mrf.mxu0
      %v3902 = vadd.f32 0.0, %v3901
      %v3903 = vpop.f32.mrf.mxu0
      %v3904 = vpop.f32.mrf.mxu0
      %v3905 = vadd.f32 0.0, %v3904
      %v3906 = vpop.f32.mrf.mxu0
      %3907 = vmatprep.mubr.bf16.mxu0 0
      %3908 = vmatmul.mubr.bf16.gmra.mxu0 %v3810
      %v3909 = vpop.f32.mrf.mxu0
      %v3910 = vadd.f32 0.0, %v3909
      %v3911 = vpop.f32.mrf.mxu0
      %v3912 = vpop.f32.mrf.mxu0
      %v3913 = vadd.f32 0.0, %v3912
      %v3914 = vpop.f32.mrf.mxu0
      %3915 = vmatprep.mubr.bf16.mxu0 0
      %3916 = vmatmul.mubr.bf16.gmra.mxu0 %v3813
      %v3917 = vpop.f32.mrf.mxu0
      %v3918 = vadd.f32 0.0, %v3917
      %v3919 = vpop.f32.mrf.mxu0
      %v3920 = vpop.f32.mrf.mxu0
      %v3921 = vadd.f32 0.0, %v3920
      %v3922 = vpop.f32.mrf.mxu0
      %3923 = vmatprep.mubr.bf16.mxu0 0
      %3924 = vmatmul.mubr.bf16.gmra.mxu0 %v3816
      %v3925 = vpop.f32.mrf.mxu0
      %v3926 = vadd.f32 0.0, %v3925
      %v3927 = vpop.f32.mrf.mxu0
      %v3928 = vpop.f32.mrf.mxu0
      %v3929 = vadd.f32 0.0, %v3928
      %v3930 = vpop.f32.mrf.mxu0
      %3931 = vmatprep.mubr.bf16.mxu0 0
      %3932 = vmatmul.mubr.bf16.gmra.mxu0 %v3819
      %v3933 = vpop.f32.mrf.mxu0
      %v3934 = vadd.f32 0.0, %v3933
      %v3935 = vpop.f32.mrf.mxu0
      %v3936 = vpop.f32.mrf.mxu0
      %v3937 = vadd.f32 0.0, %v3936
      %v3938 = vpop.f32.mrf.mxu0
      %3939 = vmatprep.mubr.bf16.mxu0 0
      %3940 = vmatmul.mubr.bf16.gmra.mxu0 %v3822
      %v3941 = vpop.f32.mrf.mxu0
      %v3942 = vadd.f32 0.0, %v3941
      %v3943 = vpop.f32.mrf.mxu0
      %v3944 = vpop.f32.mrf.mxu0
      %v3945 = vadd.f32 0.0, %v3944
      %v3946 = vpop.f32.mrf.mxu0
      %3947 = vmatprep.mubr.bf16.mxu0 0
      %3948 = vmatmul.mubr.bf16.gmra.mxu0 %v3825
      %v3949 = vpop.f32.mrf.mxu0
      %v3950 = vadd.f32 0.0, %v3949
      %v3951 = vpop.f32.mrf.mxu0
      %v3952 = vpop.f32.mrf.mxu0
      %v3953 = vadd.f32 0.0, %v3952
      %v3954 = vpop.f32.mrf.mxu0
      %3955 = vmatprep.mubr.bf16.mxu0 0
      %3956 = vmatmul.mubr.bf16.gmra.mxu0 %v3828
      %v3957 = vpop.f32.mrf.mxu0
      %v3958 = vadd.f32 0.0, %v3957
      %v3959 = vpop.f32.mrf.mxu0
      %v3960 = vpop.f32.mrf.mxu0
      %v3961 = vadd.f32 0.0, %v3960
      %v3962 = vpop.f32.mrf.mxu0
      %3963 = vmatprep.mubr.bf16.mxu0 0
      %3964 = vmatmul.mubr.bf16.gmra.mxu0 %v3831
      %v3965 = vpop.f32.mrf.mxu0
      %v3966 = vadd.f32 0.0, %v3965
      %v3967 = vpop.f32.mrf.mxu0
      %v3968 = vpop.f32.mrf.mxu0
      %v3969 = vadd.f32 0.0, %v3968
      %v3970 = vpop.f32.mrf.mxu0
      %3971 = vmatprep.mubr.bf16.mxu0 0
      %3972 = vmatmul.mubr.bf16.gmra.mxu0 %v3834
      %v3973 = vpop.f32.mrf.mxu0
      %v3974 = vadd.f32 0.0, %v3973
      %v3975 = vpop.f32.mrf.mxu0
      %v3976 = vpop.f32.mrf.mxu0
      %v3977 = vadd.f32 0.0, %v3976
      %v3978 = vpop.f32.mrf.mxu0
      %3979 = vmatprep.mubr.bf16.mxu0 0
      %3980 = vmatmul.mubr.bf16.gmra.mxu0 %v3837
      %v3981 = vpop.f32.mrf.mxu0
      %v3982 = vadd.f32 0.0, %v3981
      %v3983 = vpop.f32.mrf.mxu0
      %v3984 = vpop.f32.mrf.mxu0
      %v3985 = vadd.f32 0.0, %v3984
      %v3986 = vpop.f32.mrf.mxu0
      %3987 = vmatprep.mubr.bf16.mxu0 0
      %3988 = vmatmul.mubr.bf16.gmra.mxu0 %v3840
      %v3989 = vpop.f32.mrf.mxu0
      %v3990 = vadd.f32 0.0, %v3989
      %v3991 = vpop.f32.mrf.mxu0
      %v3992 = vpop.f32.mrf.mxu0
      %v3993 = vadd.f32 0.0, %v3992
      %v3994 = vpop.f32.mrf.mxu0
      %3995 = vmatprep.mubr.bf16.mxu0 0
      %3996 = vmatmul.mubr.bf16.gmra.mxu0 %v3843
      %v3997 = vpop.f32.mrf.mxu0
      %v3998 = vadd.f32 0.0, %v3997
      %v3999 = vpop.f32.mrf.mxu0
      %v4000 = vpop.f32.mrf.mxu0
      %v4001 = vadd.f32 0.0, %v4000
      %v4002 = vpop.f32.mrf.mxu0
      %4003 = vmatprep.mubr.bf16.mxu0 0
      %4004 = vmatmul.mubr.bf16.gmra.mxu0 %v3846
      %v4005 = vpop.f32.mrf.mxu0
      %v4006 = vadd.f32 0.0, %v4005
      %v4007 = vpop.f32.mrf.mxu0
      %v4008 = vpop.f32.mrf.mxu0
      %v4009 = vadd.f32 0.0, %v4008
      %v4010 = vpop.f32.mrf.mxu0
      %4011 = vdwg.mxu0
      %v4012 = vadd.f32 %v3718, %v3886
      %v4013 = vadd.f32 %v3719, %v3889
      %v4014 = vadd.f32 %v3720, %v3894
      %v4015 = vadd.f32 %v3721, %v3897
      %v4016 = vadd.f32 %v3722, %v3902
      %v4017 = vadd.f32 %v3723, %v3905
      %v4018 = vadd.f32 %v3724, %v3910
      %v4019 = vadd.f32 %v3725, %v3913
      %v4020 = vadd.f32 %v3726, %v3918
      %v4021 = vadd.f32 %v3727, %v3921
      %v4022 = vadd.f32 %v3728, %v3926
      %v4023 = vadd.f32 %v3729, %v3929
      %v4024 = vadd.f32 %v3730, %v3934
      %v4025 = vadd.f32 %v3731, %v3937
      %v4026 = vadd.f32 %v3732, %v3942
      %v4027 = vadd.f32 %v3733, %v3945
      %v4028 = vadd.f32 %v3734, %v3950
      %v4029 = vadd.f32 %v3735, %v3953
      %v4030 = vadd.f32 %v3736, %v3958
      %v4031 = vadd.f32 %v3737, %v3961
      %v4032 = vadd.f32 %v3738, %v3966
      %v4033 = vadd.f32 %v3739, %v3969
      %v4034 = vadd.f32 %v3740, %v3974
      %v4035 = vadd.f32 %v3741, %v3977
      %v4036 = vadd.f32 %v3742, %v3982
      %v4037 = vadd.f32 %v3743, %v3985
      %v4038 = vadd.f32 %v3744, %v3990
      %v4039 = vadd.f32 %v3745, %v3993
      %v4040 = vadd.f32 %v3746, %v3998
      %v4041 = vadd.f32 %v3747, %v4001
      %v4042 = vadd.f32 %v3748, %v4006
      %v4043 = vadd.f32 %v3749, %v4009
      %4044 = vst [vmem:[#allocation2] sm:$0xff] %v4012
      %4045 = vst [vmem:[#allocation2 + $0x8] sm:$0xff] %v4013
      %4046 = vst [vmem:[#allocation2 + $0x10] sm:$0xff] %v4014
      %4047 = vst [vmem:[#allocation2 + $0x18] sm:$0xff] %v4015
      %4048 = vst [vmem:[#allocation2 + $0x20] sm:$0xff] %v4016
      %4049 = vst [vmem:[#allocation2 + $0x28] sm:$0xff] %v4017
      %4050 = vst [vmem:[#allocation2 + $0x30] sm:$0xff] %v4018
      %4051 = vst [vmem:[#allocation2 + $0x38] sm:$0xff] %v4019
      %4052 = vst [vmem:[#allocation2 + $0x40] sm:$0xff] %v4020
      %4053 = vst [vmem:[#allocation2 + $0x48] sm:$0xff] %v4021
      %4054 = vst [vmem:[#allocation2 + $0x50] sm:$0xff] %v4022
      %4055 = vst [vmem:[#allocation2 + $0x58] sm:$0xff] %v4023
      %4056 = vst [vmem:[#allocation2 + $0x60] sm:$0xff] %v4024
      %4057 = vst [vmem:[#allocation2 + $0x68] sm:$0xff] %v4025
      %4058 = vst [vmem:[#allocation2 + $0x70] sm:$0xff] %v4026
      %4059 = vst [vmem:[#allocation2 + $0x78] sm:$0xff] %v4027
      %4060 = vst [vmem:[#allocation2 + $0x80] sm:$0xff] %v4028
      %4061 = vst [vmem:[#allocation2 + $0x88] sm:$0xff] %v4029
      %4062 = vst [vmem:[#allocation2 + $0x90] sm:$0xff] %v4030
      %4063 = vst [vmem:[#allocation2 + $0x98] sm:$0xff] %v4031
      %4064 = vst [vmem:[#allocation2 + $0xa0] sm:$0xff] %v4032
      %4065 = vst [vmem:[#allocation2 + $0xa8] sm:$0xff] %v4033
      %4066 = vst [vmem:[#allocation2 + $0xb0] sm:$0xff] %v4034
      %4067 = vst [vmem:[#allocation2 + $0xb8] sm:$0xff] %v4035
      %4068 = vst [vmem:[#allocation2 + $0xc0] sm:$0xff] %v4036
      %4069 = vst [vmem:[#allocation2 + $0xc8] sm:$0xff] %v4037
      %4070 = vst [vmem:[#allocation2 + $0xd0] sm:$0xff] %v4038
      %4071 = vst [vmem:[#allocation2 + $0xd8] sm:$0xff] %v4039
      %4072 = vst [vmem:[#allocation2 + $0xe0] sm:$0xff] %v4040
      %4073 = vst [vmem:[#allocation2 + $0xe8] sm:$0xff] %v4041
      %4074 = vst [vmem:[#allocation2 + $0xf0] sm:$0xff] %v4042
      %4075 = vst [vmem:[#allocation2 + $0xf8] sm:$0xff] %v4043
      %v4076 = vld [vmem:[#allocation2] sm:$0xff]
      %v4077 = vld [vmem:[#allocation2 + $0x8] sm:$0xff]
      %v4078 = vld [vmem:[#allocation2 + $0x10] sm:$0xff]
      %v4079 = vld [vmem:[#allocation2 + $0x18] sm:$0xff]
      %v4080 = vld [vmem:[#allocation2 + $0x20] sm:$0xff]
      %v4081 = vld [vmem:[#allocation2 + $0x28] sm:$0xff]
      %v4082 = vld [vmem:[#allocation2 + $0x30] sm:$0xff]
      %v4083 = vld [vmem:[#allocation2 + $0x38] sm:$0xff]
      %v4084 = vld [vmem:[#allocation2 + $0x40] sm:$0xff]
      %v4085 = vld [vmem:[#allocation2 + $0x48] sm:$0xff]
      %v4086 = vld [vmem:[#allocation2 + $0x50] sm:$0xff]
      %v4087 = vld [vmem:[#allocation2 + $0x58] sm:$0xff]
      %v4088 = vld [vmem:[#allocation2 + $0x60] sm:$0xff]
      %v4089 = vld [vmem:[#allocation2 + $0x68] sm:$0xff]
      %v4090 = vld [vmem:[#allocation2 + $0x70] sm:$0xff]
      %v4091 = vld [vmem:[#allocation2 + $0x78] sm:$0xff]
      %v4092 = vld [vmem:[#allocation2 + $0x80] sm:$0xff]
      %v4093 = vld [vmem:[#allocation2 + $0x88] sm:$0xff]
      %v4094 = vld [vmem:[#allocation2 + $0x90] sm:$0xff]
      %v4095 = vld [vmem:[#allocation2 + $0x98] sm:$0xff]
      %v4096 = vld [vmem:[#allocation2 + $0xa0] sm:$0xff]
      %v4097 = vld [vmem:[#allocation2 + $0xa8] sm:$0xff]
      %v4098 = vld [vmem:[#allocation2 + $0xb0] sm:$0xff]
      %v4099 = vld [vmem:[#allocation2 + $0xb8] sm:$0xff]
      %v4100 = vld [vmem:[#allocation2 + $0xc0] sm:$0xff]
      %v4101 = vld [vmem:[#allocation2 + $0xc8] sm:$0xff]
      %v4102 = vld [vmem:[#allocation2 + $0xd0] sm:$0xff]
      %v4103 = vld [vmem:[#allocation2 + $0xd8] sm:$0xff]
      %v4104 = vld [vmem:[#allocation2 + $0xe0] sm:$0xff]
      %v4105 = vld [vmem:[#allocation2 + $0xe8] sm:$0xff]
      %v4106 = vld [vmem:[#allocation2 + $0xf0] sm:$0xff]
      %v4107 = vld [vmem:[#allocation2 + $0xf8] sm:$0xff]
      %s4108 = scalar_lea.vmem %s1, 12
      %v4109 = vld [vmem:[%s4108] sm:$0x3]
      %v4110 = vunpack.c.l.b16 %v1399
      %v4111 = vunpack.c.l.b16 %v1400
      %v4112 = vunpack.c.l.b16 %v1402
      %v4113 = vunpack.c.l.b16 %v1403
      %v4114 = vunpack.c.l.b16 %v1405
      %v4115 = vunpack.c.l.b16 %v1406
      %v4116 = vunpack.c.l.b16 %v1408
      %v4117 = vunpack.c.l.b16 %v1409
      %v4118 = vunpack.c.l.b16 %v1411
      %v4119 = vunpack.c.l.b16 %v1412
      %v4120 = vunpack.c.l.b16 %v1414
      %v4121 = vunpack.c.l.b16 %v1415
      %v4122 = vunpack.c.l.b16 %v1417
      %v4123 = vunpack.c.l.b16 %v1418
      %v4124 = vunpack.c.l.b16 %v1420
      %v4125 = vunpack.c.l.b16 %v1421
      %v4126 = vunpack.c.l.b16 %v1423
      %v4127 = vunpack.c.l.b16 %v1424
      %v4128 = vunpack.c.l.b16 %v1426
      %v4129 = vunpack.c.l.b16 %v1427
      %v4130 = vunpack.c.l.b16 %v1429
      %v4131 = vunpack.c.l.b16 %v1430
      %v4132 = vunpack.c.l.b16 %v1432
      %v4133 = vunpack.c.l.b16 %v1433
      %v4134 = vunpack.c.l.b16 %v1435
      %v4135 = vunpack.c.l.b16 %v1436
      %v4136 = vunpack.c.l.b16 %v1438
      %v4137 = vunpack.c.l.b16 %v1439
      %v4138 = vunpack.c.l.b16 %v1441
      %v4139 = vunpack.c.l.b16 %v1442
      %v4140 = vunpack.c.l.b16 %v1444
      %v4141 = vunpack.c.l.b16 %v1445
      %v4142 = vpack.c.b16 %v4111, %v4110
      %v4143 = vpack.c.b16 %v4113, %v4112
      %v4144 = vpack.c.b16 %v4115, %v4114
      %v4145 = vpack.c.b16 %v4117, %v4116
      %v4146 = vpack.c.b16 %v4119, %v4118
      %v4147 = vpack.c.b16 %v4121, %v4120
      %v4148 = vpack.c.b16 %v4123, %v4122
      %v4149 = vpack.c.b16 %v4125, %v4124
      %v4150 = vpack.c.b16 %v4127, %v4126
      %v4151 = vpack.c.b16 %v4129, %v4128
      %v4152 = vpack.c.b16 %v4131, %v4130
      %v4153 = vpack.c.b16 %v4133, %v4132
      %v4154 = vpack.c.b16 %v4135, %v4134
      %v4155 = vpack.c.b16 %v4137, %v4136
      %v4156 = vpack.c.b16 %v4139, %v4138
      %v4157 = vpack.c.b16 %v4141, %v4140
      %v4159 = vsel %vm2040, %v4142, 0
      %v4162 = vsel %vm2040, %v4143, 0
      %v4165 = vsel %vm2040, %v4144, 0
      %v4168 = vsel %vm2040, %v4145, 0
      %v4171 = vsel %vm2040, %v4146, 0
      %v4174 = vsel %vm2040, %v4147, 0
      %v4177 = vsel %vm2040, %v4148, 0
      %v4180 = vsel %vm2040, %v4149, 0
      %v4183 = vsel %vm2040, %v4150, 0
      %v4186 = vsel %vm2040, %v4151, 0
      %v4189 = vsel %vm2040, %v4152, 0
      %v4192 = vsel %vm2040, %v4153, 0
      %v4195 = vsel %vm2040, %v4154, 0
      %v4198 = vsel %vm2040, %v4155, 0
      %v4201 = vsel %vm2040, %v4156, 0
      %v4204 = vsel %vm2040, %v4157, 0
      %v4207 = vsel %vm2089, %v4109, 0
      %4209 = vmatprep.subr.bf16.mxu0 0
      %4210 = vmatpush1.bf16.msra.mxu0 0
      %4211 = vmatprep.subr.bf16.mxu0 0
      %4212 = vmatpush1.bf16.msra.mxu0 0
      %4213 = vmatprep.subr.bf16.mxu0 0
      %4214 = vmatpush1.bf16.msra.mxu0 0
      %4215 = vmatprep.subr.bf16.mxu0 0
      %4216 = vmatpush1.bf16.msra.mxu0 0
      %4217 = vmatprep.subr.bf16.mxu0 0
      %4218 = vmatpush1.bf16.msra.mxu0 0
      %4219 = vmatprep.subr.bf16.mxu0 0
      %4220 = vmatpush1.bf16.msra.mxu0 0
      %4221 = vmatprep.subr.bf16.mxu0 0
      %4222 = vmatpush1.bf16.msra.mxu0 0
      %4223 = vmatprep.subr.bf16.mxu0 0
      %4224 = vmatpush1.bf16.msra.mxu0 %v4207
      %4225 = vmatprep.subr.bf16.mxu0 0
      %4226 = vmatpush2.bf16.msra.mxu0 0
      %4227 = vmatprep.subr.bf16.mxu0 0
      %4228 = vmatpush2.bf16.msra.mxu0 0
      %4229 = vmatprep.subr.bf16.mxu0 0
      %4230 = vmatpush2.bf16.msra.mxu0 0
      %4231 = vmatprep.subr.bf16.mxu0 0
      %4232 = vmatpush2.bf16.msra.mxu0 0
      %4233 = vmatprep.subr.bf16.mxu0 0
      %4234 = vmatpush2.bf16.msra.mxu0 0
      %4235 = vmatprep.subr.bf16.mxu0 0
      %4236 = vmatpush2.bf16.msra.mxu0 0
      %4237 = vmatprep.subr.bf16.mxu0 0
      %4238 = vmatpush2.bf16.msra.mxu0 0
      %4239 = vmatprep.subr.bf16.mxu0 0
      %4240 = vmatpush2.bf16.msra.mxu0 0
      %4241 = vmatprep.mubr.bf16.mxu0 0
      %4242 = vmatmul.mubr.bf16.gmra.mxu0 %v4159
      %v4243 = vpop.f32.mrf.mxu0
      %v4244 = vadd.f32 0.0, %v4243
      %v4245 = vpop.f32.mrf.mxu0
      %v4246 = vpop.f32.mrf.mxu0
      %v4247 = vadd.f32 0.0, %v4246
      %v4248 = vpop.f32.mrf.mxu0
      %4249 = vmatprep.mubr.bf16.mxu0 0
      %4250 = vmatmul.mubr.bf16.gmra.mxu0 %v4162
      %v4251 = vpop.f32.mrf.mxu0
      %v4252 = vadd.f32 0.0, %v4251
      %v4253 = vpop.f32.mrf.mxu0
      %v4254 = vpop.f32.mrf.mxu0
      %v4255 = vadd.f32 0.0, %v4254
      %v4256 = vpop.f32.mrf.mxu0
      %4257 = vmatprep.mubr.bf16.mxu0 0
      %4258 = vmatmul.mubr.bf16.gmra.mxu0 %v4165
      %v4259 = vpop.f32.mrf.mxu0
      %v4260 = vadd.f32 0.0, %v4259
      %v4261 = vpop.f32.mrf.mxu0
      %v4262 = vpop.f32.mrf.mxu0
      %v4263 = vadd.f32 0.0, %v4262
      %v4264 = vpop.f32.mrf.mxu0
      %4265 = vmatprep.mubr.bf16.mxu0 0
      %4266 = vmatmul.mubr.bf16.gmra.mxu0 %v4168
      %v4267 = vpop.f32.mrf.mxu0
      %v4268 = vadd.f32 0.0, %v4267
      %v4269 = vpop.f32.mrf.mxu0
      %v4270 = vpop.f32.mrf.mxu0
      %v4271 = vadd.f32 0.0, %v4270
      %v4272 = vpop.f32.mrf.mxu0
      %4273 = vmatprep.mubr.bf16.mxu0 0
      %4274 = vmatmul.mubr.bf16.gmra.mxu0 %v4171
      %v4275 = vpop.f32.mrf.mxu0
      %v4276 = vadd.f32 0.0, %v4275
      %v4277 = vpop.f32.mrf.mxu0
      %v4278 = vpop.f32.mrf.mxu0
      %v4279 = vadd.f32 0.0, %v4278
      %v4280 = vpop.f32.mrf.mxu0
      %4281 = vmatprep.mubr.bf16.mxu0 0
      %4282 = vmatmul.mubr.bf16.gmra.mxu0 %v4174
      %v4283 = vpop.f32.mrf.mxu0
      %v4284 = vadd.f32 0.0, %v4283
      %v4285 = vpop.f32.mrf.mxu0
      %v4286 = vpop.f32.mrf.mxu0
      %v4287 = vadd.f32 0.0, %v4286
      %v4288 = vpop.f32.mrf.mxu0
      %4289 = vmatprep.mubr.bf16.mxu0 0
      %4290 = vmatmul.mubr.bf16.gmra.mxu0 %v4177
      %v4291 = vpop.f32.mrf.mxu0
      %v4292 = vadd.f32 0.0, %v4291
      %v4293 = vpop.f32.mrf.mxu0
      %v4294 = vpop.f32.mrf.mxu0
      %v4295 = vadd.f32 0.0, %v4294
      %v4296 = vpop.f32.mrf.mxu0
      %4297 = vmatprep.mubr.bf16.mxu0 0
      %4298 = vmatmul.mubr.bf16.gmra.mxu0 %v4180
      %v4299 = vpop.f32.mrf.mxu0
      %v4300 = vadd.f32 0.0, %v4299
      %v4301 = vpop.f32.mrf.mxu0
      %v4302 = vpop.f32.mrf.mxu0
      %v4303 = vadd.f32 0.0, %v4302
      %v4304 = vpop.f32.mrf.mxu0
      %4305 = vmatprep.mubr.bf16.mxu0 0
      %4306 = vmatmul.mubr.bf16.gmra.mxu0 %v4183
      %v4307 = vpop.f32.mrf.mxu0
      %v4308 = vadd.f32 0.0, %v4307
      %v4309 = vpop.f32.mrf.mxu0
      %v4310 = vpop.f32.mrf.mxu0
      %v4311 = vadd.f32 0.0, %v4310
      %v4312 = vpop.f32.mrf.mxu0
      %4313 = vmatprep.mubr.bf16.mxu0 0
      %4314 = vmatmul.mubr.bf16.gmra.mxu0 %v4186
      %v4315 = vpop.f32.mrf.mxu0
      %v4316 = vadd.f32 0.0, %v4315
      %v4317 = vpop.f32.mrf.mxu0
      %v4318 = vpop.f32.mrf.mxu0
      %v4319 = vadd.f32 0.0, %v4318
      %v4320 = vpop.f32.mrf.mxu0
      %4321 = vmatprep.mubr.bf16.mxu0 0
      %4322 = vmatmul.mubr.bf16.gmra.mxu0 %v4189
      %v4323 = vpop.f32.mrf.mxu0
      %v4324 = vadd.f32 0.0, %v4323
      %v4325 = vpop.f32.mrf.mxu0
      %v4326 = vpop.f32.mrf.mxu0
      %v4327 = vadd.f32 0.0, %v4326
      %v4328 = vpop.f32.mrf.mxu0
      %4329 = vmatprep.mubr.bf16.mxu0 0
      %4330 = vmatmul.mubr.bf16.gmra.mxu0 %v4192
      %v4331 = vpop.f32.mrf.mxu0
      %v4332 = vadd.f32 0.0, %v4331
      %v4333 = vpop.f32.mrf.mxu0
      %v4334 = vpop.f32.mrf.mxu0
      %v4335 = vadd.f32 0.0, %v4334
      %v4336 = vpop.f32.mrf.mxu0
      %4337 = vmatprep.mubr.bf16.mxu0 0
      %4338 = vmatmul.mubr.bf16.gmra.mxu0 %v4195
      %v4339 = vpop.f32.mrf.mxu0
      %v4340 = vadd.f32 0.0, %v4339
      %v4341 = vpop.f32.mrf.mxu0
      %v4342 = vpop.f32.mrf.mxu0
      %v4343 = vadd.f32 0.0, %v4342
      %v4344 = vpop.f32.mrf.mxu0
      %4345 = vmatprep.mubr.bf16.mxu0 0
      %4346 = vmatmul.mubr.bf16.gmra.mxu0 %v4198
      %v4347 = vpop.f32.mrf.mxu0
      %v4348 = vadd.f32 0.0, %v4347
      %v4349 = vpop.f32.mrf.mxu0
      %v4350 = vpop.f32.mrf.mxu0
      %v4351 = vadd.f32 0.0, %v4350
      %v4352 = vpop.f32.mrf.mxu0
      %4353 = vmatprep.mubr.bf16.mxu0 0
      %4354 = vmatmul.mubr.bf16.gmra.mxu0 %v4201
      %v4355 = vpop.f32.mrf.mxu0
      %v4356 = vadd.f32 0.0, %v4355
      %v4357 = vpop.f32.mrf.mxu0
      %v4358 = vpop.f32.mrf.mxu0
      %v4359 = vadd.f32 0.0, %v4358
      %v4360 = vpop.f32.mrf.mxu0
      %4361 = vmatprep.mubr.bf16.mxu0 0
      %4362 = vmatmul.mubr.bf16.gmra.mxu0 %v4204
      %v4363 = vpop.f32.mrf.mxu0
      %v4364 = vadd.f32 0.0, %v4363
      %v4365 = vpop.f32.mrf.mxu0
      %v4366 = vpop.f32.mrf.mxu0
      %v4367 = vadd.f32 0.0, %v4366
      %v4368 = vpop.f32.mrf.mxu0
      %4369 = vdwg.mxu0
      %v4370 = vadd.f32 %v4076, %v4244
      %v4371 = vadd.f32 %v4077, %v4247
      %v4372 = vadd.f32 %v4078, %v4252
      %v4373 = vadd.f32 %v4079, %v4255
      %v4374 = vadd.f32 %v4080, %v4260
      %v4375 = vadd.f32 %v4081, %v4263
      %v4376 = vadd.f32 %v4082, %v4268
      %v4377 = vadd.f32 %v4083, %v4271
      %v4378 = vadd.f32 %v4084, %v4276
      %v4379 = vadd.f32 %v4085, %v4279
      %v4380 = vadd.f32 %v4086, %v4284
      %v4381 = vadd.f32 %v4087, %v4287
      %v4382 = vadd.f32 %v4088, %v4292
      %v4383 = vadd.f32 %v4089, %v4295
      %v4384 = vadd.f32 %v4090, %v4300
      %v4385 = vadd.f32 %v4091, %v4303
      %v4386 = vadd.f32 %v4092, %v4308
      %v4387 = vadd.f32 %v4093, %v4311
      %v4388 = vadd.f32 %v4094, %v4316
      %v4389 = vadd.f32 %v4095, %v4319
      %v4390 = vadd.f32 %v4096, %v4324
      %v4391 = vadd.f32 %v4097, %v4327
      %v4392 = vadd.f32 %v4098, %v4332
      %v4393 = vadd.f32 %v4099, %v4335
      %v4394 = vadd.f32 %v4100, %v4340
      %v4395 = vadd.f32 %v4101, %v4343
      %v4396 = vadd.f32 %v4102, %v4348
      %v4397 = vadd.f32 %v4103, %v4351
      %v4398 = vadd.f32 %v4104, %v4356
      %v4399 = vadd.f32 %v4105, %v4359
      %v4400 = vadd.f32 %v4106, %v4364
      %v4401 = vadd.f32 %v4107, %v4367
      %4402 = vst [vmem:[#allocation2] sm:$0xff] %v4370
      %4403 = vst [vmem:[#allocation2 + $0x8] sm:$0xff] %v4371
      %4404 = vst [vmem:[#allocation2 + $0x10] sm:$0xff] %v4372
      %4405 = vst [vmem:[#allocation2 + $0x18] sm:$0xff] %v4373
      %4406 = vst [vmem:[#allocation2 + $0x20] sm:$0xff] %v4374
      %4407 = vst [vmem:[#allocation2 + $0x28] sm:$0xff] %v4375
      %4408 = vst [vmem:[#allocation2 + $0x30] sm:$0xff] %v4376
      %4409 = vst [vmem:[#allocation2 + $0x38] sm:$0xff] %v4377
      %4410 = vst [vmem:[#allocation2 + $0x40] sm:$0xff] %v4378
      %4411 = vst [vmem:[#allocation2 + $0x48] sm:$0xff] %v4379
      %4412 = vst [vmem:[#allocation2 + $0x50] sm:$0xff] %v4380
      %4413 = vst [vmem:[#allocation2 + $0x58] sm:$0xff] %v4381
      %4414 = vst [vmem:[#allocation2 + $0x60] sm:$0xff] %v4382
      %4415 = vst [vmem:[#allocation2 + $0x68] sm:$0xff] %v4383
      %4416 = vst [vmem:[#allocation2 + $0x70] sm:$0xff] %v4384
      %4417 = vst [vmem:[#allocation2 + $0x78] sm:$0xff] %v4385
      %4418 = vst [vmem:[#allocation2 + $0x80] sm:$0xff] %v4386
      %4419 = vst [vmem:[#allocation2 + $0x88] sm:$0xff] %v4387
      %4420 = vst [vmem:[#allocation2 + $0x90] sm:$0xff] %v4388
      %4421 = vst [vmem:[#allocation2 + $0x98] sm:$0xff] %v4389
      %4422 = vst [vmem:[#allocation2 + $0xa0] sm:$0xff] %v4390
      %4423 = vst [vmem:[#allocation2 + $0xa8] sm:$0xff] %v4391
      %4424 = vst [vmem:[#allocation2 + $0xb0] sm:$0xff] %v4392
      %4425 = vst [vmem:[#allocation2 + $0xb8] sm:$0xff] %v4393
      %4426 = vst [vmem:[#allocation2 + $0xc0] sm:$0xff] %v4394
      %4427 = vst [vmem:[#allocation2 + $0xc8] sm:$0xff] %v4395
      %4428 = vst [vmem:[#allocation2 + $0xd0] sm:$0xff] %v4396
      %4429 = vst [vmem:[#allocation2 + $0xd8] sm:$0xff] %v4397
      %4430 = vst [vmem:[#allocation2 + $0xe0] sm:$0xff] %v4398
      %4431 = vst [vmem:[#allocation2 + $0xe8] sm:$0xff] %v4399
      %4432 = vst [vmem:[#allocation2 + $0xf0] sm:$0xff] %v4400
      %4433 = vst [vmem:[#allocation2 + $0xf8] sm:$0xff] %v4401
      %v4434 = vld [vmem:[#allocation2] sm:$0xff]
      %v4435 = vld [vmem:[#allocation2 + $0x8] sm:$0xff]
      %v4436 = vld [vmem:[#allocation2 + $0x10] sm:$0xff]
      %v4437 = vld [vmem:[#allocation2 + $0x18] sm:$0xff]
      %v4438 = vld [vmem:[#allocation2 + $0x20] sm:$0xff]
      %v4439 = vld [vmem:[#allocation2 + $0x28] sm:$0xff]
      %v4440 = vld [vmem:[#allocation2 + $0x30] sm:$0xff]
      %v4441 = vld [vmem:[#allocation2 + $0x38] sm:$0xff]
      %v4442 = vld [vmem:[#allocation2 + $0x40] sm:$0xff]
      %v4443 = vld [vmem:[#allocation2 + $0x48] sm:$0xff]
      %v4444 = vld [vmem:[#allocation2 + $0x50] sm:$0xff]
      %v4445 = vld [vmem:[#allocation2 + $0x58] sm:$0xff]
      %v4446 = vld [vmem:[#allocation2 + $0x60] sm:$0xff]
      %v4447 = vld [vmem:[#allocation2 + $0x68] sm:$0xff]
      %v4448 = vld [vmem:[#allocation2 + $0x70] sm:$0xff]
      %v4449 = vld [vmem:[#allocation2 + $0x78] sm:$0xff]
      %v4450 = vld [vmem:[#allocation2 + $0x80] sm:$0xff]
      %v4451 = vld [vmem:[#allocation2 + $0x88] sm:$0xff]
      %v4452 = vld [vmem:[#allocation2 + $0x90] sm:$0xff]
      %v4453 = vld [vmem:[#allocation2 + $0x98] sm:$0xff]
      %v4454 = vld [vmem:[#allocation2 + $0xa0] sm:$0xff]
      %v4455 = vld [vmem:[#allocation2 + $0xa8] sm:$0xff]
      %v4456 = vld [vmem:[#allocation2 + $0xb0] sm:$0xff]
      %v4457 = vld [vmem:[#allocation2 + $0xb8] sm:$0xff]
      %v4458 = vld [vmem:[#allocation2 + $0xc0] sm:$0xff]
      %v4459 = vld [vmem:[#allocation2 + $0xc8] sm:$0xff]
      %v4460 = vld [vmem:[#allocation2 + $0xd0] sm:$0xff]
      %v4461 = vld [vmem:[#allocation2 + $0xd8] sm:$0xff]
      %v4462 = vld [vmem:[#allocation2 + $0xe0] sm:$0xff]
      %v4463 = vld [vmem:[#allocation2 + $0xe8] sm:$0xff]
      %v4464 = vld [vmem:[#allocation2 + $0xf0] sm:$0xff]
      %v4465 = vld [vmem:[#allocation2 + $0xf8] sm:$0xff]
      %s4466 = scalar_lea.vmem %s1, 14
      %v4467 = vld [vmem:[%s4466] sm:$0x3]
      %v4468 = vunpack.c.l.b16 %v1460
      %v4469 = vunpack.c.l.b16 %v1470
      %v4470 = vunpack.c.l.b16 %v1484
      %v4471 = vunpack.c.l.b16 %v1494
      %v4472 = vunpack.c.l.b16 %v1508
      %v4473 = vunpack.c.l.b16 %v1518
      %v4474 = vunpack.c.l.b16 %v1532
      %v4475 = vunpack.c.l.b16 %v1542
      %v4476 = vunpack.c.l.b16 %v1556
      %v4477 = vunpack.c.l.b16 %v1566
      %v4478 = vunpack.c.l.b16 %v1580
      %v4479 = vunpack.c.l.b16 %v1590
      %v4480 = vunpack.c.l.b16 %v1604
      %v4481 = vunpack.c.l.b16 %v1614
      %v4482 = vunpack.c.l.b16 %v1628
      %v4483 = vunpack.c.l.b16 %v1638
      %v4484 = vunpack.c.l.b16 %v1652
      %v4485 = vunpack.c.l.b16 %v1662
      %v4486 = vunpack.c.l.b16 %v1676
      %v4487 = vunpack.c.l.b16 %v1686
      %v4488 = vunpack.c.l.b16 %v1700
      %v4489 = vunpack.c.l.b16 %v1710
      %v4490 = vunpack.c.l.b16 %v1724
      %v4491 = vunpack.c.l.b16 %v1734
      %v4492 = vunpack.c.l.b16 %v1748
      %v4493 = vunpack.c.l.b16 %v1758
      %v4494 = vunpack.c.l.b16 %v1772
      %v4495 = vunpack.c.l.b16 %v1782
      %v4496 = vunpack.c.l.b16 %v1796
      %v4497 = vunpack.c.l.b16 %v1806
      %v4498 = vunpack.c.l.b16 %v1820
      %v4499 = vunpack.c.l.b16 %v1830
      %v4500 = vpack.c.b16 %v4469, %v4468
      %v4501 = vpack.c.b16 %v4471, %v4470
      %v4502 = vpack.c.b16 %v4473, %v4472
      %v4503 = vpack.c.b16 %v4475, %v4474
      %v4504 = vpack.c.b16 %v4477, %v4476
      %v4505 = vpack.c.b16 %v4479, %v4478
      %v4506 = vpack.c.b16 %v4481, %v4480
      %v4507 = vpack.c.b16 %v4483, %v4482
      %v4508 = vpack.c.b16 %v4485, %v4484
      %v4509 = vpack.c.b16 %v4487, %v4486
      %v4510 = vpack.c.b16 %v4489, %v4488
      %v4511 = vpack.c.b16 %v4491, %v4490
      %v4512 = vpack.c.b16 %v4493, %v4492
      %v4513 = vpack.c.b16 %v4495, %v4494
      %v4514 = vpack.c.b16 %v4497, %v4496
      %v4515 = vpack.c.b16 %v4499, %v4498
      %v4517 = vsel %vm2040, %v4500, 0
      %v4520 = vsel %vm2040, %v4501, 0
      %v4523 = vsel %vm2040, %v4502, 0
      %v4526 = vsel %vm2040, %v4503, 0
      %v4529 = vsel %vm2040, %v4504, 0
      %v4532 = vsel %vm2040, %v4505, 0
      %v4535 = vsel %vm2040, %v4506, 0
      %v4538 = vsel %vm2040, %v4507, 0
      %v4541 = vsel %vm2040, %v4508, 0
      %v4544 = vsel %vm2040, %v4509, 0
      %v4547 = vsel %vm2040, %v4510, 0
      %v4550 = vsel %vm2040, %v4511, 0
      %v4553 = vsel %vm2040, %v4512, 0
      %v4556 = vsel %vm2040, %v4513, 0
      %v4559 = vsel %vm2040, %v4514, 0
      %v4562 = vsel %vm2040, %v4515, 0
      %v4565 = vsel %vm2089, %v4467, 0
      %4567 = vmatprep.subr.bf16.mxu0 0
      %4568 = vmatpush1.bf16.msra.mxu0 0
      %4569 = vmatprep.subr.bf16.mxu0 0
      %4570 = vmatpush1.bf16.msra.mxu0 0
      %4571 = vmatprep.subr.bf16.mxu0 0
      %4572 = vmatpush1.bf16.msra.mxu0 0
      %4573 = vmatprep.subr.bf16.mxu0 0
      %4574 = vmatpush1.bf16.msra.mxu0 0
      %4575 = vmatprep.subr.bf16.mxu0 0
      %4576 = vmatpush1.bf16.msra.mxu0 0
      %4577 = vmatprep.subr.bf16.mxu0 0
      %4578 = vmatpush1.bf16.msra.mxu0 0
      %4579 = vmatprep.subr.bf16.mxu0 0
      %4580 = vmatpush1.bf16.msra.mxu0 0
      %4581 = vmatprep.subr.bf16.mxu0 0
      %4582 = vmatpush1.bf16.msra.mxu0 %v4565
      %4583 = vmatprep.subr.bf16.mxu0 0
      %4584 = vmatpush2.bf16.msra.mxu0 0
      %4585 = vmatprep.subr.bf16.mxu0 0
      %4586 = vmatpush2.bf16.msra.mxu0 0
      %4587 = vmatprep.subr.bf16.mxu0 0
      %4588 = vmatpush2.bf16.msra.mxu0 0
      %4589 = vmatprep.subr.bf16.mxu0 0
      %4590 = vmatpush2.bf16.msra.mxu0 0
      %4591 = vmatprep.subr.bf16.mxu0 0
      %4592 = vmatpush2.bf16.msra.mxu0 0
      %4593 = vmatprep.subr.bf16.mxu0 0
      %4594 = vmatpush2.bf16.msra.mxu0 0
      %4595 = vmatprep.subr.bf16.mxu0 0
      %4596 = vmatpush2.bf16.msra.mxu0 0
      %4597 = vmatprep.subr.bf16.mxu0 0
      %4598 = vmatpush2.bf16.msra.mxu0 0
      %4599 = vmatprep.mubr.bf16.mxu0 0
      %4600 = vmatmul.mubr.bf16.gmra.mxu0 %v4517
      %v4601 = vpop.f32.mrf.mxu0
      %v4602 = vadd.f32 0.0, %v4601
      %v4603 = vpop.f32.mrf.mxu0
      %v4604 = vpop.f32.mrf.mxu0
      %v4605 = vadd.f32 0.0, %v4604
      %v4606 = vpop.f32.mrf.mxu0
      %4607 = vmatprep.mubr.bf16.mxu0 0
      %4608 = vmatmul.mubr.bf16.gmra.mxu0 %v4520
      %v4609 = vpop.f32.mrf.mxu0
      %v4610 = vadd.f32 0.0, %v4609
      %v4611 = vpop.f32.mrf.mxu0
      %v4612 = vpop.f32.mrf.mxu0
      %v4613 = vadd.f32 0.0, %v4612
      %v4614 = vpop.f32.mrf.mxu0
      %4615 = vmatprep.mubr.bf16.mxu0 0
      %4616 = vmatmul.mubr.bf16.gmra.mxu0 %v4523
      %v4617 = vpop.f32.mrf.mxu0
      %v4618 = vadd.f32 0.0, %v4617
      %v4619 = vpop.f32.mrf.mxu0
      %v4620 = vpop.f32.mrf.mxu0
      %v4621 = vadd.f32 0.0, %v4620
      %v4622 = vpop.f32.mrf.mxu0
      %4623 = vmatprep.mubr.bf16.mxu0 0
      %4624 = vmatmul.mubr.bf16.gmra.mxu0 %v4526
      %v4625 = vpop.f32.mrf.mxu0
      %v4626 = vadd.f32 0.0, %v4625
      %v4627 = vpop.f32.mrf.mxu0
      %v4628 = vpop.f32.mrf.mxu0
      %v4629 = vadd.f32 0.0, %v4628
      %v4630 = vpop.f32.mrf.mxu0
      %4631 = vmatprep.mubr.bf16.mxu0 0
      %4632 = vmatmul.mubr.bf16.gmra.mxu0 %v4529
      %v4633 = vpop.f32.mrf.mxu0
      %v4634 = vadd.f32 0.0, %v4633
      %v4635 = vpop.f32.mrf.mxu0
      %v4636 = vpop.f32.mrf.mxu0
      %v4637 = vadd.f32 0.0, %v4636
      %v4638 = vpop.f32.mrf.mxu0
      %4639 = vmatprep.mubr.bf16.mxu0 0
      %4640 = vmatmul.mubr.bf16.gmra.mxu0 %v4532
      %v4641 = vpop.f32.mrf.mxu0
      %v4642 = vadd.f32 0.0, %v4641
      %v4643 = vpop.f32.mrf.mxu0
      %v4644 = vpop.f32.mrf.mxu0
      %v4645 = vadd.f32 0.0, %v4644
      %v4646 = vpop.f32.mrf.mxu0
      %4647 = vmatprep.mubr.bf16.mxu0 0
      %4648 = vmatmul.mubr.bf16.gmra.mxu0 %v4535
      %v4649 = vpop.f32.mrf.mxu0
      %v4650 = vadd.f32 0.0, %v4649
      %v4651 = vpop.f32.mrf.mxu0
      %v4652 = vpop.f32.mrf.mxu0
      %v4653 = vadd.f32 0.0, %v4652
      %v4654 = vpop.f32.mrf.mxu0
      %4655 = vmatprep.mubr.bf16.mxu0 0
      %4656 = vmatmul.mubr.bf16.gmra.mxu0 %v4538
      %v4657 = vpop.f32.mrf.mxu0
      %v4658 = vadd.f32 0.0, %v4657
      %v4659 = vpop.f32.mrf.mxu0
      %v4660 = vpop.f32.mrf.mxu0
      %v4661 = vadd.f32 0.0, %v4660
      %v4662 = vpop.f32.mrf.mxu0
      %4663 = vmatprep.mubr.bf16.mxu0 0
      %4664 = vmatmul.mubr.bf16.gmra.mxu0 %v4541
      %v4665 = vpop.f32.mrf.mxu0
      %v4666 = vadd.f32 0.0, %v4665
      %v4667 = vpop.f32.mrf.mxu0
      %v4668 = vpop.f32.mrf.mxu0
      %v4669 = vadd.f32 0.0, %v4668
      %v4670 = vpop.f32.mrf.mxu0
      %4671 = vmatprep.mubr.bf16.mxu0 0
      %4672 = vmatmul.mubr.bf16.gmra.mxu0 %v4544
      %v4673 = vpop.f32.mrf.mxu0
      %v4674 = vadd.f32 0.0, %v4673
      %v4675 = vpop.f32.mrf.mxu0
      %v4676 = vpop.f32.mrf.mxu0
      %v4677 = vadd.f32 0.0, %v4676
      %v4678 = vpop.f32.mrf.mxu0
      %4679 = vmatprep.mubr.bf16.mxu0 0
      %4680 = vmatmul.mubr.bf16.gmra.mxu0 %v4547
      %v4681 = vpop.f32.mrf.mxu0
      %v4682 = vadd.f32 0.0, %v4681
      %v4683 = vpop.f32.mrf.mxu0
      %v4684 = vpop.f32.mrf.mxu0
      %v4685 = vadd.f32 0.0, %v4684
      %v4686 = vpop.f32.mrf.mxu0
      %4687 = vmatprep.mubr.bf16.mxu0 0
      %4688 = vmatmul.mubr.bf16.gmra.mxu0 %v4550
      %v4689 = vpop.f32.mrf.mxu0
      %v4690 = vadd.f32 0.0, %v4689
      %v4691 = vpop.f32.mrf.mxu0
      %v4692 = vpop.f32.mrf.mxu0
      %v4693 = vadd.f32 0.0, %v4692
      %v4694 = vpop.f32.mrf.mxu0
      %4695 = vmatprep.mubr.bf16.mxu0 0
      %4696 = vmatmul.mubr.bf16.gmra.mxu0 %v4553
      %v4697 = vpop.f32.mrf.mxu0
      %v4698 = vadd.f32 0.0, %v4697
      %v4699 = vpop.f32.mrf.mxu0
      %v4700 = vpop.f32.mrf.mxu0
      %v4701 = vadd.f32 0.0, %v4700
      %v4702 = vpop.f32.mrf.mxu0
      %4703 = vmatprep.mubr.bf16.mxu0 0
      %4704 = vmatmul.mubr.bf16.gmra.mxu0 %v4556
      %v4705 = vpop.f32.mrf.mxu0
      %v4706 = vadd.f32 0.0, %v4705
      %v4707 = vpop.f32.mrf.mxu0
      %v4708 = vpop.f32.mrf.mxu0
      %v4709 = vadd.f32 0.0, %v4708
      %v4710 = vpop.f32.mrf.mxu0
      %4711 = vmatprep.mubr.bf16.mxu0 0
      %4712 = vmatmul.mubr.bf16.gmra.mxu0 %v4559
      %v4713 = vpop.f32.mrf.mxu0
      %v4714 = vadd.f32 0.0, %v4713
      %v4715 = vpop.f32.mrf.mxu0
      %v4716 = vpop.f32.mrf.mxu0
      %v4717 = vadd.f32 0.0, %v4716
      %v4718 = vpop.f32.mrf.mxu0
      %4719 = vmatprep.mubr.bf16.mxu0 0
      %4720 = vmatmul.mubr.bf16.gmra.mxu0 %v4562
      %v4721 = vpop.f32.mrf.mxu0
      %v4722 = vadd.f32 0.0, %v4721
      %v4723 = vpop.f32.mrf.mxu0
      %v4724 = vpop.f32.mrf.mxu0
      %v4725 = vadd.f32 0.0, %v4724
      %v4726 = vpop.f32.mrf.mxu0
      %4727 = vdwg.mxu0
      %v4728 = vadd.f32 %v4434, %v4602
      %v4729 = vadd.f32 %v4435, %v4605
      %v4730 = vadd.f32 %v4436, %v4610
      %v4731 = vadd.f32 %v4437, %v4613
      %v4732 = vadd.f32 %v4438, %v4618
      %v4733 = vadd.f32 %v4439, %v4621
      %v4734 = vadd.f32 %v4440, %v4626
      %v4735 = vadd.f32 %v4441, %v4629
      %v4736 = vadd.f32 %v4442, %v4634
      %v4737 = vadd.f32 %v4443, %v4637
      %v4738 = vadd.f32 %v4444, %v4642
      %v4739 = vadd.f32 %v4445, %v4645
      %v4740 = vadd.f32 %v4446, %v4650
      %v4741 = vadd.f32 %v4447, %v4653
      %v4742 = vadd.f32 %v4448, %v4658
      %v4743 = vadd.f32 %v4449, %v4661
      %v4744 = vadd.f32 %v4450, %v4666
      %v4745 = vadd.f32 %v4451, %v4669
      %v4746 = vadd.f32 %v4452, %v4674
      %v4747 = vadd.f32 %v4453, %v4677
      %v4748 = vadd.f32 %v4454, %v4682
      %v4749 = vadd.f32 %v4455, %v4685
      %v4750 = vadd.f32 %v4456, %v4690
      %v4751 = vadd.f32 %v4457, %v4693
      %v4752 = vadd.f32 %v4458, %v4698
      %v4753 = vadd.f32 %v4459, %v4701
      %v4754 = vadd.f32 %v4460, %v4706
      %v4755 = vadd.f32 %v4461, %v4709
      %v4756 = vadd.f32 %v4462, %v4714
      %v4757 = vadd.f32 %v4463, %v4717
      %v4758 = vadd.f32 %v4464, %v4722
      %v4759 = vadd.f32 %v4465, %v4725
      %4760 = vst [vmem:[#allocation2] sm:$0xff] %v4728
      %4761 = vst [vmem:[#allocation2 + $0x8] sm:$0xff] %v4729
      %4762 = vst [vmem:[#allocation2 + $0x10] sm:$0xff] %v4730
      %4763 = vst [vmem:[#allocation2 + $0x18] sm:$0xff] %v4731
      %4764 = vst [vmem:[#allocation2 + $0x20] sm:$0xff] %v4732
      %4765 = vst [vmem:[#allocation2 + $0x28] sm:$0xff] %v4733
      %4766 = vst [vmem:[#allocation2 + $0x30] sm:$0xff] %v4734
      %4767 = vst [vmem:[#allocation2 + $0x38] sm:$0xff] %v4735
      %4768 = vst [vmem:[#allocation2 + $0x40] sm:$0xff] %v4736
      %4769 = vst [vmem:[#allocation2 + $0x48] sm:$0xff] %v4737
      %4770 = vst [vmem:[#allocation2 + $0x50] sm:$0xff] %v4738
      %4771 = vst [vmem:[#allocation2 + $0x58] sm:$0xff] %v4739
      %4772 = vst [vmem:[#allocation2 + $0x60] sm:$0xff] %v4740
      %4773 = vst [vmem:[#allocation2 + $0x68] sm:$0xff] %v4741
      %4774 = vst [vmem:[#allocation2 + $0x70] sm:$0xff] %v4742
      %4775 = vst [vmem:[#allocation2 + $0x78] sm:$0xff] %v4743
      %4776 = vst [vmem:[#allocation2 + $0x80] sm:$0xff] %v4744
      %4777 = vst [vmem:[#allocation2 + $0x88] sm:$0xff] %v4745
      %4778 = vst [vmem:[#allocation2 + $0x90] sm:$0xff] %v4746
      %4779 = vst [vmem:[#allocation2 + $0x98] sm:$0xff] %v4747
      %4780 = vst [vmem:[#allocation2 + $0xa0] sm:$0xff] %v4748
      %4781 = vst [vmem:[#allocation2 + $0xa8] sm:$0xff] %v4749
      %4782 = vst [vmem:[#allocation2 + $0xb0] sm:$0xff] %v4750
      %4783 = vst [vmem:[#allocation2 + $0xb8] sm:$0xff] %v4751
      %4784 = vst [vmem:[#allocation2 + $0xc0] sm:$0xff] %v4752
      %4785 = vst [vmem:[#allocation2 + $0xc8] sm:$0xff] %v4753
      %4786 = vst [vmem:[#allocation2 + $0xd0] sm:$0xff] %v4754
      %4787 = vst [vmem:[#allocation2 + $0xd8] sm:$0xff] %v4755
      %4788 = vst [vmem:[#allocation2 + $0xe0] sm:$0xff] %v4756
      %4789 = vst [vmem:[#allocation2 + $0xe8] sm:$0xff] %v4757
      %4790 = vst [vmem:[#allocation2 + $0xf0] sm:$0xff] %v4758
      %4791 = vst [vmem:[#allocation2 + $0xf8] sm:$0xff] %v4759
      %v4792 = vld [vmem:[#allocation2] sm:$0xff]
      %v4793 = vld [vmem:[#allocation2 + $0x8] sm:$0xff]
      %v4794 = vld [vmem:[#allocation2 + $0x10] sm:$0xff]
      %v4795 = vld [vmem:[#allocation2 + $0x18] sm:$0xff]
      %v4796 = vld [vmem:[#allocation2 + $0x20] sm:$0xff]
      %v4797 = vld [vmem:[#allocation2 + $0x28] sm:$0xff]
      %v4798 = vld [vmem:[#allocation2 + $0x30] sm:$0xff]
      %v4799 = vld [vmem:[#allocation2 + $0x38] sm:$0xff]
      %v4800 = vld [vmem:[#allocation2 + $0x40] sm:$0xff]
      %v4801 = vld [vmem:[#allocation2 + $0x48] sm:$0xff]
      %v4802 = vld [vmem:[#allocation2 + $0x50] sm:$0xff]
      %v4803 = vld [vmem:[#allocation2 + $0x58] sm:$0xff]
      %v4804 = vld [vmem:[#allocation2 + $0x60] sm:$0xff]
      %v4805 = vld [vmem:[#allocation2 + $0x68] sm:$0xff]
      %v4806 = vld [vmem:[#allocation2 + $0x70] sm:$0xff]
      %v4807 = vld [vmem:[#allocation2 + $0x78] sm:$0xff]
      %v4808 = vld [vmem:[#allocation2 + $0x80] sm:$0xff]
      %v4809 = vld [vmem:[#allocation2 + $0x88] sm:$0xff]
      %v4810 = vld [vmem:[#allocation2 + $0x90] sm:$0xff]
      %v4811 = vld [vmem:[#allocation2 + $0x98] sm:$0xff]
      %v4812 = vld [vmem:[#allocation2 + $0xa0] sm:$0xff]
      %v4813 = vld [vmem:[#allocation2 + $0xa8] sm:$0xff]
      %v4814 = vld [vmem:[#allocation2 + $0xb0] sm:$0xff]
      %v4815 = vld [vmem:[#allocation2 + $0xb8] sm:$0xff]
      %v4816 = vld [vmem:[#allocation2 + $0xc0] sm:$0xff]
      %v4817 = vld [vmem:[#allocation2 + $0xc8] sm:$0xff]
      %v4818 = vld [vmem:[#allocation2 + $0xd0] sm:$0xff]
      %v4819 = vld [vmem:[#allocation2 + $0xd8] sm:$0xff]
      %v4820 = vld [vmem:[#allocation2 + $0xe0] sm:$0xff]
      %v4821 = vld [vmem:[#allocation2 + $0xe8] sm:$0xff]
      %v4822 = vld [vmem:[#allocation2 + $0xf0] sm:$0xff]
      %v4823 = vld [vmem:[#allocation2 + $0xf8] sm:$0xff]
      %s4824 = scalar_lea.vmem %s1, 16
      %v4825 = vld [vmem:[%s4824] sm:$0x3]
      %v4826 = vunpack.c.l.b16 %v1882
      %v4827 = vunpack.c.l.b16 %v1885
      %v4828 = vunpack.c.l.b16 %v1889
      %v4829 = vunpack.c.l.b16 %v1892
      %v4830 = vunpack.c.l.b16 %v1896
      %v4831 = vunpack.c.l.b16 %v1899
      %v4832 = vunpack.c.l.b16 %v1903
      %v4833 = vunpack.c.l.b16 %v1906
      %v4834 = vunpack.c.l.b16 %v1910
      %v4835 = vunpack.c.l.b16 %v1913
      %v4836 = vunpack.c.l.b16 %v1917
      %v4837 = vunpack.c.l.b16 %v1920
      %v4838 = vunpack.c.l.b16 %v1924
      %v4839 = vunpack.c.l.b16 %v1927
      %v4840 = vunpack.c.l.b16 %v1931
      %v4841 = vunpack.c.l.b16 %v1934
      %v4842 = vunpack.c.l.b16 %v1938
      %v4843 = vunpack.c.l.b16 %v1941
      %v4844 = vunpack.c.l.b16 %v1945
      %v4845 = vunpack.c.l.b16 %v1948
      %v4846 = vunpack.c.l.b16 %v1952
      %v4847 = vunpack.c.l.b16 %v1955
      %v4848 = vunpack.c.l.b16 %v1959
      %v4849 = vunpack.c.l.b16 %v1962
      %v4850 = vunpack.c.l.b16 %v1966
      %v4851 = vunpack.c.l.b16 %v1969
      %v4852 = vunpack.c.l.b16 %v1973
      %v4853 = vunpack.c.l.b16 %v1976
      %v4854 = vunpack.c.l.b16 %v1980
      %v4855 = vunpack.c.l.b16 %v1983
      %v4856 = vunpack.c.l.b16 %v1987
      %v4857 = vunpack.c.l.b16 %v1990
      %v4858 = vpack.c.b16 %v4827, %v4826
      %v4859 = vpack.c.b16 %v4829, %v4828
      %v4860 = vpack.c.b16 %v4831, %v4830
      %v4861 = vpack.c.b16 %v4833, %v4832
      %v4862 = vpack.c.b16 %v4835, %v4834
      %v4863 = vpack.c.b16 %v4837, %v4836
      %v4864 = vpack.c.b16 %v4839, %v4838
      %v4865 = vpack.c.b16 %v4841, %v4840
      %v4866 = vpack.c.b16 %v4843, %v4842
      %v4867 = vpack.c.b16 %v4845, %v4844
      %v4868 = vpack.c.b16 %v4847, %v4846
      %v4869 = vpack.c.b16 %v4849, %v4848
      %v4870 = vpack.c.b16 %v4851, %v4850
      %v4871 = vpack.c.b16 %v4853, %v4852
      %v4872 = vpack.c.b16 %v4855, %v4854
      %v4873 = vpack.c.b16 %v4857, %v4856
      %v4875 = vsel %vm2040, %v4858, 0
      %v4878 = vsel %vm2040, %v4859, 0
      %v4881 = vsel %vm2040, %v4860, 0
      %v4884 = vsel %vm2040, %v4861, 0
      %v4887 = vsel %vm2040, %v4862, 0
      %v4890 = vsel %vm2040, %v4863, 0
      %v4893 = vsel %vm2040, %v4864, 0
      %v4896 = vsel %vm2040, %v4865, 0
      %v4899 = vsel %vm2040, %v4866, 0
      %v4902 = vsel %vm2040, %v4867, 0
      %v4905 = vsel %vm2040, %v4868, 0
      %v4908 = vsel %vm2040, %v4869, 0
      %v4911 = vsel %vm2040, %v4870, 0
      %v4914 = vsel %vm2040, %v4871, 0
      %v4917 = vsel %vm2040, %v4872, 0
      %v4920 = vsel %vm2040, %v4873, 0
      %v4923 = vsel %vm2089, %v4825, 0
      %4925 = vmatprep.subr.bf16.mxu0 0
      %4926 = vmatpush1.bf16.msra.mxu0 0
      %4927 = vmatprep.subr.bf16.mxu0 0
      %4928 = vmatpush1.bf16.msra.mxu0 0
      %4929 = vmatprep.subr.bf16.mxu0 0
      %4930 = vmatpush1.bf16.msra.mxu0 0
      %4931 = vmatprep.subr.bf16.mxu0 0
      %4932 = vmatpush1.bf16.msra.mxu0 0
      %4933 = vmatprep.subr.bf16.mxu0 0
      %4934 = vmatpush1.bf16.msra.mxu0 0
      %4935 = vmatprep.subr.bf16.mxu0 0
      %4936 = vmatpush1.bf16.msra.mxu0 0
      %4937 = vmatprep.subr.bf16.mxu0 0
      %4938 = vmatpush1.bf16.msra.mxu0 0
      %4939 = vmatprep.subr.bf16.mxu0 0
      %4940 = vmatpush1.bf16.msra.mxu0 %v4923
      %4941 = vmatprep.subr.bf16.mxu0 0
      %4942 = vmatpush2.bf16.msra.mxu0 0
      %4943 = vmatprep.subr.bf16.mxu0 0
      %4944 = vmatpush2.bf16.msra.mxu0 0
      %4945 = vmatprep.subr.bf16.mxu0 0
      %4946 = vmatpush2.bf16.msra.mxu0 0
      %4947 = vmatprep.subr.bf16.mxu0 0
      %4948 = vmatpush2.bf16.msra.mxu0 0
      %4949 = vmatprep.subr.bf16.mxu0 0
      %4950 = vmatpush2.bf16.msra.mxu0 0
      %4951 = vmatprep.subr.bf16.mxu0 0
      %4952 = vmatpush2.bf16.msra.mxu0 0
      %4953 = vmatprep.subr.bf16.mxu0 0
      %4954 = vmatpush2.bf16.msra.mxu0 0
      %4955 = vmatprep.subr.bf16.mxu0 0
      %4956 = vmatpush2.bf16.msra.mxu0 0
      %4957 = vmatprep.mubr.bf16.mxu0 0
      %4958 = vmatmul.mubr.bf16.gmra.mxu0 %v4875
      %v4959 = vpop.f32.mrf.mxu0
      %v4960 = vadd.f32 0.0, %v4959
      %v4961 = vpop.f32.mrf.mxu0
      %v4962 = vpop.f32.mrf.mxu0
      %v4963 = vadd.f32 0.0, %v4962
      %v4964 = vpop.f32.mrf.mxu0
      %4965 = vmatprep.mubr.bf16.mxu0 0
      %4966 = vmatmul.mubr.bf16.gmra.mxu0 %v4878
      %v4967 = vpop.f32.mrf.mxu0
      %v4968 = vadd.f32 0.0, %v4967
      %v4969 = vpop.f32.mrf.mxu0
      %v4970 = vpop.f32.mrf.mxu0
      %v4971 = vadd.f32 0.0, %v4970
      %v4972 = vpop.f32.mrf.mxu0
      %4973 = vmatprep.mubr.bf16.mxu0 0
      %4974 = vmatmul.mubr.bf16.gmra.mxu0 %v4881
      %v4975 = vpop.f32.mrf.mxu0
      %v4976 = vadd.f32 0.0, %v4975
      %v4977 = vpop.f32.mrf.mxu0
      %v4978 = vpop.f32.mrf.mxu0
      %v4979 = vadd.f32 0.0, %v4978
      %v4980 = vpop.f32.mrf.mxu0
      %4981 = vmatprep.mubr.bf16.mxu0 0
      %4982 = vmatmul.mubr.bf16.gmra.mxu0 %v4884
      %v4983 = vpop.f32.mrf.mxu0
      %v4984 = vadd.f32 0.0, %v4983
      %v4985 = vpop.f32.mrf.mxu0
      %v4986 = vpop.f32.mrf.mxu0
      %v4987 = vadd.f32 0.0, %v4986
      %v4988 = vpop.f32.mrf.mxu0
      %4989 = vmatprep.mubr.bf16.mxu0 0
      %4990 = vmatmul.mubr.bf16.gmra.mxu0 %v4887
      %v4991 = vpop.f32.mrf.mxu0
      %v4992 = vadd.f32 0.0, %v4991
      %v4993 = vpop.f32.mrf.mxu0
      %v4994 = vpop.f32.mrf.mxu0
      %v4995 = vadd.f32 0.0, %v4994
      %v4996 = vpop.f32.mrf.mxu0
      %4997 = vmatprep.mubr.bf16.mxu0 0
      %4998 = vmatmul.mubr.bf16.gmra.mxu0 %v4890
      %v4999 = vpop.f32.mrf.mxu0
      %v5000 = vadd.f32 0.0, %v4999
      %v5001 = vpop.f32.mrf.mxu0
      %v5002 = vpop.f32.mrf.mxu0
      %v5003 = vadd.f32 0.0, %v5002
      %v5004 = vpop.f32.mrf.mxu0
      %5005 = vmatprep.mubr.bf16.mxu0 0
      %5006 = vmatmul.mubr.bf16.gmra.mxu0 %v4893
      %v5007 = vpop.f32.mrf.mxu0
      %v5008 = vadd.f32 0.0, %v5007
      %v5009 = vpop.f32.mrf.mxu0
      %v5010 = vpop.f32.mrf.mxu0
      %v5011 = vadd.f32 0.0, %v5010
      %v5012 = vpop.f32.mrf.mxu0
      %5013 = vmatprep.mubr.bf16.mxu0 0
      %5014 = vmatmul.mubr.bf16.gmra.mxu0 %v4896
      %v5015 = vpop.f32.mrf.mxu0
      %v5016 = vadd.f32 0.0, %v5015
      %v5017 = vpop.f32.mrf.mxu0
      %v5018 = vpop.f32.mrf.mxu0
      %v5019 = vadd.f32 0.0, %v5018
      %v5020 = vpop.f32.mrf.mxu0
      %5021 = vmatprep.mubr.bf16.mxu0 0
      %5022 = vmatmul.mubr.bf16.gmra.mxu0 %v4899
      %v5023 = vpop.f32.mrf.mxu0
      %v5024 = vadd.f32 0.0, %v5023
      %v5025 = vpop.f32.mrf.mxu0
      %v5026 = vpop.f32.mrf.mxu0
      %v5027 = vadd.f32 0.0, %v5026
      %v5028 = vpop.f32.mrf.mxu0
      %5029 = vmatprep.mubr.bf16.mxu0 0
      %5030 = vmatmul.mubr.bf16.gmra.mxu0 %v4902
      %v5031 = vpop.f32.mrf.mxu0
      %v5032 = vadd.f32 0.0, %v5031
      %v5033 = vpop.f32.mrf.mxu0
      %v5034 = vpop.f32.mrf.mxu0
      %v5035 = vadd.f32 0.0, %v5034
      %v5036 = vpop.f32.mrf.mxu0
      %5037 = vmatprep.mubr.bf16.mxu0 0
      %5038 = vmatmul.mubr.bf16.gmra.mxu0 %v4905
      %v5039 = vpop.f32.mrf.mxu0
      %v5040 = vadd.f32 0.0, %v5039
      %v5041 = vpop.f32.mrf.mxu0
      %v5042 = vpop.f32.mrf.mxu0
      %v5043 = vadd.f32 0.0, %v5042
      %v5044 = vpop.f32.mrf.mxu0
      %5045 = vmatprep.mubr.bf16.mxu0 0
      %5046 = vmatmul.mubr.bf16.gmra.mxu0 %v4908
      %v5047 = vpop.f32.mrf.mxu0
      %v5048 = vadd.f32 0.0, %v5047
      %v5049 = vpop.f32.mrf.mxu0
      %v5050 = vpop.f32.mrf.mxu0
      %v5051 = vadd.f32 0.0, %v5050
      %v5052 = vpop.f32.mrf.mxu0
      %5053 = vmatprep.mubr.bf16.mxu0 0
      %5054 = vmatmul.mubr.bf16.gmra.mxu0 %v4911
      %v5055 = vpop.f32.mrf.mxu0
      %v5056 = vadd.f32 0.0, %v5055
      %v5057 = vpop.f32.mrf.mxu0
      %v5058 = vpop.f32.mrf.mxu0
      %v5059 = vadd.f32 0.0, %v5058
      %v5060 = vpop.f32.mrf.mxu0
      %5061 = vmatprep.mubr.bf16.mxu0 0
      %5062 = vmatmul.mubr.bf16.gmra.mxu0 %v4914
      %v5063 = vpop.f32.mrf.mxu0
      %v5064 = vadd.f32 0.0, %v5063
      %v5065 = vpop.f32.mrf.mxu0
      %v5066 = vpop.f32.mrf.mxu0
      %v5067 = vadd.f32 0.0, %v5066
      %v5068 = vpop.f32.mrf.mxu0
      %5069 = vmatprep.mubr.bf16.mxu0 0
      %5070 = vmatmul.mubr.bf16.gmra.mxu0 %v4917
      %v5071 = vpop.f32.mrf.mxu0
      %v5072 = vadd.f32 0.0, %v5071
      %v5073 = vpop.f32.mrf.mxu0
      %v5074 = vpop.f32.mrf.mxu0
      %v5075 = vadd.f32 0.0, %v5074
      %v5076 = vpop.f32.mrf.mxu0
      %5077 = vmatprep.mubr.bf16.mxu0 0
      %5078 = vmatmul.mubr.bf16.gmra.mxu0 %v4920
      %v5079 = vpop.f32.mrf.mxu0
      %v5080 = vadd.f32 0.0, %v5079
      %v5081 = vpop.f32.mrf.mxu0
      %v5082 = vpop.f32.mrf.mxu0
      %v5083 = vadd.f32 0.0, %v5082
      %v5084 = vpop.f32.mrf.mxu0
      %5085 = vdwg.mxu0
      %v5086 = vadd.f32 %v4792, %v4960
      %v5087 = vadd.f32 %v4793, %v4963
      %v5088 = vadd.f32 %v4794, %v4968
      %v5089 = vadd.f32 %v4795, %v4971
      %v5090 = vadd.f32 %v4796, %v4976
      %v5091 = vadd.f32 %v4797, %v4979
      %v5092 = vadd.f32 %v4798, %v4984
      %v5093 = vadd.f32 %v4799, %v4987
      %v5094 = vadd.f32 %v4800, %v4992
      %v5095 = vadd.f32 %v4801, %v4995
      %v5096 = vadd.f32 %v4802, %v5000
      %v5097 = vadd.f32 %v4803, %v5003
      %v5098 = vadd.f32 %v4804, %v5008
      %v5099 = vadd.f32 %v4805, %v5011
      %v5100 = vadd.f32 %v4806, %v5016
      %v5101 = vadd.f32 %v4807, %v5019
      %v5102 = vadd.f32 %v4808, %v5024
      %v5103 = vadd.f32 %v4809, %v5027
      %v5104 = vadd.f32 %v4810, %v5032
      %v5105 = vadd.f32 %v4811, %v5035
      %v5106 = vadd.f32 %v4812, %v5040
      %v5107 = vadd.f32 %v4813, %v5043
      %v5108 = vadd.f32 %v4814, %v5048
      %v5109 = vadd.f32 %v4815, %v5051
      %v5110 = vadd.f32 %v4816, %v5056
      %v5111 = vadd.f32 %v4817, %v5059
      %v5112 = vadd.f32 %v4818, %v5064
      %v5113 = vadd.f32 %v4819, %v5067
      %v5114 = vadd.f32 %v4820, %v5072
      %v5115 = vadd.f32 %v4821, %v5075
      %v5116 = vadd.f32 %v4822, %v5080
      %v5117 = vadd.f32 %v4823, %v5083
      %5118 = vst [vmem:[#allocation2] sm:$0xff] %v5086
      %5119 = vst [vmem:[#allocation2 + $0x8] sm:$0xff] %v5087
      %5120 = vst [vmem:[#allocation2 + $0x10] sm:$0xff] %v5088
      %5121 = vst [vmem:[#allocation2 + $0x18] sm:$0xff] %v5089
      %5122 = vst [vmem:[#allocation2 + $0x20] sm:$0xff] %v5090
      %5123 = vst [vmem:[#allocation2 + $0x28] sm:$0xff] %v5091
      %5124 = vst [vmem:[#allocation2 + $0x30] sm:$0xff] %v5092
      %5125 = vst [vmem:[#allocation2 + $0x38] sm:$0xff] %v5093
      %5126 = vst [vmem:[#allocation2 + $0x40] sm:$0xff] %v5094
      %5127 = vst [vmem:[#allocation2 + $0x48] sm:$0xff] %v5095
      %5128 = vst [vmem:[#allocation2 + $0x50] sm:$0xff] %v5096
      %5129 = vst [vmem:[#allocation2 + $0x58] sm:$0xff] %v5097
      %5130 = vst [vmem:[#allocation2 + $0x60] sm:$0xff] %v5098
      %5131 = vst [vmem:[#allocation2 + $0x68] sm:$0xff] %v5099
      %5132 = vst [vmem:[#allocation2 + $0x70] sm:$0xff] %v5100
      %5133 = vst [vmem:[#allocation2 + $0x78] sm:$0xff] %v5101
      %5134 = vst [vmem:[#allocation2 + $0x80] sm:$0xff] %v5102
      %5135 = vst [vmem:[#allocation2 + $0x88] sm:$0xff] %v5103
      %5136 = vst [vmem:[#allocation2 + $0x90] sm:$0xff] %v5104
      %5137 = vst [vmem:[#allocation2 + $0x98] sm:$0xff] %v5105
      %5138 = vst [vmem:[#allocation2 + $0xa0] sm:$0xff] %v5106
      %5139 = vst [vmem:[#allocation2 + $0xa8] sm:$0xff] %v5107
      %5140 = vst [vmem:[#allocation2 + $0xb0] sm:$0xff] %v5108
      %5141 = vst [vmem:[#allocation2 + $0xb8] sm:$0xff] %v5109
      %5142 = vst [vmem:[#allocation2 + $0xc0] sm:$0xff] %v5110
      %5143 = vst [vmem:[#allocation2 + $0xc8] sm:$0xff] %v5111
      %5144 = vst [vmem:[#allocation2 + $0xd0] sm:$0xff] %v5112
      %5145 = vst [vmem:[#allocation2 + $0xd8] sm:$0xff] %v5113
      %5146 = vst [vmem:[#allocation2 + $0xe0] sm:$0xff] %v5114
      %5147 = vst [vmem:[#allocation2 + $0xe8] sm:$0xff] %v5115
      %5148 = vst [vmem:[#allocation2 + $0xf0] sm:$0xff] %v5116
      %5149 = vst [vmem:[#allocation2 + $0xf8] sm:$0xff] %v5117
      %v5150 = vld [vmem:[#allocation2] sm:$0xff]
      %v5151 = vld [vmem:[#allocation2 + $0x8] sm:$0xff]
      %v5152 = vld [vmem:[#allocation2 + $0x10] sm:$0xff]
      %v5153 = vld [vmem:[#allocation2 + $0x18] sm:$0xff]
      %v5154 = vld [vmem:[#allocation2 + $0x20] sm:$0xff]
      %v5155 = vld [vmem:[#allocation2 + $0x28] sm:$0xff]
      %v5156 = vld [vmem:[#allocation2 + $0x30] sm:$0xff]
      %v5157 = vld [vmem:[#allocation2 + $0x38] sm:$0xff]
      %v5158 = vld [vmem:[#allocation2 + $0x40] sm:$0xff]
      %v5159 = vld [vmem:[#allocation2 + $0x48] sm:$0xff]
      %v5160 = vld [vmem:[#allocation2 + $0x50] sm:$0xff]
      %v5161 = vld [vmem:[#allocation2 + $0x58] sm:$0xff]
      %v5162 = vld [vmem:[#allocation2 + $0x60] sm:$0xff]
      %v5163 = vld [vmem:[#allocation2 + $0x68] sm:$0xff]
      %v5164 = vld [vmem:[#allocation2 + $0x70] sm:$0xff]
      %v5165 = vld [vmem:[#allocation2 + $0x78] sm:$0xff]
      %v5166 = vld [vmem:[#allocation2 + $0x80] sm:$0xff]
      %v5167 = vld [vmem:[#allocation2 + $0x88] sm:$0xff]
      %v5168 = vld [vmem:[#allocation2 + $0x90] sm:$0xff]
      %v5169 = vld [vmem:[#allocation2 + $0x98] sm:$0xff]
      %v5170 = vld [vmem:[#allocation2 + $0xa0] sm:$0xff]
      %v5171 = vld [vmem:[#allocation2 + $0xa8] sm:$0xff]
      %v5172 = vld [vmem:[#allocation2 + $0xb0] sm:$0xff]
      %v5173 = vld [vmem:[#allocation2 + $0xb8] sm:$0xff]
      %v5174 = vld [vmem:[#allocation2 + $0xc0] sm:$0xff]
      %v5175 = vld [vmem:[#allocation2 + $0xc8] sm:$0xff]
      %v5176 = vld [vmem:[#allocation2 + $0xd0] sm:$0xff]
      %v5177 = vld [vmem:[#allocation2 + $0xd8] sm:$0xff]
      %v5178 = vld [vmem:[#allocation2 + $0xe0] sm:$0xff]
      %v5179 = vld [vmem:[#allocation2 + $0xe8] sm:$0xff]
      %v5180 = vld [vmem:[#allocation2 + $0xf0] sm:$0xff]
      %v5181 = vld [vmem:[#allocation2 + $0xf8] sm:$0xff]
      %v5182 = vld [vmem:[%s2] sm:$0x1]
      %v5184 = vlaneseq
      %v5185 = vshrl.u32 %v5184, 7
      %v5186 = vsub.s32 0, %v5185
      %v5187 = vrot.slane %v5182, %v5186
      %v5189 = vadd.f32 %v5150, %v5187
      %v5190 = vadd.f32 %v5151, %v5187
      %v5191 = vadd.f32 %v5152, %v5187
      %v5192 = vadd.f32 %v5153, %v5187
      %v5193 = vadd.f32 %v5154, %v5187
      %v5194 = vadd.f32 %v5155, %v5187
      %v5195 = vadd.f32 %v5156, %v5187
      %v5196 = vadd.f32 %v5157, %v5187
      %v5197 = vadd.f32 %v5158, %v5187
      %v5198 = vadd.f32 %v5159, %v5187
      %v5199 = vadd.f32 %v5160, %v5187
      %v5200 = vadd.f32 %v5161, %v5187
      %v5201 = vadd.f32 %v5162, %v5187
      %v5202 = vadd.f32 %v5163, %v5187
      %v5203 = vadd.f32 %v5164, %v5187
      %v5204 = vadd.f32 %v5165, %v5187
      %v5205 = vadd.f32 %v5166, %v5187
      %v5206 = vadd.f32 %v5167, %v5187
      %v5207 = vadd.f32 %v5168, %v5187
      %v5208 = vadd.f32 %v5169, %v5187
      %v5209 = vadd.f32 %v5170, %v5187
      %v5210 = vadd.f32 %v5171, %v5187
      %v5211 = vadd.f32 %v5172, %v5187
      %v5212 = vadd.f32 %v5173, %v5187
      %v5213 = vadd.f32 %v5174, %v5187
      %v5214 = vadd.f32 %v5175, %v5187
      %v5215 = vadd.f32 %v5176, %v5187
      %v5216 = vadd.f32 %v5177, %v5187
      %v5217 = vadd.f32 %v5178, %v5187
      %v5218 = vadd.f32 %v5179, %v5187
      %v5219 = vadd.f32 %v5180, %v5187
      %v5220 = vadd.f32 %v5181, %v5187
      %v5221 = vmul.f32 %v5189, 0.5
      %v5222 = vmul.f32 %v5190, 0.5
      %v5223 = vmul.f32 %v5191, 0.5
      %v5224 = vmul.f32 %v5192, 0.5
      %v5225 = vmul.f32 %v5193, 0.5
      %v5226 = vmul.f32 %v5194, 0.5
      %v5227 = vmul.f32 %v5195, 0.5
      %v5228 = vmul.f32 %v5196, 0.5
      %v5229 = vmul.f32 %v5197, 0.5
      %v5230 = vmul.f32 %v5198, 0.5
      %v5231 = vmul.f32 %v5199, 0.5
      %v5232 = vmul.f32 %v5200, 0.5
      %v5233 = vmul.f32 %v5201, 0.5
      %v5234 = vmul.f32 %v5202, 0.5
      %v5235 = vmul.f32 %v5203, 0.5
      %v5236 = vmul.f32 %v5204, 0.5
      %v5237 = vmul.f32 %v5205, 0.5
      %v5238 = vmul.f32 %v5206, 0.5
      %v5239 = vmul.f32 %v5207, 0.5
      %v5240 = vmul.f32 %v5208, 0.5
      %v5241 = vmul.f32 %v5209, 0.5
      %v5242 = vmul.f32 %v5210, 0.5
      %v5243 = vmul.f32 %v5211, 0.5
      %v5244 = vmul.f32 %v5212, 0.5
      %v5245 = vmul.f32 %v5213, 0.5
      %v5246 = vmul.f32 %v5214, 0.5
      %v5247 = vmul.f32 %v5215, 0.5
      %v5248 = vmul.f32 %v5216, 0.5
      %v5249 = vmul.f32 %v5217, 0.5
      %v5250 = vmul.f32 %v5218, 0.5
      %v5251 = vmul.f32 %v5219, 0.5
      %v5252 = vmul.f32 %v5220, 0.5
      %v5253 = vtanh.pop %v5221
      %v5254 = vtanh.pop %v5222
      %v5255 = vtanh.pop %v5223
      %v5256 = vtanh.pop %v5224
      %v5257 = vtanh.pop %v5225
      %v5258 = vtanh.pop %v5226
      %v5259 = vtanh.pop %v5227
      %v5260 = vtanh.pop %v5228
      %v5261 = vtanh.pop %v5229
      %v5262 = vtanh.pop %v5230
      %v5263 = vtanh.pop %v5231
      %v5264 = vtanh.pop %v5232
      %v5265 = vtanh.pop %v5233
      %v5266 = vtanh.pop %v5234
      %v5267 = vtanh.pop %v5235
      %v5268 = vtanh.pop %v5236
      %v5269 = vtanh.pop %v5237
      %v5270 = vtanh.pop %v5238
      %v5271 = vtanh.pop %v5239
      %v5272 = vtanh.pop %v5240
      %v5273 = vtanh.pop %v5241
      %v5274 = vtanh.pop %v5242
      %v5275 = vtanh.pop %v5243
      %v5276 = vtanh.pop %v5244
      %v5277 = vtanh.pop %v5245
      %v5278 = vtanh.pop %v5246
      %v5279 = vtanh.pop %v5247
      %v5280 = vtanh.pop %v5248
      %v5281 = vtanh.pop %v5249
      %v5282 = vtanh.pop %v5250
      %v5283 = vtanh.pop %v5251
      %v5284 = vtanh.pop %v5252
      %v5285 = vadd.f32 %v5253, 1.0
      %v5286 = vadd.f32 %v5254, 1.0
      %v5287 = vadd.f32 %v5255, 1.0
      %v5288 = vadd.f32 %v5256, 1.0
      %v5289 = vadd.f32 %v5257, 1.0
      %v5290 = vadd.f32 %v5258, 1.0
      %v5291 = vadd.f32 %v5259, 1.0
      %v5292 = vadd.f32 %v5260, 1.0
      %v5293 = vadd.f32 %v5261, 1.0
      %v5294 = vadd.f32 %v5262, 1.0
      %v5295 = vadd.f32 %v5263, 1.0
      %v5296 = vadd.f32 %v5264, 1.0
      %v5297 = vadd.f32 %v5265, 1.0
      %v5298 = vadd.f32 %v5266, 1.0
      %v5299 = vadd.f32 %v5267, 1.0
      %v5300 = vadd.f32 %v5268, 1.0
      %v5301 = vadd.f32 %v5269, 1.0
      %v5302 = vadd.f32 %v5270, 1.0
      %v5303 = vadd.f32 %v5271, 1.0
      %v5304 = vadd.f32 %v5272, 1.0
      %v5305 = vadd.f32 %v5273, 1.0
      %v5306 = vadd.f32 %v5274, 1.0
      %v5307 = vadd.f32 %v5275, 1.0
      %v5308 = vadd.f32 %v5276, 1.0
      %v5309 = vadd.f32 %v5277, 1.0
      %v5310 = vadd.f32 %v5278, 1.0
      %v5311 = vadd.f32 %v5279, 1.0
      %v5312 = vadd.f32 %v5280, 1.0
      %v5313 = vadd.f32 %v5281, 1.0
      %v5314 = vadd.f32 %v5282, 1.0
      %v5315 = vadd.f32 %v5283, 1.0
      %v5316 = vadd.f32 %v5284, 1.0
      %v5317 = vmul.f32 %v5285, 0.5
      %v5318 = vmul.f32 %v5286, 0.5
      %v5319 = vmul.f32 %v5287, 0.5
      %v5320 = vmul.f32 %v5288, 0.5
      %v5321 = vmul.f32 %v5289, 0.5
      %v5322 = vmul.f32 %v5290, 0.5
      %v5323 = vmul.f32 %v5291, 0.5
      %v5324 = vmul.f32 %v5292, 0.5
      %v5325 = vmul.f32 %v5293, 0.5
      %v5326 = vmul.f32 %v5294, 0.5
      %v5327 = vmul.f32 %v5295, 0.5
      %v5328 = vmul.f32 %v5296, 0.5
      %v5329 = vmul.f32 %v5297, 0.5
      %v5330 = vmul.f32 %v5298, 0.5
      %v5331 = vmul.f32 %v5299, 0.5
      %v5332 = vmul.f32 %v5300, 0.5
      %v5333 = vmul.f32 %v5301, 0.5
      %v5334 = vmul.f32 %v5302, 0.5
      %v5335 = vmul.f32 %v5303, 0.5
      %v5336 = vmul.f32 %v5304, 0.5
      %v5337 = vmul.f32 %v5305, 0.5
      %v5338 = vmul.f32 %v5306, 0.5
      %v5339 = vmul.f32 %v5307, 0.5
      %v5340 = vmul.f32 %v5308, 0.5
      %v5341 = vmul.f32 %v5309, 0.5
      %v5342 = vmul.f32 %v5310, 0.5
      %v5343 = vmul.f32 %v5311, 0.5
      %v5344 = vmul.f32 %v5312, 0.5
      %v5345 = vmul.f32 %v5313, 0.5
      %v5346 = vmul.f32 %v5314, 0.5
      %v5347 = vmul.f32 %v5315, 0.5
      %v5348 = vmul.f32 %v5316, 0.5
      %v5349 = vmul.f32 %v5189, %v5317
      %v5350 = vmul.f32 %v5190, %v5318
      %v5351 = vmul.f32 %v5191, %v5319
      %v5352 = vmul.f32 %v5192, %v5320
      %v5353 = vmul.f32 %v5193, %v5321
      %v5354 = vmul.f32 %v5194, %v5322
      %v5355 = vmul.f32 %v5195, %v5323
      %v5356 = vmul.f32 %v5196, %v5324
      %v5357 = vmul.f32 %v5197, %v5325
      %v5358 = vmul.f32 %v5198, %v5326
      %v5359 = vmul.f32 %v5199, %v5327
      %v5360 = vmul.f32 %v5200, %v5328
      %v5361 = vmul.f32 %v5201, %v5329
      %v5362 = vmul.f32 %v5202, %v5330
      %v5363 = vmul.f32 %v5203, %v5331
      %v5364 = vmul.f32 %v5204, %v5332
      %v5365 = vmul.f32 %v5205, %v5333
      %v5366 = vmul.f32 %v5206, %v5334
      %v5367 = vmul.f32 %v5207, %v5335
      %v5368 = vmul.f32 %v5208, %v5336
      %v5369 = vmul.f32 %v5209, %v5337
      %v5370 = vmul.f32 %v5210, %v5338
      %v5371 = vmul.f32 %v5211, %v5339
      %v5372 = vmul.f32 %v5212, %v5340
      %v5373 = vmul.f32 %v5213, %v5341
      %v5374 = vmul.f32 %v5214, %v5342
      %v5375 = vmul.f32 %v5215, %v5343
      %v5376 = vmul.f32 %v5216, %v5344
      %v5377 = vmul.f32 %v5217, %v5345
      %v5378 = vmul.f32 %v5218, %v5346
      %v5379 = vmul.f32 %v5219, %v5347
      %v5380 = vmul.f32 %v5220, %v5348
      %v5381 = vpack.c.bf16 %v5350, %v5349
      %v5382 = vpack.c.bf16 %v5352, %v5351
      %v5383 = vpack.c.bf16 %v5354, %v5353
      %v5384 = vpack.c.bf16 %v5356, %v5355
      %v5385 = vpack.c.bf16 %v5358, %v5357
      %v5386 = vpack.c.bf16 %v5360, %v5359
      %v5387 = vpack.c.bf16 %v5362, %v5361
      %v5388 = vpack.c.bf16 %v5364, %v5363
      %v5389 = vpack.c.bf16 %v5366, %v5365
      %v5390 = vpack.c.bf16 %v5368, %v5367
      %v5391 = vpack.c.bf16 %v5370, %v5369
      %v5392 = vpack.c.bf16 %v5372, %v5371
      %v5393 = vpack.c.bf16 %v5374, %v5373
      %v5394 = vpack.c.bf16 %v5376, %v5375
      %v5395 = vpack.c.bf16 %v5378, %v5377
      %v5396 = vpack.c.bf16 %v5380, %v5379
      %v5413 = vunpack.c.l.b16 %v5381
      %v5414 = vunpack.c.h.b16 %v5381
      %v5415 = vunpack.c.l.b16 %v5382
      %v5416 = vunpack.c.h.b16 %v5382
      %v5417 = vunpack.c.l.b16 %v5383
      %v5418 = vunpack.c.h.b16 %v5383
      %v5419 = vunpack.c.l.b16 %v5384
      %v5420 = vunpack.c.h.b16 %v5384
      %v5421 = vunpack.c.l.b16 %v5385
      %v5422 = vunpack.c.h.b16 %v5385
      %v5423 = vunpack.c.l.b16 %v5386
      %v5424 = vunpack.c.h.b16 %v5386
      %v5425 = vunpack.c.l.b16 %v5387
      %v5426 = vunpack.c.h.b16 %v5387
      %v5427 = vunpack.c.l.b16 %v5388
      %v5428 = vunpack.c.h.b16 %v5388
      %v5429 = vunpack.c.l.b16 %v5389
      %v5430 = vunpack.c.h.b16 %v5389
      %v5431 = vunpack.c.l.b16 %v5390
      %v5432 = vunpack.c.h.b16 %v5390
      %v5433 = vunpack.c.l.b16 %v5391
      %v5434 = vunpack.c.h.b16 %v5391
      %v5435 = vunpack.c.l.b16 %v5392
      %v5436 = vunpack.c.h.b16 %v5392
      %v5437 = vunpack.c.l.b16 %v5393
      %v5438 = vunpack.c.h.b16 %v5393
      %v5439 = vunpack.c.l.b16 %v5394
      %v5440 = vunpack.c.h.b16 %v5394
      %v5441 = vunpack.c.l.b16 %v5395
      %v5442 = vunpack.c.h.b16 %v5395
      %v5443 = vunpack.c.l.b16 %v5396
      %v5444 = vunpack.c.h.b16 %v5396
      %v5445 = vpack.c.b16 %v5413, %v5413
      %v5446 = vpack.c.b16 %v5414, %v5414
      %v5447 = vpack.c.b16 %v5415, %v5415
      %v5448 = vpack.c.b16 %v5416, %v5416
      %v5449 = vpack.c.b16 %v5417, %v5417
      %v5450 = vpack.c.b16 %v5418, %v5418
      %v5451 = vpack.c.b16 %v5419, %v5419
      %v5452 = vpack.c.b16 %v5420, %v5420
      %v5453 = vpack.c.b16 %v5421, %v5421
      %v5454 = vpack.c.b16 %v5422, %v5422
      %v5455 = vpack.c.b16 %v5423, %v5423
      %v5456 = vpack.c.b16 %v5424, %v5424
      %v5457 = vpack.c.b16 %v5425, %v5425
      %v5458 = vpack.c.b16 %v5426, %v5426
      %v5459 = vpack.c.b16 %v5427, %v5427
      %v5460 = vpack.c.b16 %v5428, %v5428
      %v5461 = vpack.c.b16 %v5429, %v5429
      %v5462 = vpack.c.b16 %v5430, %v5430
      %v5463 = vpack.c.b16 %v5431, %v5431
      %v5464 = vpack.c.b16 %v5432, %v5432
      %v5465 = vpack.c.b16 %v5433, %v5433
      %v5466 = vpack.c.b16 %v5434, %v5434
      %v5467 = vpack.c.b16 %v5435, %v5435
      %v5468 = vpack.c.b16 %v5436, %v5436
      %v5469 = vpack.c.b16 %v5437, %v5437
      %v5470 = vpack.c.b16 %v5438, %v5438
      %v5471 = vpack.c.b16 %v5439, %v5439
      %v5472 = vpack.c.b16 %v5440, %v5440
      %v5473 = vpack.c.b16 %v5441, %v5441
      %v5474 = vpack.c.b16 %v5442, %v5442
      %v5475 = vpack.c.b16 %v5443, %v5443
      %v5476 = vpack.c.b16 %v5444, %v5444
      %5509 = vst [vmem:[%s194] sm:$0xf] %v5445
      %5510 = vst [vmem:[%s194 + $0x4] sm:$0xf] %v5446
      %5511 = vst [vmem:[%s194 + $0x8] sm:$0xf] %v5447
      %5512 = vst [vmem:[%s194 + $0xc] sm:$0xf] %v5448
      %5513 = vst [vmem:[%s194 + $0x10] sm:$0xf] %v5449
      %5514 = vst [vmem:[%s194 + $0x14] sm:$0xf] %v5450
      %5515 = vst [vmem:[%s194 + $0x18] sm:$0xf] %v5451
      %5516 = vst [vmem:[%s194 + $0x1c] sm:$0xf] %v5452
      %5517 = vst [vmem:[%s194 + $0x20] sm:$0xf] %v5453
      %5518 = vst [vmem:[%s194 + $0x24] sm:$0xf] %v5454
      %5519 = vst [vmem:[%s194 + $0x28] sm:$0xf] %v5455
      %5520 = vst [vmem:[%s194 + $0x2c] sm:$0xf] %v5456
      %5521 = vst [vmem:[%s194 + $0x30] sm:$0xf] %v5457
      %5522 = vst [vmem:[%s194 + $0x34] sm:$0xf] %v5458
      %5523 = vst [vmem:[%s194 + $0x38] sm:$0xf] %v5459
      %5524 = vst [vmem:[%s194 + $0x3c] sm:$0xf] %v5460
      %5525 = vst [vmem:[%s194 + $0x40] sm:$0xf] %v5461
      %5526 = vst [vmem:[%s194 + $0x44] sm:$0xf] %v5462
      %5527 = vst [vmem:[%s194 + $0x48] sm:$0xf] %v5463
      %5528 = vst [vmem:[%s194 + $0x4c] sm:$0xf] %v5464
      %5529 = vst [vmem:[%s194 + $0x50] sm:$0xf] %v5465
      %5530 = vst [vmem:[%s194 + $0x54] sm:$0xf] %v5466
      %5531 = vst [vmem:[%s194 + $0x58] sm:$0xf] %v5467
      %5532 = vst [vmem:[%s194 + $0x5c] sm:$0xf] %v5468
      %5533 = vst [vmem:[%s194 + $0x60] sm:$0xf] %v5469
      %5534 = vst [vmem:[%s194 + $0x64] sm:$0xf] %v5470
      %5535 = vst [vmem:[%s194 + $0x68] sm:$0xf] %v5471
      %5536 = vst [vmem:[%s194 + $0x6c] sm:$0xf] %v5472
      %5537 = vst [vmem:[%s194 + $0x70] sm:$0xf] %v5473
      %5538 = vst [vmem:[%s194 + $0x74] sm:$0xf] %v5474
      %5539 = vst [vmem:[%s194 + $0x78] sm:$0xf] %v5475
      %5540 = vst [vmem:[%s194 + $0x7c] sm:$0xf] %v5476
      %s5541 = smul.u32 16, %s19
      %p5542 = scmp.lt.s32.totalorder %s18, 1
      %s5543 = scalar_select %p5542, %s18, 1
      %p5544 = scmp.lt.s32.totalorder %s5541, 15
      %s5545 = scalar_select %p5544, %s5541, 15
      %s5546 = smul.addr %s5545, 2
      %s5547 = smul.addr %s5543, 32
      %s5548 = sadd.s32 %s5546, %s5547
      %s5549 = smul.addr %s5548, 4
      %s5550 = scalar_lea.vmem %s3, %s5549
      // Predicated region
      $region33: #{base_conv_forward.1} parent=31 // pred_check
        %p5551 = pneg %p114
      $region34: #{base_conv_forward.1} parent=31 // pred_check_branch
        %5553 = sbr.rel (%p5551) target = $region36
      $region35: #{base_conv_forward.1} parent=31 // pred_region
        %s5554 = smul.u32 16, %s19
      $region36: #{base_conv_forward.1} parent=31 // pred_fallthru
        _
    $region32: #{base_conv_forward.1} parent=5 // pred_fallthru
      _
    %p5555 = scmp.le.s32.totalorder 2, %s9
    // Predicated region
    $region37: #{base_conv_forward.1} parent=5 // pred_check
      %p5556 = pneg %p5555
    $region38: #{base_conv_forward.1} parent=5 // pred_check_branch
      %5558 = sbr.rel (%p5556) target = $region40
    $region39: #{base_conv_forward.1} parent=5 // pred_region
      %s5559 = ssub.s32 %s9, 2
      // Predicated region
      $region41: #{base_conv_forward.1} parent=39 // pred_check
        %p5560 = pneg %p120
      $region42: #{base_conv_forward.1} parent=39 // pred_check_branch
        %5562 = sbr.rel (%p5560) target = $region44
      $region43: #{base_conv_forward.1} parent=39 // pred_region
        %s5563 = smul.u32 16, %s21
        %p5564 = scmp.lt.s32.totalorder %s20, 1
        %s5565 = scalar_select %p5564, %s20, 1
        %p5566 = scmp.lt.s32.totalorder %s5563, 15
        %s5567 = scalar_select %p5566, %s5563, 15
        %s5568 = smul.addr %s5567, 2
        %s5569 = smul.addr %s5565, 32
        %s5570 = sadd.s32 %s5568, %s5569
        %s5571 = smul.addr %s5570, 4
        %s5572 = scalar_lea.vmem %s3, %s5571
      $region44: #{base_conv_forward.1} parent=39 // pred_fallthru
        _
    $region40: #{base_conv_forward.1} parent=5 // pred_fallthru
      _
  $region6: #{base_conv_forward.1} parent=0 // loop_footer
    %s13 = sadd.s32 1, %s9
  $region7: #{base_conv_forward.1} parent=0 // loop_footer_branch
    %8 = sbr.rel target = $region3
  $region8: #{base_conv_forward.1} parent=0 // loop_exit
    _

</llo_original>
